<compile_context>
chip_gen: v7x
topology: tpu7x:2x2x1
jax: 0.10.0
libtpu: 0.0.40
codegen_flags: <defaults>
</compile_context>

<pallas_src>
import functools
import math

import jax
import jax.numpy as jnp
from jax.experimental import pallas as pl
from jax.experimental.pallas import tpu as pltpu


# ----------------------------------------------------------------------------
# In-kernel helpers
# ----------------------------------------------------------------------------
def _ln(x, g, b, eps):
    """LayerNorm over the last dim; f32 statistics."""
    mu = jnp.mean(x, axis=-1, keepdims=True)
    var = jnp.mean(jnp.square(x - mu), axis=-1, keepdims=True)
    return (x - mu) * jax.lax.rsqrt(var + eps) * g + b


# ----------------------------------------------------------------------------
# Fused embedding kernel: text LN + image (fused feat|loc proj + LN)
# ----------------------------------------------------------------------------
def _embed_kernel(txt_ref, featloc_ref,
                  eg_ref, eb_ref,
                  iw_ref, ib_ref,
                  ig_ref, ibn_ref,
                  txt_out_ref, img_out_ref, *, eps):
    # Text embeddings: LayerNorm only (summed gathers arrive precomputed).
    txt_out_ref[...] = _ln(txt_ref[...], eg_ref[...], eb_ref[...],
                           eps).astype(txt_out_ref.dtype)
    # Image embeddings: one matmul on [feat | loc] against the stacked weight.
    img = (jnp.dot(featloc_ref[...], iw_ref[...],
                   preferred_element_type=jnp.float32) + ib_ref[...])
    img_out_ref[...] = _ln(img, ig_ref[...], ibn_ref[...],
                           eps).astype(img_out_ref.dtype)


def embed_forward(txt_sum2d, featloc2d, params, eps=1e-12):
    Mt, H = txt_sum2d.shape
    Mi, FL = featloc2d.shape
    row = lambda v: v.reshape(1, -1)
    kernel = functools.partial(_embed_kernel, eps=eps)
    full = lambda shape: pl.BlockSpec(shape, lambda i: (0,) * len(shape))
    return pl.pallas_call(
        kernel,
        out_shape=(jax.ShapeDtypeStruct((Mt, H), jnp.bfloat16),
                   jax.ShapeDtypeStruct((Mi, H), jnp.bfloat16)),
        grid=(1,),
        in_specs=[
            full((Mt, H)), full((Mi, FL)),
            full((1, H)), full((1, H)),
            full((FL, H)), full((1, H)),
            full((1, H)), full((1, H)),
        ],
        out_specs=(full((Mt, H)), full((Mi, H))),
        compiler_params=pltpu.CompilerParams(
            vmem_limit_bytes=32 * 1024 * 1024),
    )(txt_sum2d, featloc2d,
      row(params["emb_ln_g"]), row(params["emb_ln_b"]),
      params["img_w"], row(params["img_b"]),
      row(params["img_ln_g"]), row(params["img_ln_b"]))


# ----------------------------------------------------------------------------
# Fused transformer encoder STACK kernel (single pallas_call for all layers)
# ----------------------------------------------------------------------------
def _encoder_stack_kernel(x_ref, mask_ref,
                          wqkv_ref, bqkv_ref, wo_ref, bo_ref,
                          ln1g_ref, ln1b_ref,
                          w1_ref, b1_ref, w2_ref, b2_ref,
                          ln2g_ref, ln2b_ref,
                          o_ref, act_ref, *, heads, eps):
    l = pl.program_id(1)
    nl = pl.num_programs(1)

    # Layer 0: seed the resident f32 activation scratch from the bf16 input.
    @pl.when(l == 0)
    def _():
        act_ref[...] = x_ref[...].astype(jnp.float32)

    Bb, S, H = act_ref.shape
    Dh = H // heads

    x2 = act_ref[...].reshape(Bb * S, H)           # (Bb*S, H) f32
    mask = mask_ref[...]                           # (Bb, 1, S) additive f32

    # --- fused QKV projection: one bf16 cast of the activations -----------
    qkv = (jnp.dot(x2.astype(jnp.bfloat16), wqkv_ref[0],
                   preferred_element_type=jnp.float32) + bqkv_ref[0])
    # single cast after the bias add; per-head slices below stay 128-aligned.
    qkv3 = qkv.astype(jnp.bfloat16).reshape(Bb, S, 3 * H)

    # --- per-head attention; 1/sqrt(Dh) is pre-folded into Wq / bq --------
    ctx_heads = []
    for h in range(heads):
        qh = qkv3[..., h * Dh:(h + 1) * Dh]
        kh = qkv3[..., H + h * Dh:H + (h + 1) * Dh]
        vh = qkv3[..., 2 * H + h * Dh:2 * H + (h + 1) * Dh]

        s = jnp.einsum("bqd,bkd->bqk", qh, kh,
                       preferred_element_type=jnp.float32) + mask
        s = s - jnp.max(s, axis=-1, keepdims=True)
        p = jnp.exp(s)
        p = p * pl.reciprocal(jnp.sum(p, axis=-1, keepdims=True), approx=True)

        ctx_heads.append(jnp.einsum("bqk,bkd->bqd", p.astype(jnp.bfloat16),
                                    vh, preferred_element_type=jnp.float32))

    # Lane-aligned head concat (Dh = 128) -> ONE K=H output projection.
    ctx = jnp.concatenate(ctx_heads, axis=-1).reshape(Bb * S, H)
    attn = (jnp.dot(ctx.astype(jnp.bfloat16), wo_ref[0],
                    preferred_element_type=jnp.float32) + bo_ref[0])

    # --- residual + LN1, FFN (tanh-GELU), residual + LN2 ------------------
    h1 = _ln(attn + x2, ln1g_ref[0], ln1b_ref[0], eps)
    ffn = (jnp.dot(h1.astype(jnp.bfloat16), w1_ref[0],
                   preferred_element_type=jnp.float32) + b1_ref[0])
    # TODO(synk): reference BERT uses erf-GELU; tanh approx is a tiny deviation.
    ffn = jax.nn.gelu(ffn, approximate=True)
    ffn = (jnp.dot(ffn.astype(jnp.bfloat16), w2_ref[0],
                   preferred_element_type=jnp.float32) + b2_ref[0])
    out = _ln(ffn + h1, ln2g_ref[0], ln2b_ref[0], eps).reshape(Bb, S, H)

    @pl.when(l < nl - 1)
    def _():
        act_ref[...] = out                         # carry to next layer (VMEM)

    @pl.when(l == nl - 1)
    def _():
        o_ref[...] = out.astype(o_ref.dtype)       # single HBM writeback


def _pick_batch_block(B):
    """Largest divisor of B that keeps >=2 batch blocks (both v7x TCs busy)."""
    if B < 2:
        return 1
    for bblk in range(B // 2, 0, -1):
        if B % bblk == 0:
            return bblk
    return 1


def encoder_stack(hidden, add_mask, lp, *, heads, eps=1e-12):
    B, S, H = hidden.shape
    L = lp["wqkv"].shape[0]
    I = lp["w1"].shape[2]
    Bblk = _pick_batch_block(B)
    nb = B // Bblk

    kernel = functools.partial(_encoder_stack_kernel, heads=heads, eps=eps)

    def batch_spec(shape):
        return pl.BlockSpec(shape, lambda b, l: (b,) + (0,) * (len(shape) - 1))

    def layer_spec(shape):
        return pl.BlockSpec(shape, lambda b, l: (l,) + (0,) * (len(shape) - 1))

    return pl.pallas_call(
        kernel,
        out_shape=jax.ShapeDtypeStruct((B, S, H), jnp.float32),
        grid=(nb, L),                               # layer axis innermost
        in_specs=[
            batch_spec((Bblk, S, H)),               # hidden (bf16)
            batch_spec((Bblk, 1, S)),               # additive mask (f32)
            layer_spec((1, H, 3 * H)), layer_spec((1, 1, 3 * H)),   # Wqkv, bqkv
            layer_spec((1, H, H)), layer_spec((1, 1, H)),           # Wo, bo
            layer_spec((1, 1, H)), layer_spec((1, 1, H)),           # ln1 g, b
            layer_spec((1, H, I)), layer_spec((1, 1, I)),           # W1, b1
            layer_spec((1, I, H)), layer_spec((1, 1, H)),           # W2, b2
            layer_spec((1, 1, H)), layer_spec((1, 1, H)),           # ln2 g, b
        ],
        out_specs=batch_spec((Bblk, S, H)),
        scratch_shapes=[pltpu.VMEM((Bblk, S, H), jnp.float32)],
        compiler_params=pltpu.CompilerParams(
            dimension_semantics=("parallel", "arbitrary"),
            # fits all gens; cap near 48 MiB on v7x if H/I are scaled up.
            vmem_limit_bytes=32 * 1024 * 1024),
    )(hidden, add_mask,
      lp["wqkv"], lp["bqkv"],
      lp["wo"], lp["bo"],
      lp["ln1_g"], lp["ln1_b"],
      lp["w1"], lp["b1"],
      lp["w2"], lp["b2"],
      lp["ln2_g"], lp["ln2_b"])


# ----------------------------------------------------------------------------
# Model config & deterministic parameter init (stacked per-layer weights)
# ----------------------------------------------------------------------------
CFG = dict(
    vocab_size=128,
    hidden=256,        # lane-aligned small stand-in for BERT's 768
    heads=2,           # head_dim = 128 -> lane-dense per-head tiles
    layers=2,
    intermediate=512,
    max_pos=64,
    type_vocab=2,
    img_feat_dim=16,
    img_loc_dim=5,
)


def init_params(key, cfg=CFG):
    H, I, L = cfg["hidden"], cfg["intermediate"], cfg["layers"]
    F, Lc = cfg["img_feat_dim"], cfg["img_loc_dim"]
    std = 0.02
    keys = iter(jax.random.split(key, 32))

    def w32(shape):
        return (std * jax.random.normal(next(keys), shape)).astype(jnp.float32)

    def wbf(shape):
        return w32(shape).astype(jnp.bfloat16)

    zeros = lambda s: jnp.zeros(s, jnp.float32)
    ones = lambda s: jnp.ones(s, jnp.float32)

    return {
        "word_emb": w32((cfg["vocab_size"], H)),
        "pos_emb": w32((cfg["max_pos"], H)),
        "type_emb": w32((cfg["type_vocab"], H)),
        "emb_ln_g": ones((H,)), "emb_ln_b": zeros((H,)),
        # image feat & loc projections fused: [feat | loc] @ (F+Lc, H) + b
        "img_w": wbf((F + Lc, H)),
        "img_b": zeros((H,)),                      # = feat_bias + loc_bias
        "img_ln_g": ones((H,)), "img_ln_b": zeros((H,)),
        "pool_w": w32((H, H)), "pool_b": zeros((H,)),
        "nsp_w": w32((H, 2)), "nsp_b": zeros((2,)),
        # per-layer weights stacked along a leading layer axis
        "layers": {
            "wqkv": wbf((L, H, 3 * H)), "bqkv": zeros((L, 1, 3 * H)),
            "wo": wbf((L, H, H)), "bo": zeros((L, 1, H)),
            "ln1_g": ones((L, 1, H)), "ln1_b": zeros((L, 1, H)),
            "w1": wbf((L, H, I)), "b1": zeros((L, 1, I)),
            "w2": wbf((L, I, H)), "b2": zeros((L, 1, H)),
            "ln2_g": ones((L, 1, H)), "ln2_b": zeros((L, 1, H)),
        },
    }


# ----------------------------------------------------------------------------
# Forward pass (mirrors VisualDialogEncoderWithEmbedding.forward, no-label path)
# ----------------------------------------------------------------------------
def visual_dialog_encoder_forward(params, input_ids, image_feat, image_loc,
                                  token_type_ids=None, attention_mask=None,
                                  image_attention_mask=None, cfg=CFG):
    B, T = input_ids.shape
    R = image_feat.shape[1]
    H, heads = cfg["hidden"], cfg["heads"]
    S = T + R
    S_pad = ((S + 127) // 128) * 128               # lane-dense score/mask tiles

    if token_type_ids is None:
        token_type_ids = jnp.zeros((B, T), jnp.int32)
    if attention_mask is None:
        attention_mask = jnp.ones((B, T), jnp.float32)
    if image_attention_mask is None:
        image_attention_mask = jnp.ones((B, R), jnp.float32)

    # ---- embedding gathers (XLA glue), fused LN/projection kernel ----
    pos_ids = jnp.arange(T, dtype=jnp.int32)
    txt_sum = (jnp.take(params["word_emb"], input_ids, axis=0)
               + jnp.take(params["pos_emb"], pos_ids, axis=0)[None]
               + jnp.take(params["type_emb"], token_type_ids, axis=0))      # (B,T,H)

    featloc = jnp.concatenate([image_feat, image_loc],
                              axis=-1).astype(jnp.bfloat16).reshape(B * R, -1)

    txt_ln, img_ln = embed_forward(txt_sum.reshape(B * T, H), featloc, params)

    # ---- joint [text ; image] sequence, padded to S_pad; additive mask ----
    hidden = jnp.concatenate([txt_ln.reshape(B, T, H),
                              img_ln.reshape(B, R, H)], axis=1)             # (B,S,H) bf16
    hidden = jnp.pad(hidden, ((0, 0), (0, S_pad - S), (0, 0)))

    joint_mask = jnp.concatenate(
        [attention_mask.astype(jnp.float32),
         image_attention_mask.astype(jnp.float32)], axis=1)                 # (B,S)
    joint_mask = jnp.pad(joint_mask, ((0, 0), (0, S_pad - S)))              # pad keys masked
    add_mask = ((1.0 - joint_mask) * -1e9).reshape(B, 1, S_pad)

    # ---- fold 1/sqrt(head_dim) into the Q projection (free at runtime) ----
    Dh = H // heads
    scale = 1.0 / math.sqrt(Dh)
    lp = params["layers"]
    qcols = jnp.concatenate([jnp.full((H,), scale, jnp.float32),
                             jnp.ones((2 * H,), jnp.float32)])
    enc = dict(lp)
    enc["wqkv"] = (lp["wqkv"].astype(jnp.float32) * qcols).astype(jnp.bfloat16)
    enc["bqkv"] = lp["bqkv"] * qcols

    # ---- single fused pallas_call for the whole encoder stack ----
    hidden_out = encoder_stack(hidden, add_mask, enc, heads=heads)          # (B,S_pad,H) f32

    # ---- outputs; tiny tail ops deliberately kept as plain jnp ops ----
    sequence_output_t = hidden_out[:, :T, :]
    cls = hidden_out[:, 0, :]
    pooled = jnp.tanh(jnp.dot(cls, params["pool_w"]) + params["pool_b"])
    seq_relationship_score = jnp.dot(pooled, params["nsp_w"]) + params["nsp_b"]

    # forward(): labels are None -> losses stay None
    masked_lm_loss = None
    masked_img_loss = None
    nsp_loss = None
    return (sequence_output_t, masked_lm_loss, masked_img_loss,
            nsp_loss, seq_relationship_score)


# ----------------------------------------------------------------------------
if __name__ == "__main__":
    key = jax.random.PRNGKey(0)
    k_par, k_ids, k_feat, k_loc = jax.random.split(key, 4)

    B, T, R = 2, 8, 4
    params = init_params(k_par)

    input_ids = jax.random.randint(k_ids, (B, T), 0, CFG["vocab_size"], dtype=jnp.int32)
    image_feat = jax.random.normal(k_feat, (B, R, CFG["img_feat_dim"]), jnp.float32)
    image_loc = jax.random.uniform(k_loc, (B, R, CFG["img_loc_dim"]), jnp.float32)
    attention_mask = jnp.ones((B, T), jnp.float32)
    image_attention_mask = jnp.ones((B, R), jnp.float32)
    token_type_ids = jnp.zeros((B, T), jnp.int32)

    fwd = jax.jit(visual_dialog_encoder_forward)
    out = fwd(params, input_ids, image_feat, image_loc,
              token_type_ids=token_type_ids,
              attention_mask=attention_mask,
              image_attention_mask=image_attention_mask)
    seq_out, mlm_loss, mim_loss, nsp_loss, nsp_score = out
    jax.block_until_ready(seq_out)
    jax.block_until_ready(nsp_score)

    assert seq_out.shape == (B, T, CFG["hidden"])
    assert nsp_score.shape == (B, 2)
    assert mlm_loss is None and mim_loss is None and nsp_loss is None
    assert bool(jnp.all(jnp.isfinite(seq_out)))
    assert bool(jnp.all(jnp.isfinite(nsp_score)))
    print("KERNEL_OK")
</pallas_src>

<mosaic_0001>
module attributes {stable_mosaic.version = 11 : i64} {
  func.func @_embed_kernel(%arg0: i32, %arg1: memref<16x256xf32, #tpu.memory_space<vmem>>, %arg2: memref<8x21xbf16, #tpu.memory_space<vmem>>, %arg3: memref<1x256xf32, #tpu.memory_space<vmem>>, %arg4: memref<1x256xf32, #tpu.memory_space<vmem>>, %arg5: memref<21x256xbf16, #tpu.memory_space<vmem>>, %arg6: memref<1x256xf32, #tpu.memory_space<vmem>>, %arg7: memref<1x256xf32, #tpu.memory_space<vmem>>, %arg8: memref<1x256xf32, #tpu.memory_space<vmem>>, %arg9: memref<16x256xbf16, #tpu.memory_space<vmem>>, %arg10: memref<8x256xbf16, #tpu.memory_space<vmem>>) attributes {dimension_semantics = [#tpu.dimension_semantics<arbitrary>], iteration_bounds = array<i64: 1>, scalar_prefetch = 0 : i64, scratch_operands = 0 : i64, tpu.core_type = #tpu.core_type<tc>, window_params = [{pipeline_mode = #tpu.pipeline_mode<synchronous>, transform_indices = @transform_0, window_bounds = array<i64: 16, 256>}, {pipeline_mode = #tpu.pipeline_mode<synchronous>, transform_indices = @transform_1, window_bounds = array<i64: 8, 21>}, {pipeline_mode = #tpu.pipeline_mode<synchronous>, transform_indices = @transform_2, window_bounds = array<i64: 1, 256>}, {pipeline_mode = #tpu.pipeline_mode<synchronous>, transform_indices = @transform_3, window_bounds = array<i64: 1, 256>}, {pipeline_mode = #tpu.pipeline_mode<synchronous>, transform_indices = @transform_4, window_bounds = array<i64: 21, 256>}, {pipeline_mode = #tpu.pipeline_mode<synchronous>, transform_indices = @transform_5, window_bounds = array<i64: 1, 256>}, {pipeline_mode = #tpu.pipeline_mode<synchronous>, transform_indices = @transform_6, window_bounds = array<i64: 1, 256>}, {pipeline_mode = #tpu.pipeline_mode<synchronous>, transform_indices = @transform_7, window_bounds = array<i64: 1, 256>}, {pipeline_mode = #tpu.pipeline_mode<synchronous>, transform_indices = @transform_8, window_bounds = array<i64: 16, 256>}, {pipeline_mode = #tpu.pipeline_mode<synchronous>, transform_indices = @transform_9, window_bounds = array<i64: 8, 256>}]} {
    %c0 = arith.constant 0 : index
    %c0_0 = arith.constant 0 : index
    %0 = vector.load %arg1[%c0, %c0_0] : memref<16x256xf32, #tpu.memory_space<vmem>>, vector<16x256xf32>
    %c0_1 = arith.constant 0 : index
    %c0_2 = arith.constant 0 : index
    %1 = vector.load %arg3[%c0_1, %c0_2] : memref<1x256xf32, #tpu.memory_space<vmem>>, vector<1x256xf32>
    %c0_3 = arith.constant 0 : index
    %c0_4 = arith.constant 0 : index
    %2 = vector.load %arg4[%c0_3, %c0_4] : memref<1x256xf32, #tpu.memory_space<vmem>>, vector<1x256xf32>
    %cst = arith.constant dense<0.000000e+00> : vector<16xf32>
    %3 = vector.multi_reduction <add>, %0, %cst [1] : vector<16x256xf32> to vector<16xf32>
    %4 = vector.shape_cast %3 : vector<16xf32> to vector<16x1xf32>
    %cst_5 = arith.constant 2.560000e+02 : f32
    %5 = vector.broadcast %cst_5 : f32 to vector<16x1xf32>
    %6 = arith.divf %4, %5 : vector<16x1xf32>
    %7 = vector.broadcast %6 : vector<16x1xf32> to vector<16x256xf32>
    %8 = arith.subf %0, %7 : vector<16x256xf32>
    %9 = arith.mulf %8, %8 : vector<16x256xf32>
    %cst_6 = arith.constant dense<0.000000e+00> : vector<16xf32>
    %10 = vector.multi_reduction <add>, %9, %cst_6 [1] : vector<16x256xf32> to vector<16xf32>
    %11 = vector.shape_cast %10 : vector<16xf32> to vector<16x1xf32>
    %cst_7 = arith.constant 2.560000e+02 : f32
    %12 = vector.broadcast %cst_7 : f32 to vector<16x1xf32>
    %13 = arith.divf %11, %12 : vector<16x1xf32>
    %14 = vector.broadcast %6 : vector<16x1xf32> to vector<16x256xf32>
    %15 = arith.subf %0, %14 : vector<16x256xf32>
    %cst_8 = arith.constant 9.99999996E-13 : f32
    %16 = vector.broadcast %cst_8 : f32 to vector<16x1xf32>
    %17 = arith.addf %13, %16 : vector<16x1xf32>
    %18 = math.rsqrt %17 : vector<16x1xf32>
    %19 = vector.broadcast %18 : vector<16x1xf32> to vector<16x256xf32>
    %20 = arith.mulf %15, %19 : vector<16x256xf32>
    %21 = vector.broadcast %1 : vector<1x256xf32> to vector<16x256xf32>
    %22 = arith.mulf %20, %21 : vector<16x256xf32>
    %23 = vector.broadcast %2 : vector<1x256xf32> to vector<16x256xf32>
    %24 = arith.addf %22, %23 : vector<16x256xf32>
    %25 = arith.truncf %24 : vector<16x256xf32> to vector<16x256xbf16>
    %c0_9 = arith.constant 0 : index
    %c0_10 = arith.constant 0 : index
    %26 = vector.load %arg9[%c0_9, %c0_10] : memref<16x256xbf16, #tpu.memory_space<vmem>>, vector<16x256xbf16>
    tpu.vector_store %arg9[%c0_9, %c0_10], %25 {strides = array<i32>} : memref<16x256xbf16, #tpu.memory_space<vmem>>, vector<16x256xbf16>,
    %c0_11 = arith.constant 0 : index
    %c0_12 = arith.constant 0 : index
    %27 = vector.load %arg2[%c0_11, %c0_12] : memref<8x21xbf16, #tpu.memory_space<vmem>>, vector<8x21xbf16>
    %c0_13 = arith.constant 0 : index
    %c0_14 = arith.constant 0 : index
    %28 = vector.load %arg5[%c0_13, %c0_14] : memref<21x256xbf16, #tpu.memory_space<vmem>>, vector<21x256xbf16>
    %cst_15 = arith.constant dense<0.000000e+00> : vector<8x256xf32>
    %29 = tpu.matmul %27, %28, %cst_15 {dimension_numbers = #tpu.dot_dimension_numbers<[1], [0], [0], [1], [0, 0, 1, 1], [], []>} : vector<8x21xbf16>, vector<21x256xbf16>, vector<8x256xf32> -> vector<8x256xf32>
    %c0_16 = arith.constant 0 : index
    %c0_17 = arith.constant 0 : index
    %30 = vector.load %arg6[%c0_16, %c0_17] : memref<1x256xf32, #tpu.memory_space<vmem>>, vector<1x256xf32>
    %31 = vector.broadcast %30 : vector<1x256xf32> to vector<8x256xf32>
    %32 = arith.addf %29, %31 : vector<8x256xf32>
    %c0_18 = arith.constant 0 : index
    %c0_19 = arith.constant 0 : index
    %33 = vector.load %arg7[%c0_18, %c0_19] : memref<1x256xf32, #tpu.memory_space<vmem>>, vector<1x256xf32>
    %c0_20 = arith.constant 0 : index
    %c0_21 = arith.constant 0 : index
    %34 = vector.load %arg8[%c0_20, %c0_21] : memref<1x256xf32, #tpu.memory_space<vmem>>, vector<1x256xf32>
    %cst_22 = arith.constant dense<0.000000e+00> : vector<8xf32>
    %35 = vector.multi_reduction <add>, %32, %cst_22 [1] : vector<8x256xf32> to vector<8xf32>
    %36 = vector.shape_cast %35 : vector<8xf32> to vector<8x1xf32>
    %cst_23 = arith.constant 2.560000e+02 : f32
    %37 = vector.broadcast %cst_23 : f32 to vector<8x1xf32>
    %38 = arith.divf %36, %37 : vector<8x1xf32>
    %39 = vector.broadcast %38 : vector<8x1xf32> to vector<8x256xf32>
    %40 = arith.subf %32, %39 : vector<8x256xf32>
    %41 = arith.mulf %40, %40 : vector<8x256xf32>
    %cst_24 = arith.constant dense<0.000000e+00> : vector<8xf32>
    %42 = vector.multi_reduction <add>, %41, %cst_24 [1] : vector<8x256xf32> to vector<8xf32>
    %43 = vector.shape_cast %42 : vector<8xf32> to vector<8x1xf32>
    %cst_25 = arith.constant 2.560000e+02 : f32
    %44 = vector.broadcast %cst_25 : f32 to vector<8x1xf32>
    %45 = arith.divf %43, %44 : vector<8x1xf32>
    %46 = vector.broadcast %38 : vector<8x1xf32> to vector<8x256xf32>
    %47 = arith.subf %32, %46 : vector<8x256xf32>
    %cst_26 = arith.constant 9.99999996E-13 : f32
    %48 = vector.broadcast %cst_26 : f32 to vector<8x1xf32>
    %49 = arith.addf %45, %48 : vector<8x1xf32>
    %50 = math.rsqrt %49 : vector<8x1xf32>
    %51 = vector.broadcast %50 : vector<8x1xf32> to vector<8x256xf32>
    %52 = arith.mulf %47, %51 : vector<8x256xf32>
    %53 = vector.broadcast %33 : vector<1x256xf32> to vector<8x256xf32>
    %54 = arith.mulf %52, %53 : vector<8x256xf32>
    %55 = vector.broadcast %34 : vector<1x256xf32> to vector<8x256xf32>
    %56 = arith.addf %54, %55 : vector<8x256xf32>
    %57 = arith.truncf %56 : vector<8x256xf32> to vector<8x256xbf16>
    %c0_27 = arith.constant 0 : index
    %c0_28 = arith.constant 0 : index
    %58 = vector.load %arg10[%c0_27, %c0_28] : memref<8x256xbf16, #tpu.memory_space<vmem>>, vector<8x256xbf16>
    tpu.vector_store %arg10[%c0_27, %c0_28], %57 {strides = array<i32>} : memref<8x256xbf16, #tpu.memory_space<vmem>>, vector<8x256xbf16>,
    return
  }
  func.func @transform_0(%arg0: i32) -> (i32, i32) {
    %c0_i32 = arith.constant 0 : i32
    %c0_i32_0 = arith.constant 0 : i32
    %c0_i32_1 = arith.constant 0 : i32
    return %c0_i32, %c0_i32_0 : i32, i32
  }
  func.func @transform_1(%arg0: i32) -> (i32, i32) {
    %c0_i32 = arith.constant 0 : i32
    %c0_i32_0 = arith.constant 0 : i32
    %c0_i32_1 = arith.constant 0 : i32
    return %c0_i32, %c0_i32_0 : i32, i32
  }
  func.func @transform_2(%arg0: i32) -> (i32, i32) {
    %c0_i32 = arith.constant 0 : i32
    %c0_i32_0 = arith.constant 0 : i32
    %c0_i32_1 = arith.constant 0 : i32
    return %c0_i32, %c0_i32_0 : i32, i32
  }
  func.func @transform_3(%arg0: i32) -> (i32, i32) {
    %c0_i32 = arith.constant 0 : i32
    %c0_i32_0 = arith.constant 0 : i32
    %c0_i32_1 = arith.constant 0 : i32
    return %c0_i32, %c0_i32_0 : i32, i32
  }
  func.func @transform_4(%arg0: i32) -> (i32, i32) {
    %c0_i32 = arith.constant 0 : i32
    %c0_i32_0 = arith.constant 0 : i32
    %c0_i32_1 = arith.constant 0 : i32
    return %c0_i32, %c0_i32_0 : i32, i32
  }
  func.func @transform_5(%arg0: i32) -> (i32, i32) {
    %c0_i32 = arith.constant 0 : i32
    %c0_i32_0 = arith.constant 0 : i32
    %c0_i32_1 = arith.constant 0 : i32
    return %c0_i32, %c0_i32_0 : i32, i32
  }
  func.func @transform_6(%arg0: i32) -> (i32, i32) {
    %c0_i32 = arith.constant 0 : i32
    %c0_i32_0 = arith.constant 0 : i32
    %c0_i32_1 = arith.constant 0 : i32
    return %c0_i32, %c0_i32_0 : i32, i32
  }
  func.func @transform_7(%arg0: i32) -> (i32, i32) {
    %c0_i32 = arith.constant 0 : i32
    %c0_i32_0 = arith.constant 0 : i32
    %c0_i32_1 = arith.constant 0 : i32
    return %c0_i32, %c0_i32_0 : i32, i32
  }
  func.func @transform_8(%arg0: i32) -> (i32, i32) {
    %c0_i32 = arith.constant 0 : i32
    %c0_i32_0 = arith.constant 0 : i32
    %c0_i32_1 = arith.constant 0 : i32
    return %c0_i32, %c0_i32_0 : i32, i32
  }
  func.func @transform_9(%arg0: i32) -> (i32, i32) {
    %c0_i32 = arith.constant 0 : i32
    %c0_i32_0 = arith.constant 0 : i32
    %c0_i32_1 = arith.constant 0 : i32
    return %c0_i32, %c0_i32_0 : i32, i32
  }
}

module attributes {stable_mosaic.version = 11 : i64} {
  func.func @_encoder_stack_kernel(%arg0: i32, %arg1: i32, %arg2: memref<1x128x256xbf16, #tpu.memory_space<vmem>>, %arg3: memref<1x1x128xf32, #tpu.memory_space<vmem>>, %arg4: memref<1x256x768xbf16, #tpu.memory_space<vmem>>, %arg5: memref<1x1x768xf32, #tpu.memory_space<vmem>>, %arg6: memref<1x256x256xbf16, #tpu.memory_space<vmem>>, %arg7: memref<1x1x256xf32, #tpu.memory_space<vmem>>, %arg8: memref<1x1x256xf32, #tpu.memory_space<vmem>>, %arg9: memref<1x1x256xf32, #tpu.memory_space<vmem>>, %arg10: memref<1x256x512xbf16, #tpu.memory_space<vmem>>, %arg11: memref<1x1x512xf32, #tpu.memory_space<vmem>>, %arg12: memref<1x512x256xbf16, #tpu.memory_space<vmem>>, %arg13: memref<1x1x256xf32, #tpu.memory_space<vmem>>, %arg14: memref<1x1x256xf32, #tpu.memory_space<vmem>>, %arg15: memref<1x1x256xf32, #tpu.memory_space<vmem>>, %arg16: memref<1x128x256xf32, #tpu.memory_space<vmem>>, %arg17: memref<1x128x256xf32, #tpu.memory_space<vmem>>) attributes {dimension_semantics = [#tpu.dimension_semantics<parallel>, #tpu.dimension_semantics<arbitrary>], iteration_bounds = array<i64: 2, 2>, scalar_prefetch = 0 : i64, scratch_operands = 1 : i64, tpu.core_type = #tpu.core_type<tc>, window_params = [{transform_indices = @transform_0, window_bounds = array<i64: 1, 128, 256>}, {transform_indices = @transform_1, window_bounds = array<i64: 1, 1, 128>}, {transform_indices = @transform_2, window_bounds = array<i64: 1, 256, 768>}, {transform_indices = @transform_3, window_bounds = array<i64: 1, 1, 768>}, {transform_indices = @transform_4, window_bounds = array<i64: 1, 256, 256>}, {transform_indices = @transform_5, window_bounds = array<i64: 1, 1, 256>}, {transform_indices = @transform_6, window_bounds = array<i64: 1, 1, 256>}, {transform_indices = @transform_7, window_bounds = array<i64: 1, 1, 256>}, {transform_indices = @transform_8, window_bounds = array<i64: 1, 256, 512>}, {transform_indices = @transform_9, window_bounds = array<i64: 1, 1, 512>}, {transform_indices = @transform_10, window_bounds = array<i64: 1, 512, 256>}, {transform_indices = @transform_11, window_bounds = array<i64: 1, 1, 256>}, {transform_indices = @transform_12, window_bounds = array<i64: 1, 1, 256>}, {transform_indices = @transform_13, window_bounds = array<i64: 1, 1, 256>}, {transform_indices = @transform_14, window_bounds = array<i64: 1, 128, 256>}]} {
    %c0_i32 = arith.constant 0 : i32
    %0 = arith.cmpi eq, %arg1, %c0_i32 : i32
    %1 = arith.extui %0 : i1 to i32
    %c0_i32_0 = arith.constant 0 : i32
    %2 = arith.cmpi ne, %1, %c0_i32_0 : i32
    scf.if %2 {
      %c0_70 = arith.constant 0 : index
      %c0_71 = arith.constant 0 : index
      %c0_72 = arith.constant 0 : index
      %152 = vector.load %arg2[%c0_70, %c0_71, %c0_72] : memref<1x128x256xbf16, #tpu.memory_space<vmem>>, vector<1x128x256xbf16>
      %153 = arith.extf %152 : vector<1x128x256xbf16> to vector<1x128x256xf32>
      %c0_73 = arith.constant 0 : index
      %c0_74 = arith.constant 0 : index
      %c0_75 = arith.constant 0 : index
      %154 = vector.load %arg17[%c0_73, %c0_74, %c0_75] : memref<1x128x256xf32, #tpu.memory_space<vmem>>, vector<1x128x256xf32>
      tpu.vector_store %arg17[%c0_73, %c0_74, %c0_75], %153 {strides = array<i32>} : memref<1x128x256xf32, #tpu.memory_space<vmem>>, vector<1x128x256xf32>,
    } else {
    }
    %c0 = arith.constant 0 : index
    %c0_1 = arith.constant 0 : index
    %c0_2 = arith.constant 0 : index
    %3 = vector.load %arg17[%c0, %c0_1, %c0_2] : memref<1x128x256xf32, #tpu.memory_space<vmem>>, vector<1x128x256xf32>
    %4 = vector.shape_cast %3 : vector<1x128x256xf32> to vector<128x256xf32>
    %c0_3 = arith.constant 0 : index
    %c0_4 = arith.constant 0 : index
    %c0_5 = arith.constant 0 : index
    %5 = vector.load %arg3[%c0_3, %c0_4, %c0_5] : memref<1x1x128xf32, #tpu.memory_space<vmem>>, vector<1x1x128xf32>
    %6 = arith.truncf %4 : vector<128x256xf32> to vector<128x256xbf16>
    %c0_6 = arith.constant 0 : index
    %c0_7 = arith.constant 0 : index
    %c0_8 = arith.constant 0 : index
    %7 = vector.load %arg4[%c0_6, %c0_7, %c0_8] : memref<1x256x768xbf16, #tpu.memory_space<vmem>>, vector<1x256x768xbf16>
    %8 = vector.shape_cast %7 : vector<1x256x768xbf16> to vector<256x768xbf16>
    %cst = arith.constant dense<0.000000e+00> : vector<128x768xf32>
    %9 = tpu.matmul %6, %8, %cst {dimension_numbers = #tpu.dot_dimension_numbers<[1], [0], [0], [1], [0, 0, 1, 1], [], []>} : vector<128x256xbf16>, vector<256x768xbf16>, vector<128x768xf32> -> vector<128x768xf32>
    %c0_9 = arith.constant 0 : index
    %c0_10 = arith.constant 0 : index
    %c0_11 = arith.constant 0 : index
    %10 = vector.load %arg5[%c0_9, %c0_10, %c0_11] : memref<1x1x768xf32, #tpu.memory_space<vmem>>, vector<1x1x768xf32>
    %11 = vector.shape_cast %10 : vector<1x1x768xf32> to vector<1x768xf32>
    %12 = vector.broadcast %11 : vector<1x768xf32> to vector<128x768xf32>
    %13 = arith.addf %9, %12 : vector<128x768xf32>
    %14 = arith.truncf %13 : vector<128x768xf32> to vector<128x768xbf16>
    %15 = vector.shape_cast %14 : vector<128x768xbf16> to vector<1x128x768xbf16>
    %16 = vector.extract_strided_slice %15 {offsets = [0, 0, 0], sizes = [1, 128, 128], strides = [1, 1, 1]} : vector<1x128x768xbf16> to vector<1x128x128xbf16>
    %17 = vector.extract_strided_slice %15 {offsets = [0, 0, 256], sizes = [1, 128, 128], strides = [1, 1, 1]} : vector<1x128x768xbf16> to vector<1x128x128xbf16>
    %18 = vector.extract_strided_slice %15 {offsets = [0, 0, 512], sizes = [1, 128, 128], strides = [1, 1, 1]} : vector<1x128x768xbf16> to vector<1x128x128xbf16>
    "tpu.trace_start"() <{level = 10 : i32, message = "bqd,bkd->bqk"}> : () -> ()
    %cst_12 = arith.constant dense<0.000000e+00> : vector<1x128x128xf32>
    %19 = tpu.matmul %16, %17, %cst_12 {dimension_numbers = #tpu.dot_dimension_numbers<[2], [2], [1], [1], [0, 0, 0, 1, 1, 1], [0], [0]>} : vector<1x128x128xbf16>, vector<1x128x128xbf16>, vector<1x128x128xf32> -> vector<1x128x128xf32>
    "tpu.trace_stop"() : () -> ()
    %20 = vector.broadcast %5 : vector<1x1x128xf32> to vector<1x128x128xf32>
    %21 = arith.addf %19, %20 : vector<1x128x128xf32>
    %cst_13 = arith.constant dense<0xFF800000> : vector<1x128xf32>
    %22 = vector.multi_reduction <maximumf>, %21, %cst_13 [2] : vector<1x128x128xf32> to vector<1x128xf32>
    %23 = vector.shape_cast %22 : vector<1x128xf32> to vector<1x128x1xf32>
    %24 = vector.broadcast %23 : vector<1x128x1xf32> to vector<1x128x128xf32>
    %25 = arith.subf %21, %24 : vector<1x128x128xf32>
    %26 = math.exp %25 : vector<1x128x128xf32>
    %cst_14 = arith.constant dense<0.000000e+00> : vector<1x128xf32>
    %27 = vector.multi_reduction <add>, %26, %cst_14 [2] : vector<1x128x128xf32> to vector<1x128xf32>
    %28 = vector.shape_cast %27 : vector<1x128xf32> to vector<1x128x1xf32>
    %29 = tpu.reciprocal %28 {approx = true} : vector<1x128x1xf32> -> vector<1x128x1xf32>
    %30 = vector.broadcast %29 : vector<1x128x1xf32> to vector<1x128x128xf32>
    %31 = arith.mulf %26, %30 : vector<1x128x128xf32>
    %32 = arith.truncf %31 : vector<1x128x128xf32> to vector<1x128x128xbf16>
    "tpu.trace_start"() <{level = 10 : i32, message = "bqk,bkd->bqd"}> : () -> ()
    %cst_15 = arith.constant dense<0.000000e+00> : vector<1x128x128xf32>
    %33 = tpu.matmul %32, %18, %cst_15 {dimension_numbers = #tpu.dot_dimension_numbers<[2], [1], [1], [2], [0, 0, 0, 1, 1, 2], [0], [0]>} : vector<1x128x128xbf16>, vector<1x128x128xbf16>, vector<1x128x128xf32> -> vector<1x128x128xf32>
    "tpu.trace_stop"() : () -> ()
    %34 = vector.extract_strided_slice %15 {offsets = [0, 0, 128], sizes = [1, 128, 128], strides = [1, 1, 1]} : vector<1x128x768xbf16> to vector<1x128x128xbf16>
    %35 = vector.extract_strided_slice %15 {offsets = [0, 0, 384], sizes = [1, 128, 128], strides = [1, 1, 1]} : vector<1x128x768xbf16> to vector<1x128x128xbf16>
    %36 = vector.extract_strided_slice %15 {offsets = [0, 0, 640], sizes = [1, 128, 128], strides = [1, 1, 1]} : vector<1x128x768xbf16> to vector<1x128x128xbf16>
    "tpu.trace_start"() <{level = 10 : i32, message = "bqd,bkd->bqk"}> : () -> ()
    %cst_16 = arith.constant dense<0.000000e+00> : vector<1x128x128xf32>
    %37 = tpu.matmul %34, %35, %cst_16 {dimension_numbers = #tpu.dot_dimension_numbers<[2], [2], [1], [1], [0, 0, 0, 1, 1, 1], [0], [0]>} : vector<1x128x128xbf16>, vector<1x128x128xbf16>, vector<1x128x128xf32> -> vector<1x128x128xf32>
    "tpu.trace_stop"() : () -> ()
    %38 = vector.broadcast %5 : vector<1x1x128xf32> to vector<1x128x128xf32>
    %39 = arith.addf %37, %38 : vector<1x128x128xf32>
    %cst_17 = arith.constant dense<0xFF800000> : vector<1x128xf32>
    %40 = vector.multi_reduction <maximumf>, %39, %cst_17 [2] : vector<1x128x128xf32> to vector<1x128xf32>
    %41 = vector.shape_cast %40 : vector<1x128xf32> to vector<1x128x1xf32>
    %42 = vector.broadcast %41 : vector<1x128x1xf32> to vector<1x128x128xf32>
    %43 = arith.subf %39, %42 : vector<1x128x128xf32>
    %44 = math.exp %43 : vector<1x128x128xf32>
    %cst_18 = arith.constant dense<0.000000e+00> : vector<1x128xf32>
    %45 = vector.multi_reduction <add>, %44, %cst_18 [2] : vector<1x128x128xf32> to vector<1x128xf32>
    %46 = vector.shape_cast %45 : vector<1x128xf32> to vector<1x128x1xf32>
    %47 = tpu.reciprocal %46 {approx = true} : vector<1x128x1xf32> -> vector<1x128x1xf32>
    %48 = vector.broadcast %47 : vector<1x128x1xf32> to vector<1x128x128xf32>
    %49 = arith.mulf %44, %48 : vector<1x128x128xf32>
    %50 = arith.truncf %49 : vector<1x128x128xf32> to vector<1x128x128xbf16>
    "tpu.trace_start"() <{level = 10 : i32, message = "bqk,bkd->bqd"}> : () -> ()
    %cst_19 = arith.constant dense<0.000000e+00> : vector<1x128x128xf32>
    %51 = tpu.matmul %50, %36, %cst_19 {dimension_numbers = #tpu.dot_dimension_numbers<[2], [1], [1], [2], [0, 0, 0, 1, 1, 2], [0], [0]>} : vector<1x128x128xbf16>, vector<1x128x128xbf16>, vector<1x128x128xf32> -> vector<1x128x128xf32>
    "tpu.trace_stop"() : () -> ()
    %52 = tpu.concatenate %33, %51 in 2 : vector<1x128x128xf32>, vector<1x128x128xf32> -> vector<1x128x256xf32>
    %53 = vector.shape_cast %52 : vector<1x128x256xf32> to vector<128x256xf32>
    %54 = arith.truncf %53 : vector<128x256xf32> to vector<128x256xbf16>
    %c0_20 = arith.constant 0 : index
    %c0_21 = arith.constant 0 : index
    %c0_22 = arith.constant 0 : index
    %55 = vector.load %arg6[%c0_20, %c0_21, %c0_22] : memref<1x256x256xbf16, #tpu.memory_space<vmem>>, vector<1x256x256xbf16>
    %56 = vector.shape_cast %55 : vector<1x256x256xbf16> to vector<256x256xbf16>
    %cst_23 = arith.constant dense<0.000000e+00> : vector<128x256xf32>
    %57 = tpu.matmul %54, %56, %cst_23 {dimension_numbers = #tpu.dot_dimension_numbers<[1], [0], [0], [1], [0, 0, 1, 1], [], []>} : vector<128x256xbf16>, vector<256x256xbf16>, vector<128x256xf32> -> vector<128x256xf32>
    %c0_24 = arith.constant 0 : index
    %c0_25 = arith.constant 0 : index
    %c0_26 = arith.constant 0 : index
    %58 = vector.load %arg7[%c0_24, %c0_25, %c0_26] : memref<1x1x256xf32, #tpu.memory_space<vmem>>, vector<1x1x256xf32>
    %59 = vector.shape_cast %58 : vector<1x1x256xf32> to vector<1x256xf32>
    %60 = vector.broadcast %59 : vector<1x256xf32> to vector<128x256xf32>
    %61 = arith.addf %57, %60 : vector<128x256xf32>
    %62 = arith.addf %61, %4 : vector<128x256xf32>
    %c0_27 = arith.constant 0 : index
    %c0_28 = arith.constant 0 : index
    %c0_29 = arith.constant 0 : index
    %63 = vector.load %arg8[%c0_27, %c0_28, %c0_29] : memref<1x1x256xf32, #tpu.memory_space<vmem>>, vector<1x1x256xf32>
    %64 = vector.shape_cast %63 : vector<1x1x256xf32> to vector<1x256xf32>
    %c0_30 = arith.constant 0 : index
    %c0_31 = arith.constant 0 : index
    %c0_32 = arith.constant 0 : index
    %65 = vector.load %arg9[%c0_30, %c0_31, %c0_32] : memref<1x1x256xf32, #tpu.memory_space<vmem>>, vector<1x1x256xf32>
    %66 = vector.shape_cast %65 : vector<1x1x256xf32> to vector<1x256xf32>
    %cst_33 = arith.constant dense<0.000000e+00> : vector<128xf32>
    %67 = vector.multi_reduction <add>, %62, %cst_33 [1] : vector<128x256xf32> to vector<128xf32>
    %68 = vector.shape_cast %67 : vector<128xf32> to vector<128x1xf32>
    %cst_34 = arith.constant 2.560000e+02 : f32
    %69 = vector.broadcast %cst_34 : f32 to vector<128x1xf32>
    %70 = arith.divf %68, %69 : vector<128x1xf32>
    %71 = vector.broadcast %70 : vector<128x1xf32> to vector<128x256xf32>
    %72 = arith.subf %62, %71 : vector<128x256xf32>
    %73 = arith.mulf %72, %72 : vector<128x256xf32>
    %cst_35 = arith.constant dense<0.000000e+00> : vector<128xf32>
    %74 = vector.multi_reduction <add>, %73, %cst_35 [1] : vector<128x256xf32> to vector<128xf32>
    %75 = vector.shape_cast %74 : vector<128xf32> to vector<128x1xf32>
    %cst_36 = arith.constant 2.560000e+02 : f32
    %76 = vector.broadcast %cst_36 : f32 to vector<128x1xf32>
    %77 = arith.divf %75, %76 : vector<128x1xf32>
    %78 = vector.broadcast %70 : vector<128x1xf32> to vector<128x256xf32>
    %79 = arith.subf %62, %78 : vector<128x256xf32>
    %cst_37 = arith.constant 9.99999996E-13 : f32
    %80 = vector.broadcast %cst_37 : f32 to vector<128x1xf32>
    %81 = arith.addf %77, %80 : vector<128x1xf32>
    %82 = math.rsqrt %81 : vector<128x1xf32>
    %83 = vector.broadcast %82 : vector<128x1xf32> to vector<128x256xf32>
    %84 = arith.mulf %79, %83 : vector<128x256xf32>
    %85 = vector.broadcast %64 : vector<1x256xf32> to vector<128x256xf32>
    %86 = arith.mulf %84, %85 : vector<128x256xf32>
    %87 = vector.broadcast %66 : vector<1x256xf32> to vector<128x256xf32>
    %88 = arith.addf %86, %87 : vector<128x256xf32>
    %89 = arith.truncf %88 : vector<128x256xf32> to vector<128x256xbf16>
    %c0_38 = arith.constant 0 : index
    %c0_39 = arith.constant 0 : index
    %c0_40 = arith.constant 0 : index
    %90 = vector.load %arg10[%c0_38, %c0_39, %c0_40] : memref<1x256x512xbf16, #tpu.memory_space<vmem>>, vector<1x256x512xbf16>
    %91 = vector.shape_cast %90 : vector<1x256x512xbf16> to vector<256x512xbf16>
    %cst_41 = arith.constant dense<0.000000e+00> : vector<128x512xf32>
    %92 = tpu.matmul %89, %91, %cst_41 {dimension_numbers = #tpu.dot_dimension_numbers<[1], [0], [0], [1], [0, 0, 1, 1], [], []>} : vector<128x256xbf16>, vector<256x512xbf16>, vector<128x512xf32> -> vector<128x512xf32>
    %c0_42 = arith.constant 0 : index
    %c0_43 = arith.constant 0 : index
    %c0_44 = arith.constant 0 : index
    %93 = vector.load %arg11[%c0_42, %c0_43, %c0_44] : memref<1x1x512xf32, #tpu.memory_space<vmem>>, vector<1x1x512xf32>
    %94 = vector.shape_cast %93 : vector<1x1x512xf32> to vector<1x512xf32>
    %95 = vector.broadcast %94 : vector<1x512xf32> to vector<128x512xf32>
    %96 = arith.addf %92, %95 : vector<128x512xf32>
    %97 = arith.mulf %96, %96 : vector<128x512xf32>
    %98 = arith.mulf %96, %97 : vector<128x512xf32>
    %cst_45 = arith.constant 4.471500e-02 : f32
    %99 = vector.broadcast %cst_45 : f32 to vector<128x512xf32>
    %100 = arith.mulf %99, %98 : vector<128x512xf32>
    %101 = arith.addf %96, %100 : vector<128x512xf32>
    %cst_46 = arith.constant 0.797884583 : f32
    %102 = vector.broadcast %cst_46 : f32 to vector<128x512xf32>
    %103 = arith.mulf %102, %101 : vector<128x512xf32>
    %104 = math.tanh %103 : vector<128x512xf32>
    %cst_47 = arith.constant 1.000000e+00 : f32
    %105 = vector.broadcast %cst_47 : f32 to vector<128x512xf32>
    %106 = arith.addf %105, %104 : vector<128x512xf32>
    %cst_48 = arith.constant 5.000000e-01 : f32
    %107 = vector.broadcast %cst_48 : f32 to vector<128x512xf32>
    %108 = arith.mulf %107, %106 : vector<128x512xf32>
    %109 = arith.mulf %96, %108 : vector<128x512xf32>
    %110 = arith.truncf %109 : vector<128x512xf32> to vector<128x512xbf16>
    %c0_49 = arith.constant 0 : index
    %c0_50 = arith.constant 0 : index
    %c0_51 = arith.constant 0 : index
    %111 = vector.load %arg12[%c0_49, %c0_50, %c0_51] : memref<1x512x256xbf16, #tpu.memory_space<vmem>>, vector<1x512x256xbf16>
    %112 = vector.shape_cast %111 : vector<1x512x256xbf16> to vector<512x256xbf16>
    %cst_52 = arith.constant dense<0.000000e+00> : vector<128x256xf32>
    %113 = tpu.matmul %110, %112, %cst_52 {dimension_numbers = #tpu.dot_dimension_numbers<[1], [0], [0], [1], [0, 0, 1, 1], [], []>} : vector<128x512xbf16>, vector<512x256xbf16>, vector<128x256xf32> -> vector<128x256xf32>
    %c0_53 = arith.constant 0 : index
    %c0_54 = arith.constant 0 : index
    %c0_55 = arith.constant 0 : index
    %114 = vector.load %arg13[%c0_53, %c0_54, %c0_55] : memref<1x1x256xf32, #tpu.memory_space<vmem>>, vector<1x1x256xf32>
    %115 = vector.shape_cast %114 : vector<1x1x256xf32> to vector<1x256xf32>
    %116 = vector.broadcast %115 : vector<1x256xf32> to vector<128x256xf32>
    %117 = arith.addf %113, %116 : vector<128x256xf32>
    %118 = arith.addf %117, %88 : vector<128x256xf32>
    %c0_56 = arith.constant 0 : index
    %c0_57 = arith.constant 0 : index
    %c0_58 = arith.constant 0 : index
    %119 = vector.load %arg14[%c0_56, %c0_57, %c0_58] : memref<1x1x256xf32, #tpu.memory_space<vmem>>, vector<1x1x256xf32>
    %120 = vector.shape_cast %119 : vector<1x1x256xf32> to vector<1x256xf32>
    %c0_59 = arith.constant 0 : index
    %c0_60 = arith.constant 0 : index
    %c0_61 = arith.constant 0 : index
    %121 = vector.load %arg15[%c0_59, %c0_60, %c0_61] : memref<1x1x256xf32, #tpu.memory_space<vmem>>, vector<1x1x256xf32>
    %122 = vector.shape_cast %121 : vector<1x1x256xf32> to vector<1x256xf32>
    %cst_62 = arith.constant dense<0.000000e+00> : vector<128xf32>
    %123 = vector.multi_reduction <add>, %118, %cst_62 [1] : vector<128x256xf32> to vector<128xf32>
    %124 = vector.shape_cast %123 : vector<128xf32> to vector<128x1xf32>
    %cst_63 = arith.constant 2.560000e+02 : f32
    %125 = vector.broadcast %cst_63 : f32 to vector<128x1xf32>
    %126 = arith.divf %124, %125 : vector<128x1xf32>
    %127 = vector.broadcast %126 : vector<128x1xf32> to vector<128x256xf32>
    %128 = arith.subf %118, %127 : vector<128x256xf32>
    %129 = arith.mulf %128, %128 : vector<128x256xf32>
    %cst_64 = arith.constant dense<0.000000e+00> : vector<128xf32>
    %130 = vector.multi_reduction <add>, %129, %cst_64 [1] : vector<128x256xf32> to vector<128xf32>
    %131 = vector.shape_cast %130 : vector<128xf32> to vector<128x1xf32>
    %cst_65 = arith.constant 2.560000e+02 : f32
    %132 = vector.broadcast %cst_65 : f32 to vector<128x1xf32>
    %133 = arith.divf %131, %132 : vector<128x1xf32>
    %134 = vector.broadcast %126 : vector<128x1xf32> to vector<128x256xf32>
    %135 = arith.subf %118, %134 : vector<128x256xf32>
    %cst_66 = arith.constant 9.99999996E-13 : f32
    %136 = vector.broadcast %cst_66 : f32 to vector<128x1xf32>
    %137 = arith.addf %133, %136 : vector<128x1xf32>
    %138 = math.rsqrt %137 : vector<128x1xf32>
    %139 = vector.broadcast %138 : vector<128x1xf32> to vector<128x256xf32>
    %140 = arith.mulf %135, %139 : vector<128x256xf32>
    %141 = vector.broadcast %120 : vector<1x256xf32> to vector<128x256xf32>
    %142 = arith.mulf %140, %141 : vector<128x256xf32>
    %143 = vector.broadcast %122 : vector<1x256xf32> to vector<128x256xf32>
    %144 = arith.addf %142, %143 : vector<128x256xf32>
    %145 = vector.shape_cast %144 : vector<128x256xf32> to vector<1x128x256xf32>
    %c1_i32 = arith.constant 1 : i32
    %146 = arith.cmpi slt, %arg1, %c1_i32 : i32
    %147 = arith.extui %146 : i1 to i32
    %c0_i32_67 = arith.constant 0 : i32
    %148 = arith.cmpi ne, %147, %c0_i32_67 : i32
    scf.if %148 {
      %c0_70 = arith.constant 0 : index
      %c0_71 = arith.constant 0 : index
      %c0_72 = arith.constant 0 : index
      %152 = vector.load %arg17[%c0_70, %c0_71, %c0_72] : memref<1x128x256xf32, #tpu.memory_space<vmem>>, vector<1x128x256xf32>
      tpu.vector_store %arg17[%c0_70, %c0_71, %c0_72], %145 {strides = array<i32>} : memref<1x128x256xf32, #tpu.memory_space<vmem>>, vector<1x128x256xf32>,
    } else {
    }
    %c1_i32_68 = arith.constant 1 : i32
    %149 = arith.cmpi eq, %arg1, %c1_i32_68 : i32
    %150 = arith.extui %149 : i1 to i32
    %c0_i32_69 = arith.constant 0 : i32
    %151 = arith.cmpi ne, %150, %c0_i32_69 : i32
    scf.if %151 {
      %c0_70 = arith.constant 0 : index
      %c0_71 = arith.constant 0 : index
      %c0_72 = arith.constant 0 : index
      %152 = vector.load %arg16[%c0_70, %c0_71, %c0_72] : memref<1x128x256xf32, #tpu.memory_space<vmem>>, vector<1x128x256xf32>
      tpu.vector_store %arg16[%c0_70, %c0_71, %c0_72], %145 {strides = array<i32>} : memref<1x128x256xf32, #tpu.memory_space<vmem>>, vector<1x128x256xf32>,
    } else {
    }
    return
  }
  func.func @transform_0(%arg0: i32, %arg1: i32) -> (i32, i32, i32) {
    %c0_i32 = arith.constant 0 : i32
    %c0_i32_0 = arith.constant 0 : i32
    %c0_i32_1 = arith.constant 0 : i32
    return %arg0, %c0_i32, %c0_i32_0 : i32, i32, i32
  }
  func.func @transform_1(%arg0: i32, %arg1: i32) -> (i32, i32, i32) {
    %c0_i32 = arith.constant 0 : i32
    %c0_i32_0 = arith.constant 0 : i32
    %c0_i32_1 = arith.constant 0 : i32
    return %arg0, %c0_i32, %c0_i32_0 : i32, i32, i32
  }
  func.func @transform_2(%arg0: i32, %arg1: i32) -> (i32, i32, i32) {
    %c0_i32 = arith.constant 0 : i32
    %c0_i32_0 = arith.constant 0 : i32
    %c0_i32_1 = arith.constant 0 : i32
    return %arg1, %c0_i32, %c0_i32_0 : i32, i32, i32
  }
  func.func @transform_3(%arg0: i32, %arg1: i32) -> (i32, i32, i32) {
    %c0_i32 = arith.constant 0 : i32
    %c0_i32_0 = arith.constant 0 : i32
    %c0_i32_1 = arith.constant 0 : i32
    return %arg1, %c0_i32, %c0_i32_0 : i32, i32, i32
  }
  func.func @transform_4(%arg0: i32, %arg1: i32) -> (i32, i32, i32) {
    %c0_i32 = arith.constant 0 : i32
    %c0_i32_0 = arith.constant 0 : i32
    %c0_i32_1 = arith.constant 0 : i32
    return %arg1, %c0_i32, %c0_i32_0 : i32, i32, i32
  }
  func.func @transform_5(%arg0: i32, %arg1: i32) -> (i32, i32, i32) {
    %c0_i32 = arith.constant 0 : i32
    %c0_i32_0 = arith.constant 0 : i32
    %c0_i32_1 = arith.constant 0 : i32
    return %arg1, %c0_i32, %c0_i32_0 : i32, i32, i32
  }
  func.func @transform_6(%arg0: i32, %arg1: i32) -> (i32, i32, i32) {
    %c0_i32 = arith.constant 0 : i32
    %c0_i32_0 = arith.constant 0 : i32
    %c0_i32_1 = arith.constant 0 : i32
    return %arg1, %c0_i32, %c0_i32_0 : i32, i32, i32
  }
  func.func @transform_7(%arg0: i32, %arg1: i32) -> (i32, i32, i32) {
    %c0_i32 = arith.constant 0 : i32
    %c0_i32_0 = arith.constant 0 : i32
    %c0_i32_1 = arith.constant 0 : i32
    return %arg1, %c0_i32, %c0_i32_0 : i32, i32, i32
  }
  func.func @transform_8(%arg0: i32, %arg1: i32) -> (i32, i32, i32) {
    %c0_i32 = arith.constant 0 : i32
    %c0_i32_0 = arith.constant 0 : i32
    %c0_i32_1 = arith.constant 0 : i32
    return %arg1, %c0_i32, %c0_i32_0 : i32, i32, i32
  }
  func.func @transform_9(%arg0: i32, %arg1: i32) -> (i32, i32, i32) {
    %c0_i32 = arith.constant 0 : i32
    %c0_i32_0 = arith.constant 0 : i32
    %c0_i32_1 = arith.constant 0 : i32
    return %arg1, %c0_i32, %c0_i32_0 : i32, i32, i32
  }
  func.func @transform_10(%arg0: i32, %arg1: i32) -> (i32, i32, i32) {
    %c0_i32 = arith.constant 0 : i32
    %c0_i32_0 = arith.constant 0 : i32
    %c0_i32_1 = arith.constant 0 : i32
    return %arg1, %c0_i32, %c0_i32_0 : i32, i32, i32
  }
  func.func @transform_11(%arg0: i32, %arg1: i32) -> (i32, i32, i32) {
    %c0_i32 = arith.constant 0 : i32
    %c0_i32_0 = arith.constant 0 : i32
    %c0_i32_1 = arith.constant 0 : i32
    return %arg1, %c0_i32, %c0_i32_0 : i32, i32, i32
  }
  func.func @transform_12(%arg0: i32, %arg1: i32) -> (i32, i32, i32) {
    %c0_i32 = arith.constant 0 : i32
    %c0_i32_0 = arith.constant 0 : i32
    %c0_i32_1 = arith.constant 0 : i32
    return %arg1, %c0_i32, %c0_i32_0 : i32, i32, i32
  }
  func.func @transform_13(%arg0: i32, %arg1: i32) -> (i32, i32, i32) {
    %c0_i32 = arith.constant 0 : i32
    %c0_i32_0 = arith.constant 0 : i32
    %c0_i32_1 = arith.constant 0 : i32
    return %arg1, %c0_i32, %c0_i32_0 : i32, i32, i32
  }
  func.func @transform_14(%arg0: i32, %arg1: i32) -> (i32, i32, i32) {
    %c0_i32 = arith.constant 0 : i32
    %c0_i32_0 = arith.constant 0 : i32
    %c0_i32_1 = arith.constant 0 : i32
    return %arg0, %c0_i32, %c0_i32_0 : i32, i32, i32
  }
}

</mosaic_0001>

<llo_original>
// kernel: visual_dialog_encoder_forward.2
$region0: #{visual_dialog_encoder_forward.2}
  #allocation0 [shape = 'u32[]', space=smem, size = 0x4, offset = 0x4, fixed_abs, tag = 'smem constant byte address 0x4 - core index']
  #allocation1 [shape = 'u32[144,128]{1,0:T(1,128)}', space=vmem, size = 0x12000, scoped, tag = 'internal scratch']
  %s0 = inlined_call_operand.vmem [shape: f32[16,256], index: 0, kind: input, shape index: {}]
  %s1 = inlined_call_operand.vmem [shape: bf16[8,21], index: 1, kind: input, shape index: {}]
  %s2 = inlined_call_operand.hbm [shape: f32[1,256], index: 2, kind: input, shape index: {}]
  %s3 = inlined_call_operand.hbm [shape: f32[1,256], index: 3, kind: input, shape index: {}]
  %s4 = inlined_call_operand.hbm [shape: bf16[21,256], index: 4, kind: input, shape index: {}]
  %s5 = inlined_call_operand.hbm [shape: f32[1,256], index: 5, kind: input, shape index: {}]
  %s6 = inlined_call_operand.hbm [shape: f32[1,256], index: 6, kind: input, shape index: {}]
  %s7 = inlined_call_operand.hbm [shape: f32[1,256], index: 7, kind: input, shape index: {}]
  %s8 = inlined_call_operand.vmem [shape: bf16[16,256], index: 8, kind: output, shape index: {0}]
  %s9 = inlined_call_operand.vmem [shape: bf16[8,256], index: 9, kind: output, shape index: {1}]
  %10 = xla_tuple %s8, %s9
  %s11 = sld [smem:[#allocation0]]
  $region74: #{visual_dialog_encoder_forward.2} parent=0
    _
  %s13 = ssub.s32 1, %s11
  %s14 = scalar_select 0, %s13, %s11
  $region1: #{visual_dialog_encoder_forward.2} parent=0
    #allocation2 [shape = 'u8[1024]{0}', space=vmem, size = 0x400, scoped, tag = 'input window, operand 2, single buffered']
    #allocation3 [shape = 's32[1]{0}', space=sflag, size = 0x4, scoped, tag = 'scoped memory for visual_dialog_encoder_forward.2']
    #allocation4 [shape = 'u8[1024]{0}', space=vmem, size = 0x400, scoped, tag = 'input window, operand 3, single buffered']
    #allocation5 [shape = 's32[1]{0}', space=sflag, size = 0x4, scoped, tag = 'scoped memory for visual_dialog_encoder_forward.2']
    #allocation6 [shape = 'u8[12288]{0}', space=vmem, size = 0x3000, scoped, tag = 'input window, operand 4, single buffered']
    #allocation7 [shape = 'u8[1024]{0}', space=vmem, size = 0x400, scoped, tag = 'input window, operand 5, single buffered']
    #allocation8 [shape = 's32[1]{0}', space=sflag, size = 0x4, scoped, tag = 'scoped memory for visual_dialog_encoder_forward.2']
    #allocation9 [shape = 'u8[1024]{0}', space=vmem, size = 0x400, scoped, tag = 'input window, operand 6, single buffered']
    #allocation10 [shape = 'u8[1024]{0}', space=vmem, size = 0x400, scoped, tag = 'input window, operand 7, single buffered']
    #allocation11 [shape = 's32[1]{0}', space=sflag, size = 0x4, scoped, tag = 'scoped memory for visual_dialog_encoder_forward.2']
    %15 = vsyncpa [#allocation3], 0
    %16 = vsyncpa [#allocation5], 0
    %17 = vsyncpa [#allocation8], 0
    %18 = vsyncpa [#allocation11], 0
    // Predicated region
    $region2: #{visual_dialog_encoder_forward.2} parent=1 // pred_check
      _
    $region3: #{visual_dialog_encoder_forward.2} parent=1 // pred_check_branch
      %20 = sbr.rel (0) target = $region5
    $region4: #{visual_dialog_encoder_forward.2} parent=1 // pred_region
      _
    $region5: #{visual_dialog_encoder_forward.2} parent=1 // pred_fallthru
      _
    // Predicated region
    $region6: #{visual_dialog_encoder_forward.2} parent=1 // pred_check
      _
    $region7: #{visual_dialog_encoder_forward.2} parent=1 // pred_check_branch
      %22 = sbr.rel (0) target = $region9
    $region8: #{visual_dialog_encoder_forward.2} parent=1 // pred_region
      _
    $region9: #{visual_dialog_encoder_forward.2} parent=1 // pred_fallthru
      _
    // Predicated region
    $region10: #{visual_dialog_encoder_forward.2} parent=1 // pred_check
      _
    $region11: #{visual_dialog_encoder_forward.2} parent=1 // pred_check_branch
      %24 = sbr.rel (0) target = $region13
    $region12: #{visual_dialog_encoder_forward.2} parent=1 // pred_region
      %s26 = ssub.s32 32, 32
      %27 = vsyncadd [#allocation3], %s26
      %s29 = sshll.u32 [#allocation2], 4
      %s30 = int_to_ptr.vmem [resolvable:$true] %s29
      %32 = dma.hbm_to_vmem [thread:$0]  %s2, 32, %s30, [#allocation3]
    $region13: #{visual_dialog_encoder_forward.2} parent=1 // pred_fallthru
      _
    // Predicated region
    $region14: #{visual_dialog_encoder_forward.2} parent=1 // pred_check
      _
    $region15: #{visual_dialog_encoder_forward.2} parent=1 // pred_check_branch
      %34 = sbr.rel (0) target = $region17
    $region16: #{visual_dialog_encoder_forward.2} parent=1 // pred_region
      %s36 = ssub.s32 32, 32
      %37 = vsyncadd [#allocation5], %s36
      %s39 = sshll.u32 [#allocation4], 4
      %s40 = int_to_ptr.vmem [resolvable:$true] %s39
      %42 = dma.hbm_to_vmem [thread:$0]  %s3, 32, %s40, [#allocation5]
    $region17: #{visual_dialog_encoder_forward.2} parent=1 // pred_fallthru
      _
    // Predicated region
    $region18: #{visual_dialog_encoder_forward.2} parent=1 // pred_check
      _
    $region19: #{visual_dialog_encoder_forward.2} parent=1 // pred_check_branch
      %44 = sbr.rel (0) target = $region21
    $region20: #{visual_dialog_encoder_forward.2} parent=1 // pred_region
      %s46 = ssub.s32 384, 384
      %47 = vsyncadd [#allocation5], %s46
      %s48 = sshll.u32 [#allocation6], 4
      %s49 = int_to_ptr.vmem [resolvable:$true] %s48
      %54 = dma.hbm_to_vmem [thread:$0]  %s4, 384, %s49, [#allocation5], 128, 128, 8
    $region21: #{visual_dialog_encoder_forward.2} parent=1 // pred_fallthru
      _
    // Predicated region
    $region22: #{visual_dialog_encoder_forward.2} parent=1 // pred_check
      _
    $region23: #{visual_dialog_encoder_forward.2} parent=1 // pred_check_branch
      %56 = sbr.rel (0) target = $region25
    $region24: #{visual_dialog_encoder_forward.2} parent=1 // pred_region
      %s58 = ssub.s32 32, 32
      %59 = vsyncadd [#allocation8], %s58
      %s61 = sshll.u32 [#allocation7], 4
      %s62 = int_to_ptr.vmem [resolvable:$true] %s61
      %64 = dma.hbm_to_vmem [thread:$0]  %s5, 32, %s62, [#allocation8]
    $region25: #{visual_dialog_encoder_forward.2} parent=1 // pred_fallthru
      _
    // Predicated region
    $region26: #{visual_dialog_encoder_forward.2} parent=1 // pred_check
      _
    $region27: #{visual_dialog_encoder_forward.2} parent=1 // pred_check_branch
      %66 = sbr.rel (0) target = $region29
    $region28: #{visual_dialog_encoder_forward.2} parent=1 // pred_region
      %s68 = ssub.s32 32, 32
      %69 = vsyncadd [#allocation8], %s68
      %s71 = sshll.u32 [#allocation9], 4
      %s72 = int_to_ptr.vmem [resolvable:$true] %s71
      %74 = dma.hbm_to_vmem [thread:$0]  %s6, 32, %s72, [#allocation8]
    $region29: #{visual_dialog_encoder_forward.2} parent=1 // pred_fallthru
      _
    // Predicated region
    $region30: #{visual_dialog_encoder_forward.2} parent=1 // pred_check
      _
    $region31: #{visual_dialog_encoder_forward.2} parent=1 // pred_check_branch
      %76 = sbr.rel (0) target = $region33
    $region32: #{visual_dialog_encoder_forward.2} parent=1 // pred_region
      %s78 = ssub.s32 32, 32
      %79 = vsyncadd [#allocation11], %s78
      %s81 = sshll.u32 [#allocation10], 4
      %s82 = int_to_ptr.vmem [resolvable:$true] %s81
      %84 = dma.hbm_to_vmem [thread:$0]  %s7, 32, %s82, [#allocation11]
    $region33: #{visual_dialog_encoder_forward.2} parent=1 // pred_fallthru
      _
    // Predicated region
    $region34: #{visual_dialog_encoder_forward.2} parent=1 // pred_check
      _
    $region35: #{visual_dialog_encoder_forward.2} parent=1 // pred_check_branch
      %86 = sbr.rel (0) target = $region37
    $region36: #{visual_dialog_encoder_forward.2} parent=1 // pred_region
      %87 = dma.done [#allocation3], 32
    $region37: #{visual_dialog_encoder_forward.2} parent=1 // pred_fallthru
      _
    // Predicated region
    $region38: #{visual_dialog_encoder_forward.2} parent=1 // pred_check
      _
    $region39: #{visual_dialog_encoder_forward.2} parent=1 // pred_check_branch
      %89 = sbr.rel (0) target = $region41
    $region40: #{visual_dialog_encoder_forward.2} parent=1 // pred_region
      %90 = dma.done [#allocation5], 32
    $region41: #{visual_dialog_encoder_forward.2} parent=1 // pred_fallthru
      _
    // Predicated region
    $region42: #{visual_dialog_encoder_forward.2} parent=1 // pred_check
      _
    $region43: #{visual_dialog_encoder_forward.2} parent=1 // pred_check_branch
      %92 = sbr.rel (0) target = $region45
    $region44: #{visual_dialog_encoder_forward.2} parent=1 // pred_region
      %93 = dma.done [#allocation5], 384
    $region45: #{visual_dialog_encoder_forward.2} parent=1 // pred_fallthru
      _
    // Predicated region
    $region46: #{visual_dialog_encoder_forward.2} parent=1 // pred_check
      _
    $region47: #{visual_dialog_encoder_forward.2} parent=1 // pred_check_branch
      %95 = sbr.rel (0) target = $region49
    $region48: #{visual_dialog_encoder_forward.2} parent=1 // pred_region
      %96 = dma.done [#allocation8], 32
    $region49: #{visual_dialog_encoder_forward.2} parent=1 // pred_fallthru
      _
    // Predicated region
    $region50: #{visual_dialog_encoder_forward.2} parent=1 // pred_check
      _
    $region51: #{visual_dialog_encoder_forward.2} parent=1 // pred_check_branch
      %98 = sbr.rel (0) target = $region53
    $region52: #{visual_dialog_encoder_forward.2} parent=1 // pred_region
      %99 = dma.done [#allocation8], 32
    $region53: #{visual_dialog_encoder_forward.2} parent=1 // pred_fallthru
      _
    // Predicated region
    $region54: #{visual_dialog_encoder_forward.2} parent=1 // pred_check
      _
    $region55: #{visual_dialog_encoder_forward.2} parent=1 // pred_check_branch
      %101 = sbr.rel (0) target = $region57
    $region56: #{visual_dialog_encoder_forward.2} parent=1 // pred_region
      %102 = dma.done [#allocation11], 32
    $region57: #{visual_dialog_encoder_forward.2} parent=1 // pred_fallthru
      _
    %v104 = vld [vmem:[%s0] sm:$0xff]
    %v105 = vld [vmem:[%s0 + $0x8] sm:$0xff]
    %v106 = vld [vmem:[%s0 + $0x10] sm:$0xff]
    %v107 = vld [vmem:[%s0 + $0x18] sm:$0xff]
    %v108 = vld [vmem:[#allocation2] sm:$0x3]
    %v109 = vld [vmem:[#allocation4] sm:$0x3]
    %v110 = vadd.f32 %v104, %v105
    %111 = vadd.xlane.f32.xlu0 %v110
    %v112 = vpop.xlane.xlu0 %111
    %v113 = vadd.f32 %v106, %v107
    %114 = vadd.xlane.f32.xlu0 %v113
    %v115 = vpop.xlane.xlu0 %114
    %v116 = vrcp.pop 256.0
    %v117 = vmul.f32 %v112, %v116
    %v118 = vmul.f32 %v115, %v116
    %v119 = vsub.f32 %v104, %v117
    %v120 = vsub.f32 %v105, %v117
    %v121 = vsub.f32 %v106, %v118
    %v122 = vsub.f32 %v107, %v118
    %v123 = vmul.f32 %v119, %v119
    %v124 = vmul.f32 %v120, %v120
    %v125 = vmul.f32 %v121, %v121
    %v126 = vmul.f32 %v122, %v122
    %v127 = vadd.f32 %v123, %v124
    %128 = vadd.xlane.f32.xlu0 %v127
    %v129 = vpop.xlane.xlu0 %128
    %v130 = vadd.f32 %v125, %v126
    %131 = vadd.xlane.f32.xlu0 %v130
    %v132 = vpop.xlane.xlu0 %131
    %v133 = vmul.f32 %v129, %v116
    %v134 = vmul.f32 %v132, %v116
    %v135 = vadd.f32 %v133, 1e-12
    %v136 = vadd.f32 %v134, 1e-12
    %v137 = vrsqrt.pop %v135
    %v138 = vrsqrt.pop %v136
    %v139 = vmul.f32 %v119, %v137
    %v140 = vmul.f32 %v120, %v137
    %v141 = vmul.f32 %v121, %v138
    %v142 = vmul.f32 %v122, %v138
    %v144 = vlaneseq
    %v145 = vshrl.u32 %v144, 7
    %v146 = vsub.s32 0, %v145
    %v147 = vrot.slane %v108, %v146
    %v148 = vlaneseq
    %v149 = vshrl.u32 %v148, 7
    %v150 = vsub.s32 1, %v149
    %v151 = vrot.slane %v108, %v150
    %v154 = vmul.f32 %v139, %v147
    %v155 = vmul.f32 %v140, %v151
    %v156 = vmul.f32 %v141, %v147
    %v157 = vmul.f32 %v142, %v151
    %v159 = vlaneseq
    %v160 = vshrl.u32 %v159, 7
    %v161 = vsub.s32 0, %v160
    %v162 = vrot.slane %v109, %v161
    %v163 = vlaneseq
    %v164 = vshrl.u32 %v163, 7
    %v165 = vsub.s32 1, %v164
    %v166 = vrot.slane %v109, %v165
    %v169 = vadd.f32 %v154, %v162
    %v170 = vadd.f32 %v155, %v166
    %v171 = vadd.f32 %v156, %v162
    %v172 = vadd.f32 %v157, %v166
    %v173 = vpack.c.bf16 %v171, %v169
    %v174 = vpack.c.bf16 %v172, %v170
    %v177 = vunpack.c.l.b16 %v173
    %v178 = vunpack.c.l.b16 %v174
    %v179 = vunpack.c.h.b16 %v173
    %v180 = vunpack.c.h.b16 %v174
    %v181 = vpack.c.b16 %v178, %v177
    %v182 = vpack.c.b16 %v180, %v179
    %185 = vst [vmem:[%s8] sm:$0xff] %v181
    %186 = vst [vmem:[%s8 + $0x8] sm:$0xff] %v182
    %v187 = vld [vmem:[%s1] sm:$0xf]
    %v188 = vld [vmem:[#allocation6] sm:$0xff]
    %v189 = vld [vmem:[#allocation6 + $0x8] sm:$0xff]
    %v190 = vld [vmem:[#allocation6 + $0x10] sm:$0x77]
    %v191 = vld [vmem:[#allocation7] sm:$0x3]
    %v193 = vlaneseq
    %v194 = vshrl.u32 %v193, 7
    %v195 = vsub.s32 0, %v194
    %v196 = vrot.slane %v191, %v195
    %v197 = vlaneseq
    %v198 = vshrl.u32 %v197, 7
    %v199 = vsub.s32 1, %v198
    %v200 = vrot.slane %v191, %v199
    %v206 = vunpack.c.l.b16 %v188
    %v207 = vunpack.c.h.b16 %v188
    %v208 = vunpack.c.l.b16 %v189
    %v209 = vunpack.c.h.b16 %v189
    %v210 = vunpack.c.l.b16 %v190
    %v211 = vunpack.c.h.b16 %v190
    %v212 = vpack.c.b16 %v208, %v206
    %v213 = vpack.c.b16 %v209, %v207
    %v214 = vpack.c.b16 %v210, %v210
    %v215 = vpack.c.b16 %v211, %v211
    %vm218 = vcmask 171008
    %v220 = vsel %vm218, %v187, 0
    %vm222 = vcmask 1041408
    %vm223 = vcmask 1042432
    %v224 = vsel %vm222, 4294967295, 65535
    %v225 = vsel %vm223, %v224, 0
    %v227 = vand.u32 %v214, %v225
    %v230 = vand.u32 %v215, %v225
    %232 = vmatprep.subr.bf16.mxu0 %v213
    %233 = vmatpush1.bf16.msra.mxu0 %v212
    %234 = vmatprep.subr.bf16.mxu0 %v230
    %235 = vmatpush1.bf16.msra.mxu0 %v227
    %236 = vmatprep.subr.bf16.mxu0 0
    %237 = vmatpush1.bf16.msra.mxu0 0
    %238 = vmatprep.subr.bf16.mxu0 0
    %239 = vmatpush1.bf16.msra.mxu0 0
    %240 = vmatprep.subr.bf16.mxu0 0
    %241 = vmatpush1.bf16.msra.mxu0 0
    %242 = vmatprep.subr.bf16.mxu0 0
    %243 = vmatpush1.bf16.msra.mxu0 0
    %244 = vmatprep.subr.bf16.mxu0 0
    %245 = vmatpush1.bf16.msra.mxu0 0
    %246 = vmatprep.subr.bf16.mxu0 0
    %247 = vmatpush1.bf16.msra.mxu0 0
    %248 = vmatprep.subr.bf16.mxu0 0
    %249 = vmatpush1.bf16.msra.mxu0 0
    %250 = vmatprep.subr.bf16.mxu0 0
    %251 = vmatpush1.bf16.msra.mxu0 0
    %252 = vmatprep.subr.bf16.mxu0 0
    %253 = vmatpush1.bf16.msra.mxu0 0
    %254 = vmatprep.subr.bf16.mxu0 0
    %255 = vmatpush1.bf16.msra.mxu0 0
    %256 = vmatprep.subr.bf16.mxu0 0
    %257 = vmatpush1.bf16.msra.mxu0 0
    %258 = vmatprep.subr.bf16.mxu0 0
    %259 = vmatpush1.bf16.msra.mxu0 0
    %260 = vmatprep.subr.bf16.mxu0 0
    %261 = vmatpush1.bf16.msra.mxu0 0
    %262 = vmatprep.subr.bf16.mxu0 0
    %263 = vmatpush1.bf16.msra.mxu0 0
    %264 = vmatprep.mubr.bf16.mxu0 0
    %265 = vmatmul.mubr.bf16.gmra.mrb[0].mxu0 %v220
    %v266 = vpop.f32.mrb[0].mxu0
    %v267 = vadd.f32 %v196, %v266
    %v268 = vpop.f32.mrb[0].mxu0
    %v269 = vadd.f32 %v200, %v268
    %v270 = vpop.f32.mrb[0].mxu0
    %v271 = vpop.f32.mrb[0].mxu0
    %272 = vdwg.mxu0
    %v273 = vld [vmem:[#allocation9] sm:$0x3]
    %v274 = vld [vmem:[#allocation10] sm:$0x3]
    %v275 = vadd.f32 %v267, %v269
    %276 = vadd.xlane.f32.xlu0 %v275
    %v277 = vpop.xlane.xlu0 %276
    %v278 = vmul.f32 %v277, %v116
    %v279 = vsub.f32 %v267, %v278
    %v280 = vsub.f32 %v269, %v278
    %v281 = vmul.f32 %v279, %v279
    %v282 = vmul.f32 %v280, %v280
    %v283 = vadd.f32 %v281, %v282
    %284 = vadd.xlane.f32.xlu0 %v283
    %v285 = vpop.xlane.xlu0 %284
    %v286 = vmul.f32 %v285, %v116
    %v287 = vadd.f32 %v286, 1e-12
    %v288 = vrsqrt.pop %v287
    %v289 = vmul.f32 %v279, %v288
    %v290 = vmul.f32 %v280, %v288
    %v292 = vlaneseq
    %v293 = vshrl.u32 %v292, 7
    %v294 = vsub.s32 0, %v293
    %v295 = vrot.slane %v273, %v294
    %v296 = vlaneseq
    %v297 = vshrl.u32 %v296, 7
    %v298 = vsub.s32 1, %v297
    %v299 = vrot.slane %v273, %v298
    %v302 = vmul.f32 %v289, %v295
    %v303 = vmul.f32 %v290, %v299
    %v305 = vlaneseq
    %v306 = vshrl.u32 %v305, 7
    %v307 = vsub.s32 0, %v306
    %v308 = vrot.slane %v274, %v307
    %v309 = vlaneseq
    %v310 = vshrl.u32 %v309, 7
    %v311 = vsub.s32 1, %v310
    %v312 = vrot.slane %v274, %v311
    %v315 = vadd.f32 %v302, %v308
    %v316 = vadd.f32 %v303, %v312
    %v317 = vpack.c.bf16 %v315, %v315
    %v318 = vpack.c.bf16 %v316, %v316
    %v321 = vunpack.c.l.b16 %v317
    %v322 = vunpack.c.l.b16 %v318
    %v323 = vpack.c.b16 %v322, %v321
    %325 = vst [vmem:[%s9] sm:$0xff] %v323
    // Predicated region
    $region58: #{visual_dialog_encoder_forward.2} parent=1 // pred_check
      _
    $region59: #{visual_dialog_encoder_forward.2} parent=1 // pred_check_branch
      %327 = sbr.rel (0) target = $region61
    $region60: #{visual_dialog_encoder_forward.2} parent=1 // pred_region
      _
    $region61: #{visual_dialog_encoder_forward.2} parent=1 // pred_fallthru
      _
    // Predicated region
    $region62: #{visual_dialog_encoder_forward.2} parent=1 // pred_check
      _
    $region63: #{visual_dialog_encoder_forward.2} parent=1 // pred_check_branch
      %329 = sbr.rel (0) target = $region65
    $region64: #{visual_dialog_encoder_forward.2} parent=1 // pred_region
      _
    $region65: #{visual_dialog_encoder_forward.2} parent=1 // pred_fallthru
      _
    // Predicated region
    $region66: #{visual_dialog_encoder_forward.2} parent=1 // pred_check
      _
    $region67: #{visual_dialog_encoder_forward.2} parent=1 // pred_check_branch
      %331 = sbr.rel (0) target = $region69
    $region68: #{visual_dialog_encoder_forward.2} parent=1 // pred_region
      _
    $region69: #{visual_dialog_encoder_forward.2} parent=1 // pred_fallthru
      _
    // Predicated region
    $region70: #{visual_dialog_encoder_forward.2} parent=1 // pred_check
      _
    $region71: #{visual_dialog_encoder_forward.2} parent=1 // pred_check_branch
      %333 = sbr.rel (0) target = $region73
    $region72: #{visual_dialog_encoder_forward.2} parent=1 // pred_region
      _
    $region73: #{visual_dialog_encoder_forward.2} parent=1 // pred_fallthru
      _
    %334 = vsyncpa [#allocation3], 1
    %335 = vsyncpa [#allocation5], 1
    %336 = vsyncpa [#allocation8], 1
    %337 = vsyncpa [#allocation11], 1

// kernel: visual_dialog_encoder_forward.3
$region0: #{visual_dialog_encoder_forward.3}
  #allocation0 [shape = 'u32[]', space=smem, size = 0x4, offset = 0x4, fixed_abs, tag = 'smem constant byte address 0x4 - core index']
  #allocation1 [shape = 'u32[144,128]{1,0:T(1,128)}', space=vmem, size = 0x12000, scoped, tag = 'internal scratch']
  #allocation2 [shape = 'f32[1,128,256]{2,1,0:T(8,128)}', space=vmem, size = 0x20000, scoped, tag = 'scratch operand']
  %s0 = inlined_call_operand.vmem [shape: bf16[2,128,256], index: 0, kind: input, shape index: {}]
  %s1 = inlined_call_operand.vmem [shape: f32[2,1,128], index: 1, kind: input, shape index: {}]
  %s2 = inlined_call_operand.vmem [shape: bf16[2,256,768], index: 2, kind: input, shape index: {}]
  %s3 = inlined_call_operand.vmem [shape: f32[2,1,768], index: 3, kind: input, shape index: {}]
  %s4 = inlined_call_operand.vmem [shape: bf16[2,256,256], index: 4, kind: input, shape index: {}]
  %s5 = inlined_call_operand.vmem [shape: f32[2,1,256], index: 5, kind: input, shape index: {}]
  %s6 = inlined_call_operand.vmem [shape: f32[2,1,256], index: 6, kind: input, shape index: {}]
  %s7 = inlined_call_operand.vmem [shape: f32[2,1,256], index: 7, kind: input, shape index: {}]
  %s8 = inlined_call_operand.vmem [shape: bf16[2,256,512], index: 8, kind: input, shape index: {}]
  %s9 = inlined_call_operand.vmem [shape: f32[2,1,512], index: 9, kind: input, shape index: {}]
  %s10 = inlined_call_operand.vmem [shape: bf16[2,512,256], index: 10, kind: input, shape index: {}]
  %s11 = inlined_call_operand.vmem [shape: f32[2,1,256], index: 11, kind: input, shape index: {}]
  %s12 = inlined_call_operand.vmem [shape: f32[2,1,256], index: 12, kind: input, shape index: {}]
  %s13 = inlined_call_operand.vmem [shape: f32[2,1,256], index: 13, kind: input, shape index: {}]
  %s14 = inlined_call_operand.vmem [shape: f32[2,128,256], index: 14, kind: output, shape index: {}]
  %s15 = sld [smem:[#allocation0]]
  $region101: #{visual_dialog_encoder_forward.3} parent=0
    _
  %s17 = ssub.s32 1, %s15
  %s18 = scalar_select 0, %s17, %s15
  loop: start=0, step=1, limit=6
  $region2: #{visual_dialog_encoder_forward.3} parent=0 // loop_pre_header
    _
  $region3: #{visual_dialog_encoder_forward.3} parent=0 // loop_header
    %s20 = sphi 0, %s24
    %p21 = scmp.ge.s32.totalorder %s20, 6
    %s27 = sphi 0, %s39
    %s28 = sphi 0, %s35
    %s29 = sphi 0, %s27
    %s30 = sphi 0, %s28
    %s31 = sphi 0, %s29
    %s32 = sphi 0, %s30
    %s42 = sphi 0, %s44
    %s45 = sphi 0, %s42
    %s46 = sphi 0, %s45
    %s62 = sphi 0, %s46
    %s68 = sphi 0, %s70
    %s71 = sphi 0, %s68
    %s72 = sphi 0, %s71
    %s88 = sphi 0, %s72
    %s94 = sphi 0, %s96
    %s97 = sphi 0, %s94
    %s98 = sphi 0, %s97
    %s114 = sphi 0, %s98
    %s120 = sphi 0, %s122
    %s123 = sphi 0, %s120
    %s124 = sphi 0, %s123
    %s140 = sphi 0, %s124
    %s146 = sphi 0, %s148
    %s149 = sphi 0, %s146
    %s150 = sphi 0, %s149
    %s166 = sphi 0, %s150
    %s172 = sphi 0, %s174
    %s175 = sphi 0, %s172
    %s176 = sphi 0, %s175
    %s192 = sphi 0, %s176
    %s198 = sphi 0, %s200
    %s201 = sphi 0, %s198
    %s202 = sphi 0, %s201
    %s218 = sphi 0, %s202
    %s224 = sphi 0, %s226
    %s227 = sphi 0, %s224
    %s228 = sphi 0, %s227
    %s244 = sphi 0, %s228
    %s250 = sphi 0, %s252
    %s253 = sphi 0, %s250
    %s254 = sphi 0, %s253
    %s270 = sphi 0, %s254
    %s276 = sphi 0, %s278
    %s279 = sphi 0, %s276
    %s280 = sphi 0, %s279
    %s296 = sphi 0, %s280
    %s302 = sphi 0, %s304
    %s305 = sphi 0, %s302
    %s306 = sphi 0, %s305
    %s322 = sphi 0, %s306
    %s328 = sphi 0, %s330
    %s331 = sphi 0, %s328
    %s332 = sphi 0, %s331
    %s348 = sphi 0, %s332
    %s354 = sphi 0, %s356
    %s357 = sphi 0, %s354
    %s358 = sphi 0, %s357
    %s374 = sphi 0, %s358
    %s380 = sphi 0, %s382
    %s383 = sphi 0, %s380
    %s384 = sphi 0, %s383
    %s400 = sphi 0, %s384
    %s406 = sphi 0, %s408
    %s409 = sphi 0, %s406
    %s410 = sphi 0, %s409
    %s426 = sphi 0, %s410
  $region4: #{visual_dialog_encoder_forward.3} parent=0 // loop_header_branch
    %23 = sbr.rel (%p21) target = $region8
  $region5: #{visual_dialog_encoder_forward.3} parent=0 // loop_body
    %s25 = ssub.s32 %s20, 1
    %s26 = ssub.s32 %s20, 2
    %s33 = sadd.s32 1, %s28
    %p34 = scmp.ge.s32.totalorder %s33, 2
    %s35 = scalar_select %p34, 0, %s33
    %s36 = sadd.s32 1, %s27
    %s37 = scalar_select %p34, %s36, %s27
    %p38 = scmp.ge.s32.totalorder %s37, 2
    %s39 = scalar_select %p38, 0, %s37
    %s40 = ssub.s32 %s27, %s39
    %p41 = scmp.eq.s32.totalorder %s40, 0
    %s43 = sadd.s32 %s42, 1
    %s44 = scalar_select %p41, %s42, %s43
    %p47 = pneg %p41
    %p48 = scmp.eq.s32.totalorder %s20, 3
    %p49 = por %p47, %p48
    %p50 = scmp.ne.s32.totalorder %s42, %s45
    %p51 = scmp.eq.s32.totalorder %s20, 0
    %p52 = por %p50, %p51
    %p53 = scmp.ne.s32.totalorder %s42, %s45
    %p54 = scmp.eq.s32.totalorder %s25, 3
    %p55 = por %p53, %p54
    %p56 = scmp.ne.s32.totalorder %s45, %s46
    %p57 = scmp.eq.s32.totalorder %s25, 0
    %p58 = por %p56, %p57
    %p59 = scmp.ne.s32.totalorder %s45, %s46
    %p60 = scmp.eq.s32.totalorder %s26, 3
    %p61 = por %p59, %p60
    %p63 = scmp.ne.s32.totalorder %s46, %s62
    %p64 = scmp.eq.s32.totalorder %s26, 0
    %p65 = por %p63, %p64
    %s66 = ssub.s32 %s27, %s39
    %p67 = scmp.eq.s32.totalorder %s66, 0
    %s69 = sadd.s32 %s68, 1
    %s70 = scalar_select %p67, %s68, %s69
    %p73 = pneg %p67
    %p74 = scmp.eq.s32.totalorder %s20, 3
    %p75 = por %p73, %p74
    %p76 = scmp.ne.s32.totalorder %s68, %s71
    %p77 = scmp.eq.s32.totalorder %s20, 0
    %p78 = por %p76, %p77
    %p79 = scmp.ne.s32.totalorder %s68, %s71
    %p80 = scmp.eq.s32.totalorder %s25, 3
    %p81 = por %p79, %p80
    %p82 = scmp.ne.s32.totalorder %s71, %s72
    %p83 = scmp.eq.s32.totalorder %s25, 0
    %p84 = por %p82, %p83
    %p85 = scmp.ne.s32.totalorder %s71, %s72
    %p86 = scmp.eq.s32.totalorder %s26, 3
    %p87 = por %p85, %p86
    %p89 = scmp.ne.s32.totalorder %s72, %s88
    %p90 = scmp.eq.s32.totalorder %s26, 0
    %p91 = por %p89, %p90
    %s92 = ssub.s32 %s28, %s35
    %p93 = scmp.eq.s32.totalorder %s92, 0
    %s95 = sadd.s32 %s94, 1
    %s96 = scalar_select %p93, %s94, %s95
    %p99 = pneg %p93
    %p100 = scmp.eq.s32.totalorder %s20, 3
    %p101 = por %p99, %p100
    %p102 = scmp.ne.s32.totalorder %s94, %s97
    %p103 = scmp.eq.s32.totalorder %s20, 0
    %p104 = por %p102, %p103
    %p105 = scmp.ne.s32.totalorder %s94, %s97
    %p106 = scmp.eq.s32.totalorder %s25, 3
    %p107 = por %p105, %p106
    %p108 = scmp.ne.s32.totalorder %s97, %s98
    %p109 = scmp.eq.s32.totalorder %s25, 0
    %p110 = por %p108, %p109
    %p111 = scmp.ne.s32.totalorder %s97, %s98
    %p112 = scmp.eq.s32.totalorder %s26, 3
    %p113 = por %p111, %p112
    %p115 = scmp.ne.s32.totalorder %s98, %s114
    %p116 = scmp.eq.s32.totalorder %s26, 0
    %p117 = por %p115, %p116
    %s118 = ssub.s32 %s28, %s35
    %p119 = scmp.eq.s32.totalorder %s118, 0
    %s121 = sadd.s32 %s120, 1
    %s122 = scalar_select %p119, %s120, %s121
    %p125 = pneg %p119
    %p126 = scmp.eq.s32.totalorder %s20, 3
    %p127 = por %p125, %p126
    %p128 = scmp.ne.s32.totalorder %s120, %s123
    %p129 = scmp.eq.s32.totalorder %s20, 0
    %p130 = por %p128, %p129
    %p131 = scmp.ne.s32.totalorder %s120, %s123
    %p132 = scmp.eq.s32.totalorder %s25, 3
    %p133 = por %p131, %p132
    %p134 = scmp.ne.s32.totalorder %s123, %s124
    %p135 = scmp.eq.s32.totalorder %s25, 0
    %p136 = por %p134, %p135
    %p137 = scmp.ne.s32.totalorder %s123, %s124
    %p138 = scmp.eq.s32.totalorder %s26, 3
    %p139 = por %p137, %p138
    %p141 = scmp.ne.s32.totalorder %s124, %s140
    %p142 = scmp.eq.s32.totalorder %s26, 0
    %p143 = por %p141, %p142
    %s144 = ssub.s32 %s28, %s35
    %p145 = scmp.eq.s32.totalorder %s144, 0
    %s147 = sadd.s32 %s146, 1
    %s148 = scalar_select %p145, %s146, %s147
    %p151 = pneg %p145
    %p152 = scmp.eq.s32.totalorder %s20, 3
    %p153 = por %p151, %p152
    %p154 = scmp.ne.s32.totalorder %s146, %s149
    %p155 = scmp.eq.s32.totalorder %s20, 0
    %p156 = por %p154, %p155
    %p157 = scmp.ne.s32.totalorder %s146, %s149
    %p158 = scmp.eq.s32.totalorder %s25, 3
    %p159 = por %p157, %p158
    %p160 = scmp.ne.s32.totalorder %s149, %s150
    %p161 = scmp.eq.s32.totalorder %s25, 0
    %p162 = por %p160, %p161
    %p163 = scmp.ne.s32.totalorder %s149, %s150
    %p164 = scmp.eq.s32.totalorder %s26, 3
    %p165 = por %p163, %p164
    %p167 = scmp.ne.s32.totalorder %s150, %s166
    %p168 = scmp.eq.s32.totalorder %s26, 0
    %p169 = por %p167, %p168
    %s170 = ssub.s32 %s28, %s35
    %p171 = scmp.eq.s32.totalorder %s170, 0
    %s173 = sadd.s32 %s172, 1
    %s174 = scalar_select %p171, %s172, %s173
    %p177 = pneg %p171
    %p178 = scmp.eq.s32.totalorder %s20, 3
    %p179 = por %p177, %p178
    %p180 = scmp.ne.s32.totalorder %s172, %s175
    %p181 = scmp.eq.s32.totalorder %s20, 0
    %p182 = por %p180, %p181
    %p183 = scmp.ne.s32.totalorder %s172, %s175
    %p184 = scmp.eq.s32.totalorder %s25, 3
    %p185 = por %p183, %p184
    %p186 = scmp.ne.s32.totalorder %s175, %s176
    %p187 = scmp.eq.s32.totalorder %s25, 0
    %p188 = por %p186, %p187
    %p189 = scmp.ne.s32.totalorder %s175, %s176
    %p190 = scmp.eq.s32.totalorder %s26, 3
    %p191 = por %p189, %p190
    %p193 = scmp.ne.s32.totalorder %s176, %s192
    %p194 = scmp.eq.s32.totalorder %s26, 0
    %p195 = por %p193, %p194
    %s196 = ssub.s32 %s28, %s35
    %p197 = scmp.eq.s32.totalorder %s196, 0
    %s199 = sadd.s32 %s198, 1
    %s200 = scalar_select %p197, %s198, %s199
    %p203 = pneg %p197
    %p204 = scmp.eq.s32.totalorder %s20, 3
    %p205 = por %p203, %p204
    %p206 = scmp.ne.s32.totalorder %s198, %s201
    %p207 = scmp.eq.s32.totalorder %s20, 0
    %p208 = por %p206, %p207
    %p209 = scmp.ne.s32.totalorder %s198, %s201
    %p210 = scmp.eq.s32.totalorder %s25, 3
    %p211 = por %p209, %p210
    %p212 = scmp.ne.s32.totalorder %s201, %s202
    %p213 = scmp.eq.s32.totalorder %s25, 0
    %p214 = por %p212, %p213
    %p215 = scmp.ne.s32.totalorder %s201, %s202
    %p216 = scmp.eq.s32.totalorder %s26, 3
    %p217 = por %p215, %p216
    %p219 = scmp.ne.s32.totalorder %s202, %s218
    %p220 = scmp.eq.s32.totalorder %s26, 0
    %p221 = por %p219, %p220
    %s222 = ssub.s32 %s28, %s35
    %p223 = scmp.eq.s32.totalorder %s222, 0
    %s225 = sadd.s32 %s224, 1
    %s226 = scalar_select %p223, %s224, %s225
    %p229 = pneg %p223
    %p230 = scmp.eq.s32.totalorder %s20, 3
    %p231 = por %p229, %p230
    %p232 = scmp.ne.s32.totalorder %s224, %s227
    %p233 = scmp.eq.s32.totalorder %s20, 0
    %p234 = por %p232, %p233
    %p235 = scmp.ne.s32.totalorder %s224, %s227
    %p236 = scmp.eq.s32.totalorder %s25, 3
    %p237 = por %p235, %p236
    %p238 = scmp.ne.s32.totalorder %s227, %s228
    %p239 = scmp.eq.s32.totalorder %s25, 0
    %p240 = por %p238, %p239
    %p241 = scmp.ne.s32.totalorder %s227, %s228
    %p242 = scmp.eq.s32.totalorder %s26, 3
    %p243 = por %p241, %p242
    %p245 = scmp.ne.s32.totalorder %s228, %s244
    %p246 = scmp.eq.s32.totalorder %s26, 0
    %p247 = por %p245, %p246
    %s248 = ssub.s32 %s28, %s35
    %p249 = scmp.eq.s32.totalorder %s248, 0
    %s251 = sadd.s32 %s250, 1
    %s252 = scalar_select %p249, %s250, %s251
    %p255 = pneg %p249
    %p256 = scmp.eq.s32.totalorder %s20, 3
    %p257 = por %p255, %p256
    %p258 = scmp.ne.s32.totalorder %s250, %s253
    %p259 = scmp.eq.s32.totalorder %s20, 0
    %p260 = por %p258, %p259
    %p261 = scmp.ne.s32.totalorder %s250, %s253
    %p262 = scmp.eq.s32.totalorder %s25, 3
    %p263 = por %p261, %p262
    %p264 = scmp.ne.s32.totalorder %s253, %s254
    %p265 = scmp.eq.s32.totalorder %s25, 0
    %p266 = por %p264, %p265
    %p267 = scmp.ne.s32.totalorder %s253, %s254
    %p268 = scmp.eq.s32.totalorder %s26, 3
    %p269 = por %p267, %p268
    %p271 = scmp.ne.s32.totalorder %s254, %s270
    %p272 = scmp.eq.s32.totalorder %s26, 0
    %p273 = por %p271, %p272
    %s274 = ssub.s32 %s28, %s35
    %p275 = scmp.eq.s32.totalorder %s274, 0
    %s277 = sadd.s32 %s276, 1
    %s278 = scalar_select %p275, %s276, %s277
    %p281 = pneg %p275
    %p282 = scmp.eq.s32.totalorder %s20, 3
    %p283 = por %p281, %p282
    %p284 = scmp.ne.s32.totalorder %s276, %s279
    %p285 = scmp.eq.s32.totalorder %s20, 0
    %p286 = por %p284, %p285
    %p287 = scmp.ne.s32.totalorder %s276, %s279
    %p288 = scmp.eq.s32.totalorder %s25, 3
    %p289 = por %p287, %p288
    %p290 = scmp.ne.s32.totalorder %s279, %s280
    %p291 = scmp.eq.s32.totalorder %s25, 0
    %p292 = por %p290, %p291
    %p293 = scmp.ne.s32.totalorder %s279, %s280
    %p294 = scmp.eq.s32.totalorder %s26, 3
    %p295 = por %p293, %p294
    %p297 = scmp.ne.s32.totalorder %s280, %s296
    %p298 = scmp.eq.s32.totalorder %s26, 0
    %p299 = por %p297, %p298
    %s300 = ssub.s32 %s28, %s35
    %p301 = scmp.eq.s32.totalorder %s300, 0
    %s303 = sadd.s32 %s302, 1
    %s304 = scalar_select %p301, %s302, %s303
    %p307 = pneg %p301
    %p308 = scmp.eq.s32.totalorder %s20, 3
    %p309 = por %p307, %p308
    %p310 = scmp.ne.s32.totalorder %s302, %s305
    %p311 = scmp.eq.s32.totalorder %s20, 0
    %p312 = por %p310, %p311
    %p313 = scmp.ne.s32.totalorder %s302, %s305
    %p314 = scmp.eq.s32.totalorder %s25, 3
    %p315 = por %p313, %p314
    %p316 = scmp.ne.s32.totalorder %s305, %s306
    %p317 = scmp.eq.s32.totalorder %s25, 0
    %p318 = por %p316, %p317
    %p319 = scmp.ne.s32.totalorder %s305, %s306
    %p320 = scmp.eq.s32.totalorder %s26, 3
    %p321 = por %p319, %p320
    %p323 = scmp.ne.s32.totalorder %s306, %s322
    %p324 = scmp.eq.s32.totalorder %s26, 0
    %p325 = por %p323, %p324
    %s326 = ssub.s32 %s28, %s35
    %p327 = scmp.eq.s32.totalorder %s326, 0
    %s329 = sadd.s32 %s328, 1
    %s330 = scalar_select %p327, %s328, %s329
    %p333 = pneg %p327
    %p334 = scmp.eq.s32.totalorder %s20, 3
    %p335 = por %p333, %p334
    %p336 = scmp.ne.s32.totalorder %s328, %s331
    %p337 = scmp.eq.s32.totalorder %s20, 0
    %p338 = por %p336, %p337
    %p339 = scmp.ne.s32.totalorder %s328, %s331
    %p340 = scmp.eq.s32.totalorder %s25, 3
    %p341 = por %p339, %p340
    %p342 = scmp.ne.s32.totalorder %s331, %s332
    %p343 = scmp.eq.s32.totalorder %s25, 0
    %p344 = por %p342, %p343
    %p345 = scmp.ne.s32.totalorder %s331, %s332
    %p346 = scmp.eq.s32.totalorder %s26, 3
    %p347 = por %p345, %p346
    %p349 = scmp.ne.s32.totalorder %s332, %s348
    %p350 = scmp.eq.s32.totalorder %s26, 0
    %p351 = por %p349, %p350
    %s352 = ssub.s32 %s28, %s35
    %p353 = scmp.eq.s32.totalorder %s352, 0
    %s355 = sadd.s32 %s354, 1
    %s356 = scalar_select %p353, %s354, %s355
    %p359 = pneg %p353
    %p360 = scmp.eq.s32.totalorder %s20, 3
    %p361 = por %p359, %p360
    %p362 = scmp.ne.s32.totalorder %s354, %s357
    %p363 = scmp.eq.s32.totalorder %s20, 0
    %p364 = por %p362, %p363
    %p365 = scmp.ne.s32.totalorder %s354, %s357
    %p366 = scmp.eq.s32.totalorder %s25, 3
    %p367 = por %p365, %p366
    %p368 = scmp.ne.s32.totalorder %s357, %s358
    %p369 = scmp.eq.s32.totalorder %s25, 0
    %p370 = por %p368, %p369
    %p371 = scmp.ne.s32.totalorder %s357, %s358
    %p372 = scmp.eq.s32.totalorder %s26, 3
    %p373 = por %p371, %p372
    %p375 = scmp.ne.s32.totalorder %s358, %s374
    %p376 = scmp.eq.s32.totalorder %s26, 0
    %p377 = por %p375, %p376
    %s378 = ssub.s32 %s28, %s35
    %p379 = scmp.eq.s32.totalorder %s378, 0
    %s381 = sadd.s32 %s380, 1
    %s382 = scalar_select %p379, %s380, %s381
    %p385 = pneg %p379
    %p386 = scmp.eq.s32.totalorder %s20, 3
    %p387 = por %p385, %p386
    %p388 = scmp.ne.s32.totalorder %s380, %s383
    %p389 = scmp.eq.s32.totalorder %s20, 0
    %p390 = por %p388, %p389
    %p391 = scmp.ne.s32.totalorder %s380, %s383
    %p392 = scmp.eq.s32.totalorder %s25, 3
    %p393 = por %p391, %p392
    %p394 = scmp.ne.s32.totalorder %s383, %s384
    %p395 = scmp.eq.s32.totalorder %s25, 0
    %p396 = por %p394, %p395
    %p397 = scmp.ne.s32.totalorder %s383, %s384
    %p398 = scmp.eq.s32.totalorder %s26, 3
    %p399 = por %p397, %p398
    %p401 = scmp.ne.s32.totalorder %s384, %s400
    %p402 = scmp.eq.s32.totalorder %s26, 0
    %p403 = por %p401, %p402
    %s404 = ssub.s32 %s27, %s39
    %p405 = scmp.eq.s32.totalorder %s404, 0
    %s407 = sadd.s32 %s406, 1
    %s408 = scalar_select %p405, %s406, %s407
    %p411 = pneg %p405
    %p412 = scmp.eq.s32.totalorder %s20, 3
    %p413 = por %p411, %p412
    %p414 = scmp.ne.s32.totalorder %s406, %s409
    %p415 = scmp.eq.s32.totalorder %s20, 0
    %p416 = por %p414, %p415
    %p417 = scmp.ne.s32.totalorder %s406, %s409
    %p418 = scmp.eq.s32.totalorder %s25, 3
    %p419 = por %p417, %p418
    %p420 = scmp.ne.s32.totalorder %s409, %s410
    %p421 = scmp.eq.s32.totalorder %s25, 0
    %p422 = por %p420, %p421
    %p423 = scmp.ne.s32.totalorder %s409, %s410
    %p424 = scmp.eq.s32.totalorder %s26, 3
    %p425 = por %p423, %p424
    %p427 = scmp.ne.s32.totalorder %s410, %s426
    %p428 = scmp.eq.s32.totalorder %s26, 0
    %p429 = por %p427, %p428
    %p430 = scmp.le.s32.totalorder 1, %s20
    %p431 = scmp.lt.s32.totalorder %s20, 5
    %p432 = pnand %p430, %p431
    %p433 = pneg %p432
    // Predicated region
    $region9: #{visual_dialog_encoder_forward.3} parent=5 // pred_check
      _
    $region10: #{visual_dialog_encoder_forward.3} parent=5 // pred_check_branch
      %435 = sbr.rel (%p432) target = $region12
    $region11: #{visual_dialog_encoder_forward.3} parent=5 // pred_region
      %s436 = ssub.s32 %s20, 1
    $region12: #{visual_dialog_encoder_forward.3} parent=5 // pred_fallthru
      _
    %p437 = scmp.lt.s32.totalorder %s20, 4
    // Predicated region
    $region13: #{visual_dialog_encoder_forward.3} parent=5 // pred_check
      %p438 = pneg %p437
    $region14: #{visual_dialog_encoder_forward.3} parent=5 // pred_check_branch
      %440 = sbr.rel (%p438) target = $region16
    $region15: #{visual_dialog_encoder_forward.3} parent=5 // pred_region
      // Predicated region
      $region17: #{visual_dialog_encoder_forward.3} parent=15 // pred_check
        %p441 = pneg %p52
      $region18: #{visual_dialog_encoder_forward.3} parent=15 // pred_check_branch
        %443 = sbr.rel (%p441) target = $region20
      $region19: #{visual_dialog_encoder_forward.3} parent=15 // pred_region
        %p444 = scmp.lt.s32.totalorder %s27, 1
        %s445 = scalar_select %p444, %s27, 1
        %s446 = smul.addr %s445, 32
        %s447 = smul.addr %s446, 4
        %s448 = scalar_lea.vmem %s0, %s447
      $region20: #{visual_dialog_encoder_forward.3} parent=15 // pred_fallthru
        _
      // Predicated region
      $region21: #{visual_dialog_encoder_forward.3} parent=15 // pred_check
        %p449 = pneg %p78
      $region22: #{visual_dialog_encoder_forward.3} parent=15 // pred_check_branch
        %451 = sbr.rel (%p449) target = $region24
      $region23: #{visual_dialog_encoder_forward.3} parent=15 // pred_region
        %p452 = scmp.lt.s32.totalorder %s27, 1
        %s453 = scalar_select %p452, %s27, 1
        %s454 = scalar_lea.vmem %s1, %s453
      $region24: #{visual_dialog_encoder_forward.3} parent=15 // pred_fallthru
        _
      // Predicated region
      $region25: #{visual_dialog_encoder_forward.3} parent=15 // pred_check
        %p455 = pneg %p104
      $region26: #{visual_dialog_encoder_forward.3} parent=15 // pred_check_branch
        %457 = sbr.rel (%p455) target = $region28
      $region27: #{visual_dialog_encoder_forward.3} parent=15 // pred_region
        %p458 = scmp.lt.s32.totalorder %s28, 1
        %s459 = scalar_select %p458, %s28, 1
        %s460 = smul.addr %s459, 192
        %s461 = smul.addr %s460, 4
        %s462 = scalar_lea.vmem %s2, %s461
      $region28: #{visual_dialog_encoder_forward.3} parent=15 // pred_fallthru
        _
      // Predicated region
      $region29: #{visual_dialog_encoder_forward.3} parent=15 // pred_check
        %p463 = pneg %p130
      $region30: #{visual_dialog_encoder_forward.3} parent=15 // pred_check_branch
        %465 = sbr.rel (%p463) target = $region32
      $region31: #{visual_dialog_encoder_forward.3} parent=15 // pred_region
        %p466 = scmp.lt.s32.totalorder %s28, 1
        %s467 = scalar_select %p466, %s28, 1
        %s468 = smul.addr %s467, 6
        %s469 = scalar_lea.vmem %s3, %s468
      $region32: #{visual_dialog_encoder_forward.3} parent=15 // pred_fallthru
        _
      // Predicated region
      $region33: #{visual_dialog_encoder_forward.3} parent=15 // pred_check
        %p470 = pneg %p156
      $region34: #{visual_dialog_encoder_forward.3} parent=15 // pred_check_branch
        %472 = sbr.rel (%p470) target = $region36
      $region35: #{visual_dialog_encoder_forward.3} parent=15 // pred_region
        %p473 = scmp.lt.s32.totalorder %s28, 1
        %s474 = scalar_select %p473, %s28, 1
        %s475 = smul.addr %s474, 64
        %s476 = smul.addr %s475, 4
        %s477 = scalar_lea.vmem %s4, %s476
      $region36: #{visual_dialog_encoder_forward.3} parent=15 // pred_fallthru
        _
      // Predicated region
      $region37: #{visual_dialog_encoder_forward.3} parent=15 // pred_check
        %p478 = pneg %p182
      $region38: #{visual_dialog_encoder_forward.3} parent=15 // pred_check_branch
        %480 = sbr.rel (%p478) target = $region40
      $region39: #{visual_dialog_encoder_forward.3} parent=15 // pred_region
        %p481 = scmp.lt.s32.totalorder %s28, 1
        %s482 = scalar_select %p481, %s28, 1
        %s483 = smul.addr %s482, 2
        %s484 = scalar_lea.vmem %s5, %s483
      $region40: #{visual_dialog_encoder_forward.3} parent=15 // pred_fallthru
        _
      // Predicated region
      $region41: #{visual_dialog_encoder_forward.3} parent=15 // pred_check
        %p485 = pneg %p208
      $region42: #{visual_dialog_encoder_forward.3} parent=15 // pred_check_branch
        %487 = sbr.rel (%p485) target = $region44
      $region43: #{visual_dialog_encoder_forward.3} parent=15 // pred_region
        %p488 = scmp.lt.s32.totalorder %s28, 1
        %s489 = scalar_select %p488, %s28, 1
        %s490 = smul.addr %s489, 2
        %s491 = scalar_lea.vmem %s6, %s490
      $region44: #{visual_dialog_encoder_forward.3} parent=15 // pred_fallthru
        _
      // Predicated region
      $region45: #{visual_dialog_encoder_forward.3} parent=15 // pred_check
        %p492 = pneg %p234
      $region46: #{visual_dialog_encoder_forward.3} parent=15 // pred_check_branch
        %494 = sbr.rel (%p492) target = $region48
      $region47: #{visual_dialog_encoder_forward.3} parent=15 // pred_region
        %p495 = scmp.lt.s32.totalorder %s28, 1
        %s496 = scalar_select %p495, %s28, 1
        %s497 = smul.addr %s496, 2
        %s498 = scalar_lea.vmem %s7, %s497
      $region48: #{visual_dialog_encoder_forward.3} parent=15 // pred_fallthru
        _
      // Predicated region
      $region49: #{visual_dialog_encoder_forward.3} parent=15 // pred_check
        %p499 = pneg %p260
      $region50: #{visual_dialog_encoder_forward.3} parent=15 // pred_check_branch
        %501 = sbr.rel (%p499) target = $region52
      $region51: #{visual_dialog_encoder_forward.3} parent=15 // pred_region
        %p502 = scmp.lt.s32.totalorder %s28, 1
        %s503 = scalar_select %p502, %s28, 1
        %s504 = smul.addr %s503, 128
        %s505 = smul.addr %s504, 4
        %s506 = scalar_lea.vmem %s8, %s505
      $region52: #{visual_dialog_encoder_forward.3} parent=15 // pred_fallthru
        _
      // Predicated region
      $region53: #{visual_dialog_encoder_forward.3} parent=15 // pred_check
        %p507 = pneg %p286
      $region54: #{visual_dialog_encoder_forward.3} parent=15 // pred_check_branch
        %509 = sbr.rel (%p507) target = $region56
      $region55: #{visual_dialog_encoder_forward.3} parent=15 // pred_region
        %p510 = scmp.lt.s32.totalorder %s28, 1
        %s511 = scalar_select %p510, %s28, 1
        %s512 = smul.addr %s511, 4
        %s513 = scalar_lea.vmem %s9, %s512
      $region56: #{visual_dialog_encoder_forward.3} parent=15 // pred_fallthru
        _
      // Predicated region
      $region57: #{visual_dialog_encoder_forward.3} parent=15 // pred_check
        %p514 = pneg %p312
      $region58: #{visual_dialog_encoder_forward.3} parent=15 // pred_check_branch
        %516 = sbr.rel (%p514) target = $region60
      $region59: #{visual_dialog_encoder_forward.3} parent=15 // pred_region
        %p517 = scmp.lt.s32.totalorder %s28, 1
        %s518 = scalar_select %p517, %s28, 1
        %s519 = smul.addr %s518, 128
        %s520 = smul.addr %s519, 4
        %s521 = scalar_lea.vmem %s10, %s520
      $region60: #{visual_dialog_encoder_forward.3} parent=15 // pred_fallthru
        _
      // Predicated region
      $region61: #{visual_dialog_encoder_forward.3} parent=15 // pred_check
        %p522 = pneg %p338
      $region62: #{visual_dialog_encoder_forward.3} parent=15 // pred_check_branch
        %524 = sbr.rel (%p522) target = $region64
      $region63: #{visual_dialog_encoder_forward.3} parent=15 // pred_region
        %p525 = scmp.lt.s32.totalorder %s28, 1
        %s526 = scalar_select %p525, %s28, 1
        %s527 = smul.addr %s526, 2
        %s528 = scalar_lea.vmem %s11, %s527
      $region64: #{visual_dialog_encoder_forward.3} parent=15 // pred_fallthru
        _
      // Predicated region
      $region65: #{visual_dialog_encoder_forward.3} parent=15 // pred_check
        %p529 = pneg %p364
      $region66: #{visual_dialog_encoder_forward.3} parent=15 // pred_check_branch
        %531 = sbr.rel (%p529) target = $region68
      $region67: #{visual_dialog_encoder_forward.3} parent=15 // pred_region
        %p532 = scmp.lt.s32.totalorder %s28, 1
        %s533 = scalar_select %p532, %s28, 1
        %s534 = smul.addr %s533, 2
        %s535 = scalar_lea.vmem %s12, %s534
      $region68: #{visual_dialog_encoder_forward.3} parent=15 // pred_fallthru
        _
      // Predicated region
      $region69: #{visual_dialog_encoder_forward.3} parent=15 // pred_check
        %p536 = pneg %p390
      $region70: #{visual_dialog_encoder_forward.3} parent=15 // pred_check_branch
        %538 = sbr.rel (%p536) target = $region72
      $region71: #{visual_dialog_encoder_forward.3} parent=15 // pred_region
        %p539 = scmp.lt.s32.totalorder %s28, 1
        %s540 = scalar_select %p539, %s28, 1
        %s541 = smul.addr %s540, 2
        %s542 = scalar_lea.vmem %s13, %s541
      $region72: #{visual_dialog_encoder_forward.3} parent=15 // pred_fallthru
        _
    $region16: #{visual_dialog_encoder_forward.3} parent=5 // pred_fallthru
      _
    %p543 = scmp.le.s32.totalorder 1, %s20
    %p544 = scmp.lt.s32.totalorder %s20, 5
    %p545 = pnand %p543, %p544
    %p546 = pneg %p545
    // Predicated region
    $region73: #{visual_dialog_encoder_forward.3} parent=5 // pred_check
      _
    $region74: #{visual_dialog_encoder_forward.3} parent=5 // pred_check_branch
      %548 = sbr.rel (%p545) target = $region76
    $region75: #{visual_dialog_encoder_forward.3} parent=5 // pred_region
      %s549 = ssub.s32 %s20, 1
      %p550 = scmp.lt.s32.totalorder %s29, 1
      %s551 = scalar_select %p550, %s29, 1
      %s552 = smul.addr %s551, 32
      %s553 = smul.addr %s552, 4
      %s554 = scalar_lea.vmem %s0, %s553
      %p555 = pneg %p58
      %p556 = pneg %p55
      %p557 = scmp.lt.s32.totalorder %s29, 1
      %s558 = scalar_select %p557, %s29, 1
      %s559 = scalar_lea.vmem %s1, %s558
      %p560 = pneg %p84
      %p561 = pneg %p81
      %p562 = scmp.lt.s32.totalorder %s30, 1
      %s563 = scalar_select %p562, %s30, 1
      %s564 = smul.addr %s563, 192
      %s565 = smul.addr %s564, 4
      %s566 = scalar_lea.vmem %s2, %s565
      %p567 = pneg %p110
      %p568 = pneg %p107
      %p569 = scmp.lt.s32.totalorder %s30, 1
      %s570 = scalar_select %p569, %s30, 1
      %s571 = smul.addr %s570, 6
      %s572 = scalar_lea.vmem %s3, %s571
      %p573 = pneg %p136
      %p574 = pneg %p133
      %p575 = scmp.lt.s32.totalorder %s30, 1
      %s576 = scalar_select %p575, %s30, 1
      %s577 = smul.addr %s576, 64
      %s578 = smul.addr %s577, 4
      %s579 = scalar_lea.vmem %s4, %s578
      %p580 = pneg %p162
      %p581 = pneg %p159
      %p582 = scmp.lt.s32.totalorder %s30, 1
      %s583 = scalar_select %p582, %s30, 1
      %s584 = smul.addr %s583, 2
      %s585 = scalar_lea.vmem %s5, %s584
      %p586 = pneg %p188
      %p587 = pneg %p185
      %p588 = scmp.lt.s32.totalorder %s30, 1
      %s589 = scalar_select %p588, %s30, 1
      %s590 = smul.addr %s589, 2
      %s591 = scalar_lea.vmem %s6, %s590
      %p592 = pneg %p214
      %p593 = pneg %p211
      %p594 = scmp.lt.s32.totalorder %s30, 1
      %s595 = scalar_select %p594, %s30, 1
      %s596 = smul.addr %s595, 2
      %s597 = scalar_lea.vmem %s7, %s596
      %p598 = pneg %p240
      %p599 = pneg %p237
      %p600 = scmp.lt.s32.totalorder %s30, 1
      %s601 = scalar_select %p600, %s30, 1
      %s602 = smul.addr %s601, 128
      %s603 = smul.addr %s602, 4
      %s604 = scalar_lea.vmem %s8, %s603
      %p605 = pneg %p266
      %p606 = pneg %p263
      %p607 = scmp.lt.s32.totalorder %s30, 1
      %s608 = scalar_select %p607, %s30, 1
      %s609 = smul.addr %s608, 4
      %s610 = scalar_lea.vmem %s9, %s609
      %p611 = pneg %p292
      %p612 = pneg %p289
      %p613 = scmp.lt.s32.totalorder %s30, 1
      %s614 = scalar_select %p613, %s30, 1
      %s615 = smul.addr %s614, 128
      %s616 = smul.addr %s615, 4
      %s617 = scalar_lea.vmem %s10, %s616
      %p618 = pneg %p318
      %p619 = pneg %p315
      %p620 = scmp.lt.s32.totalorder %s30, 1
      %s621 = scalar_select %p620, %s30, 1
      %s622 = smul.addr %s621, 2
      %s623 = scalar_lea.vmem %s11, %s622
      %p624 = pneg %p344
      %p625 = pneg %p341
      %p626 = scmp.lt.s32.totalorder %s30, 1
      %s627 = scalar_select %p626, %s30, 1
      %s628 = smul.addr %s627, 2
      %s629 = scalar_lea.vmem %s12, %s628
      %p630 = pneg %p370
      %p631 = pneg %p367
      %p632 = scmp.lt.s32.totalorder %s30, 1
      %s633 = scalar_select %p632, %s30, 1
      %s634 = smul.addr %s633, 2
      %s635 = scalar_lea.vmem %s13, %s634
      %p636 = pneg %p396
      %p637 = pneg %p393
      %p638 = pneg %p422
      %p639 = pneg %p419
      %p640 = scmp.lt.s32.totalorder %s29, 1
      %s641 = scalar_select %p640, %s29, 1
      %s642 = smul.addr %s641, 32
      %s643 = smul.addr %s642, 8
      %s644 = scalar_lea.vmem %s14, %s643
      %p645 = scmp.lt.s32.totalorder %s29, 1
      %s646 = scalar_select %p645, %s29, 1
      %s647 = smul.addr %s646, 32
      %s648 = smul.addr %s647, 4
      %s649 = scalar_lea.vmem %s0, %s648
      %p650 = scmp.lt.s32.totalorder %s29, 1
      %s651 = scalar_select %p650, %s29, 1
      %s652 = scalar_lea.vmem %s1, %s651
      %p653 = scmp.lt.s32.totalorder %s30, 1
      %s654 = scalar_select %p653, %s30, 1
      %s655 = smul.addr %s654, 192
      %s656 = smul.addr %s655, 4
      %s657 = scalar_lea.vmem %s2, %s656
      %p658 = scmp.lt.s32.totalorder %s30, 1
      %s659 = scalar_select %p658, %s30, 1
      %s660 = smul.addr %s659, 6
      %s661 = scalar_lea.vmem %s3, %s660
      %p662 = scmp.lt.s32.totalorder %s30, 1
      %s663 = scalar_select %p662, %s30, 1
      %s664 = smul.addr %s663, 64
      %s665 = smul.addr %s664, 4
      %s666 = scalar_lea.vmem %s4, %s665
      %p667 = scmp.lt.s32.totalorder %s30, 1
      %s668 = scalar_select %p667, %s30, 1
      %s669 = smul.addr %s668, 2
      %s670 = scalar_lea.vmem %s5, %s669
      %p671 = scmp.lt.s32.totalorder %s30, 1
      %s672 = scalar_select %p671, %s30, 1
      %s673 = smul.addr %s672, 2
      %s674 = scalar_lea.vmem %s6, %s673
      %p675 = scmp.lt.s32.totalorder %s30, 1
      %s676 = scalar_select %p675, %s30, 1
      %s677 = smul.addr %s676, 2
      %s678 = scalar_lea.vmem %s7, %s677
      %p679 = scmp.lt.s32.totalorder %s30, 1
      %s680 = scalar_select %p679, %s30, 1
      %s681 = smul.addr %s680, 128
      %s682 = smul.addr %s681, 4
      %s683 = scalar_lea.vmem %s8, %s682
      %p684 = scmp.lt.s32.totalorder %s30, 1
      %s685 = scalar_select %p684, %s30, 1
      %s686 = smul.addr %s685, 4
      %s687 = scalar_lea.vmem %s9, %s686
      %p688 = scmp.lt.s32.totalorder %s30, 1
      %s689 = scalar_select %p688, %s30, 1
      %s690 = smul.addr %s689, 128
      %s691 = smul.addr %s690, 4
      %s692 = scalar_lea.vmem %s10, %s691
      %p693 = scmp.lt.s32.totalorder %s30, 1
      %s694 = scalar_select %p693, %s30, 1
      %s695 = smul.addr %s694, 2
      %s696 = scalar_lea.vmem %s11, %s695
      %p697 = scmp.lt.s32.totalorder %s30, 1
      %s698 = scalar_select %p697, %s30, 1
      %s699 = smul.addr %s698, 2
      %s700 = scalar_lea.vmem %s12, %s699
      %p701 = scmp.lt.s32.totalorder %s30, 1
      %s702 = scalar_select %p701, %s30, 1
      %s703 = smul.addr %s702, 2
      %s704 = scalar_lea.vmem %s13, %s703
      %p705 = scmp.lt.s32.totalorder %s29, 1
      %s706 = scalar_select %p705, %s29, 1
      %s707 = smul.addr %s706, 32
      %s708 = smul.addr %s707, 8
      %s709 = scalar_lea.vmem %s14, %s708
      %p711 = scmp.eq.s32.totalorder %s30, 0
      // Predicated region
      $region77: #{visual_dialog_encoder_forward.3} parent=75 // pred_check
        %p712 = pneg %p711
      $region78: #{visual_dialog_encoder_forward.3} parent=75 // pred_check_branch
        %714 = sbr.rel (%p712) target = $region80
      $region79: #{visual_dialog_encoder_forward.3} parent=75 // pred_region
        %v715 = vld [vmem:[%s649] sm:$0xff]
        %v716 = vld [vmem:[%s649 + $0x8] sm:$0xff]
        %v717 = vld [vmem:[%s649 + $0x10] sm:$0xff]
        %v718 = vld [vmem:[%s649 + $0x18] sm:$0xff]
        %v719 = vld [vmem:[%s649 + $0x20] sm:$0xff]
        %v720 = vld [vmem:[%s649 + $0x28] sm:$0xff]
        %v721 = vld [vmem:[%s649 + $0x30] sm:$0xff]
        %v722 = vld [vmem:[%s649 + $0x38] sm:$0xff]
        %v723 = vld [vmem:[%s649 + $0x40] sm:$0xff]
        %v724 = vld [vmem:[%s649 + $0x48] sm:$0xff]
        %v725 = vld [vmem:[%s649 + $0x50] sm:$0xff]
        %v726 = vld [vmem:[%s649 + $0x58] sm:$0xff]
        %v727 = vld [vmem:[%s649 + $0x60] sm:$0xff]
        %v728 = vld [vmem:[%s649 + $0x68] sm:$0xff]
        %v729 = vld [vmem:[%s649 + $0x70] sm:$0xff]
        %v730 = vld [vmem:[%s649 + $0x78] sm:$0xff]
        %v731 = vunpack.c.l.bf16 %v715
        %v732 = vunpack.c.h.bf16 %v715
        %v733 = vunpack.c.l.bf16 %v716
        %v734 = vunpack.c.h.bf16 %v716
        %v735 = vunpack.c.l.bf16 %v717
        %v736 = vunpack.c.h.bf16 %v717
        %v737 = vunpack.c.l.bf16 %v718
        %v738 = vunpack.c.h.bf16 %v718
        %v739 = vunpack.c.l.bf16 %v719
        %v740 = vunpack.c.h.bf16 %v719
        %v741 = vunpack.c.l.bf16 %v720
        %v742 = vunpack.c.h.bf16 %v720
        %v743 = vunpack.c.l.bf16 %v721
        %v744 = vunpack.c.h.bf16 %v721
        %v745 = vunpack.c.l.bf16 %v722
        %v746 = vunpack.c.h.bf16 %v722
        %v747 = vunpack.c.l.bf16 %v723
        %v748 = vunpack.c.h.bf16 %v723
        %v749 = vunpack.c.l.bf16 %v724
        %v750 = vunpack.c.h.bf16 %v724
        %v751 = vunpack.c.l.bf16 %v725
        %v752 = vunpack.c.h.bf16 %v725
        %v753 = vunpack.c.l.bf16 %v726
        %v754 = vunpack.c.h.bf16 %v726
        %v755 = vunpack.c.l.bf16 %v727
        %v756 = vunpack.c.h.bf16 %v727
        %v757 = vunpack.c.l.bf16 %v728
        %v758 = vunpack.c.h.bf16 %v728
        %v759 = vunpack.c.l.bf16 %v729
        %v760 = vunpack.c.h.bf16 %v729
        %v761 = vunpack.c.l.bf16 %v730
        %v762 = vunpack.c.h.bf16 %v730
        %763 = vst [vmem:[#allocation2] sm:$0xff] %v731
        %764 = vst [vmem:[#allocation2 + $0x8] sm:$0xff] %v732
        %765 = vst [vmem:[#allocation2 + $0x10] sm:$0xff] %v733
        %766 = vst [vmem:[#allocation2 + $0x18] sm:$0xff] %v734
        %767 = vst [vmem:[#allocation2 + $0x20] sm:$0xff] %v735
        %768 = vst [vmem:[#allocation2 + $0x28] sm:$0xff] %v736
        %769 = vst [vmem:[#allocation2 + $0x30] sm:$0xff] %v737
        %770 = vst [vmem:[#allocation2 + $0x38] sm:$0xff] %v738
        %771 = vst [vmem:[#allocation2 + $0x40] sm:$0xff] %v739
        %772 = vst [vmem:[#allocation2 + $0x48] sm:$0xff] %v740
        %773 = vst [vmem:[#allocation2 + $0x50] sm:$0xff] %v741
        %774 = vst [vmem:[#allocation2 + $0x58] sm:$0xff] %v742
        %775 = vst [vmem:[#allocation2 + $0x60] sm:$0xff] %v743
        %776 = vst [vmem:[#allocation2 + $0x68] sm:$0xff] %v744
        %777 = vst [vmem:[#allocation2 + $0x70] sm:$0xff] %v745
        %778 = vst [vmem:[#allocation2 + $0x78] sm:$0xff] %v746
        %779 = vst [vmem:[#allocation2 + $0x80] sm:$0xff] %v747
        %780 = vst [vmem:[#allocation2 + $0x88] sm:$0xff] %v748
        %781 = vst [vmem:[#allocation2 + $0x90] sm:$0xff] %v749
        %782 = vst [vmem:[#allocation2 + $0x98] sm:$0xff] %v750
        %783 = vst [vmem:[#allocation2 + $0xa0] sm:$0xff] %v751
        %784 = vst [vmem:[#allocation2 + $0xa8] sm:$0xff] %v752
        %785 = vst [vmem:[#allocation2 + $0xb0] sm:$0xff] %v753
        %786 = vst [vmem:[#allocation2 + $0xb8] sm:$0xff] %v754
        %787 = vst [vmem:[#allocation2 + $0xc0] sm:$0xff] %v755
        %788 = vst [vmem:[#allocation2 + $0xc8] sm:$0xff] %v756
        %789 = vst [vmem:[#allocation2 + $0xd0] sm:$0xff] %v757
        %790 = vst [vmem:[#allocation2 + $0xd8] sm:$0xff] %v758
        %791 = vst [vmem:[#allocation2 + $0xe0] sm:$0xff] %v759
        %792 = vst [vmem:[#allocation2 + $0xe8] sm:$0xff] %v760
        %793 = vst [vmem:[#allocation2 + $0xf0] sm:$0xff] %v761
        %794 = vst [vmem:[#allocation2 + $0xf8] sm:$0xff] %v762
      $region80: #{visual_dialog_encoder_forward.3} parent=75 // pred_fallthru
        _
      %v795 = vld [vmem:[#allocation2] sm:$0xff]
      %v796 = vld [vmem:[#allocation2 + $0x8] sm:$0xff]
      %v797 = vld [vmem:[#allocation2 + $0x10] sm:$0xff]
      %v798 = vld [vmem:[#allocation2 + $0x18] sm:$0xff]
      %v799 = vld [vmem:[#allocation2 + $0x20] sm:$0xff]
      %v800 = vld [vmem:[#allocation2 + $0x28] sm:$0xff]
      %v801 = vld [vmem:[#allocation2 + $0x30] sm:$0xff]
      %v802 = vld [vmem:[#allocation2 + $0x38] sm:$0xff]
      %v803 = vld [vmem:[#allocation2 + $0x40] sm:$0xff]
      %v804 = vld [vmem:[#allocation2 + $0x48] sm:$0xff]
      %v805 = vld [vmem:[#allocation2 + $0x50] sm:$0xff]
      %v806 = vld [vmem:[#allocation2 + $0x58] sm:$0xff]
      %v807 = vld [vmem:[#allocation2 + $0x60] sm:$0xff]
      %v808 = vld [vmem:[#allocation2 + $0x68] sm:$0xff]
      %v809 = vld [vmem:[#allocation2 + $0x70] sm:$0xff]
      %v810 = vld [vmem:[#allocation2 + $0x78] sm:$0xff]
      %v811 = vld [vmem:[#allocation2 + $0x80] sm:$0xff]
      %v812 = vld [vmem:[#allocation2 + $0x88] sm:$0xff]
      %v813 = vld [vmem:[#allocation2 + $0x90] sm:$0xff]
      %v814 = vld [vmem:[#allocation2 + $0x98] sm:$0xff]
      %v815 = vld [vmem:[#allocation2 + $0xa0] sm:$0xff]
      %v816 = vld [vmem:[#allocation2 + $0xa8] sm:$0xff]
      %v817 = vld [vmem:[#allocation2 + $0xb0] sm:$0xff]
      %v818 = vld [vmem:[#allocation2 + $0xb8] sm:$0xff]
      %v819 = vld [vmem:[#allocation2 + $0xc0] sm:$0xff]
      %v820 = vld [vmem:[#allocation2 + $0xc8] sm:$0xff]
      %v821 = vld [vmem:[#allocation2 + $0xd0] sm:$0xff]
      %v822 = vld [vmem:[#allocation2 + $0xd8] sm:$0xff]
      %v823 = vld [vmem:[#allocation2 + $0xe0] sm:$0xff]
      %v824 = vld [vmem:[#allocation2 + $0xe8] sm:$0xff]
      %v825 = vld [vmem:[#allocation2 + $0xf0] sm:$0xff]
      %v826 = vld [vmem:[#allocation2 + $0xf8] sm:$0xff]
      %v827 = vld [vmem:[%s652] sm:$0x1]
      %v828 = vpack.c.bf16 %v797, %v795
      %v829 = vpack.c.bf16 %v798, %v796
      %v830 = vpack.c.bf16 %v801, %v799
      %v831 = vpack.c.bf16 %v802, %v800
      %v832 = vpack.c.bf16 %v805, %v803
      %v833 = vpack.c.bf16 %v806, %v804
      %v834 = vpack.c.bf16 %v809, %v807
      %v835 = vpack.c.bf16 %v810, %v808
      %v836 = vpack.c.bf16 %v813, %v811
      %v837 = vpack.c.bf16 %v814, %v812
      %v838 = vpack.c.bf16 %v817, %v815
      %v839 = vpack.c.bf16 %v818, %v816
      %v840 = vpack.c.bf16 %v821, %v819
      %v841 = vpack.c.bf16 %v822, %v820
      %v842 = vpack.c.bf16 %v825, %v823
      %v843 = vpack.c.bf16 %v826, %v824
      %v844 = vld [vmem:[%s657] sm:$0xff]
      %v845 = vld [vmem:[%s657 + $0x8] sm:$0xff]
      %v846 = vld [vmem:[%s657 + $0x10] sm:$0xff]
      %v847 = vld [vmem:[%s657 + $0x18] sm:$0xff]
      %v848 = vld [vmem:[%s657 + $0x20] sm:$0xff]
      %v849 = vld [vmem:[%s657 + $0x28] sm:$0xff]
      %v850 = vld [vmem:[%s657 + $0x30] sm:$0xff]
      %v851 = vld [vmem:[%s657 + $0x38] sm:$0xff]
      %v852 = vld [vmem:[%s657 + $0x40] sm:$0xff]
      %v853 = vld [vmem:[%s657 + $0x48] sm:$0xff]
      %v854 = vld [vmem:[%s657 + $0x50] sm:$0xff]
      %v855 = vld [vmem:[%s657 + $0x58] sm:$0xff]
      %v856 = vld [vmem:[%s657 + $0x60] sm:$0xff]
      %v857 = vld [vmem:[%s657 + $0x68] sm:$0xff]
      %v858 = vld [vmem:[%s657 + $0x70] sm:$0xff]
      %v859 = vld [vmem:[%s657 + $0x78] sm:$0xff]
      %v860 = vld [vmem:[%s657 + $0x80] sm:$0xff]
      %v861 = vld [vmem:[%s657 + $0x88] sm:$0xff]
      %v862 = vld [vmem:[%s657 + $0x90] sm:$0xff]
      %v863 = vld [vmem:[%s657 + $0x98] sm:$0xff]
      %v864 = vld [vmem:[%s657 + $0xa0] sm:$0xff]
      %v865 = vld [vmem:[%s657 + $0xa8] sm:$0xff]
      %v866 = vld [vmem:[%s657 + $0xb0] sm:$0xff]
      %v867 = vld [vmem:[%s657 + $0xb8] sm:$0xff]
      %v868 = vld [vmem:[%s657 + $0xc0] sm:$0xff]
      %v869 = vld [vmem:[%s657 + $0xc8] sm:$0xff]
      %v870 = vld [vmem:[%s657 + $0xd0] sm:$0xff]
      %v871 = vld [vmem:[%s657 + $0xd8] sm:$0xff]
      %v872 = vld [vmem:[%s657 + $0xe0] sm:$0xff]
      %v873 = vld [vmem:[%s657 + $0xe8] sm:$0xff]
      %v874 = vld [vmem:[%s657 + $0xf0] sm:$0xff]
      %v875 = vld [vmem:[%s657 + $0xf8] sm:$0xff]
      %v876 = vld [vmem:[%s657 + $0x100] sm:$0xff]
      %v877 = vld [vmem:[%s657 + $0x108] sm:$0xff]
      %v878 = vld [vmem:[%s657 + $0x110] sm:$0xff]
      %v879 = vld [vmem:[%s657 + $0x118] sm:$0xff]
      %v880 = vld [vmem:[%s657 + $0x120] sm:$0xff]
      %v881 = vld [vmem:[%s657 + $0x128] sm:$0xff]
      %v882 = vld [vmem:[%s657 + $0x130] sm:$0xff]
      %v883 = vld [vmem:[%s657 + $0x138] sm:$0xff]
      %v884 = vld [vmem:[%s657 + $0x140] sm:$0xff]
      %v885 = vld [vmem:[%s657 + $0x148] sm:$0xff]
      %v886 = vld [vmem:[%s657 + $0x150] sm:$0xff]
      %v887 = vld [vmem:[%s657 + $0x158] sm:$0xff]
      %v888 = vld [vmem:[%s657 + $0x160] sm:$0xff]
      %v889 = vld [vmem:[%s657 + $0x168] sm:$0xff]
      %v890 = vld [vmem:[%s657 + $0x170] sm:$0xff]
      %v891 = vld [vmem:[%s657 + $0x178] sm:$0xff]
      %v892 = vld [vmem:[%s657 + $0x180] sm:$0xff]
      %v893 = vld [vmem:[%s657 + $0x188] sm:$0xff]
      %v894 = vld [vmem:[%s657 + $0x190] sm:$0xff]
      %v895 = vld [vmem:[%s657 + $0x198] sm:$0xff]
      %v896 = vld [vmem:[%s657 + $0x1a0] sm:$0xff]
      %v897 = vld [vmem:[%s657 + $0x1a8] sm:$0xff]
      %v898 = vld [vmem:[%s657 + $0x1b0] sm:$0xff]
      %v899 = vld [vmem:[%s657 + $0x1b8] sm:$0xff]
      %v900 = vld [vmem:[%s657 + $0x1c0] sm:$0xff]
      %v901 = vld [vmem:[%s657 + $0x1c8] sm:$0xff]
      %v902 = vld [vmem:[%s657 + $0x1d0] sm:$0xff]
      %v903 = vld [vmem:[%s657 + $0x1d8] sm:$0xff]
      %v904 = vld [vmem:[%s657 + $0x1e0] sm:$0xff]
      %v905 = vld [vmem:[%s657 + $0x1e8] sm:$0xff]
      %v906 = vld [vmem:[%s657 + $0x1f0] sm:$0xff]
      %v907 = vld [vmem:[%s657 + $0x1f8] sm:$0xff]
      %v908 = vld [vmem:[%s657 + $0x200] sm:$0xff]
      %v909 = vld [vmem:[%s657 + $0x208] sm:$0xff]
      %v910 = vld [vmem:[%s657 + $0x210] sm:$0xff]
      %v911 = vld [vmem:[%s657 + $0x218] sm:$0xff]
      %v912 = vld [vmem:[%s657 + $0x220] sm:$0xff]
      %v913 = vld [vmem:[%s657 + $0x228] sm:$0xff]
      %v914 = vld [vmem:[%s657 + $0x230] sm:$0xff]
      %v915 = vld [vmem:[%s657 + $0x238] sm:$0xff]
      %v916 = vld [vmem:[%s657 + $0x240] sm:$0xff]
      %v917 = vld [vmem:[%s657 + $0x248] sm:$0xff]
      %v918 = vld [vmem:[%s657 + $0x250] sm:$0xff]
      %v919 = vld [vmem:[%s657 + $0x258] sm:$0xff]
      %v920 = vld [vmem:[%s657 + $0x260] sm:$0xff]
      %v921 = vld [vmem:[%s657 + $0x268] sm:$0xff]
      %v922 = vld [vmem:[%s657 + $0x270] sm:$0xff]
      %v923 = vld [vmem:[%s657 + $0x278] sm:$0xff]
      %v924 = vld [vmem:[%s657 + $0x280] sm:$0xff]
      %v925 = vld [vmem:[%s657 + $0x288] sm:$0xff]
      %v926 = vld [vmem:[%s657 + $0x290] sm:$0xff]
      %v927 = vld [vmem:[%s657 + $0x298] sm:$0xff]
      %v928 = vld [vmem:[%s657 + $0x2a0] sm:$0xff]
      %v929 = vld [vmem:[%s657 + $0x2a8] sm:$0xff]
      %v930 = vld [vmem:[%s657 + $0x2b0] sm:$0xff]
      %v931 = vld [vmem:[%s657 + $0x2b8] sm:$0xff]
      %v932 = vld [vmem:[%s657 + $0x2c0] sm:$0xff]
      %v933 = vld [vmem:[%s657 + $0x2c8] sm:$0xff]
      %v934 = vld [vmem:[%s657 + $0x2d0] sm:$0xff]
      %v935 = vld [vmem:[%s657 + $0x2d8] sm:$0xff]
      %v936 = vld [vmem:[%s657 + $0x2e0] sm:$0xff]
      %v937 = vld [vmem:[%s657 + $0x2e8] sm:$0xff]
      %v938 = vld [vmem:[%s657 + $0x2f0] sm:$0xff]
      %v939 = vld [vmem:[%s657 + $0x2f8] sm:$0xff]
      %v940 = vld [vmem:[%s661] sm:$0x3f]
      %v942 = vlaneseq
      %v943 = vshrl.u32 %v942, 7
      %v944 = vsub.s32 0, %v943
      %v945 = vrot.slane %v940, %v944
      %v946 = vlaneseq
      %v947 = vshrl.u32 %v946, 7
      %v948 = vsub.s32 1, %v947
      %v949 = vrot.slane %v940, %v948
      %v950 = vlaneseq
      %v951 = vshrl.u32 %v950, 7
      %v952 = vsub.s32 2, %v951
      %v953 = vrot.slane %v940, %v952
      %v954 = vlaneseq
      %v955 = vshrl.u32 %v954, 7
      %v956 = vsub.s32 3, %v955
      %v957 = vrot.slane %v940, %v956
      %v958 = vlaneseq
      %v959 = vshrl.u32 %v958, 7
      %v960 = vsub.s32 4, %v959
      %v961 = vrot.slane %v940, %v960
      %v962 = vlaneseq
      %v963 = vshrl.u32 %v962, 7
      %v964 = vsub.s32 5, %v963
      %v965 = vrot.slane %v940, %v964
      %v1068 = vunpack.c.l.b16 %v844
      %v1069 = vunpack.c.h.b16 %v844
      %v1070 = vunpack.c.l.b16 %v845
      %v1071 = vunpack.c.h.b16 %v845
      %v1072 = vunpack.c.l.b16 %v846
      %v1073 = vunpack.c.h.b16 %v846
      %v1074 = vunpack.c.l.b16 %v847
      %v1075 = vunpack.c.h.b16 %v847
      %v1076 = vunpack.c.l.b16 %v848
      %v1077 = vunpack.c.h.b16 %v848
      %v1078 = vunpack.c.l.b16 %v849
      %v1079 = vunpack.c.h.b16 %v849
      %v1080 = vunpack.c.l.b16 %v850
      %v1081 = vunpack.c.h.b16 %v850
      %v1082 = vunpack.c.l.b16 %v851
      %v1083 = vunpack.c.h.b16 %v851
      %v1084 = vunpack.c.l.b16 %v852
      %v1085 = vunpack.c.h.b16 %v852
      %v1086 = vunpack.c.l.b16 %v853
      %v1087 = vunpack.c.h.b16 %v853
      %v1088 = vunpack.c.l.b16 %v854
      %v1089 = vunpack.c.h.b16 %v854
      %v1090 = vunpack.c.l.b16 %v855
      %v1091 = vunpack.c.h.b16 %v855
      %v1092 = vunpack.c.l.b16 %v856
      %v1093 = vunpack.c.h.b16 %v856
      %v1094 = vunpack.c.l.b16 %v857
      %v1095 = vunpack.c.h.b16 %v857
      %v1096 = vunpack.c.l.b16 %v858
      %v1097 = vunpack.c.h.b16 %v858
      %v1098 = vunpack.c.l.b16 %v859
      %v1099 = vunpack.c.h.b16 %v859
      %v1100 = vunpack.c.l.b16 %v860
      %v1101 = vunpack.c.h.b16 %v860
      %v1102 = vunpack.c.l.b16 %v861
      %v1103 = vunpack.c.h.b16 %v861
      %v1104 = vunpack.c.l.b16 %v862
      %v1105 = vunpack.c.h.b16 %v862
      %v1106 = vunpack.c.l.b16 %v863
      %v1107 = vunpack.c.h.b16 %v863
      %v1108 = vunpack.c.l.b16 %v864
      %v1109 = vunpack.c.h.b16 %v864
      %v1110 = vunpack.c.l.b16 %v865
      %v1111 = vunpack.c.h.b16 %v865
      %v1112 = vunpack.c.l.b16 %v866
      %v1113 = vunpack.c.h.b16 %v866
      %v1114 = vunpack.c.l.b16 %v867
      %v1115 = vunpack.c.h.b16 %v867
      %v1116 = vunpack.c.l.b16 %v868
      %v1117 = vunpack.c.h.b16 %v868
      %v1118 = vunpack.c.l.b16 %v869
      %v1119 = vunpack.c.h.b16 %v869
      %v1120 = vunpack.c.l.b16 %v870
      %v1121 = vunpack.c.h.b16 %v870
      %v1122 = vunpack.c.l.b16 %v871
      %v1123 = vunpack.c.h.b16 %v871
      %v1124 = vunpack.c.l.b16 %v872
      %v1125 = vunpack.c.h.b16 %v872
      %v1126 = vunpack.c.l.b16 %v873
      %v1127 = vunpack.c.h.b16 %v873
      %v1128 = vunpack.c.l.b16 %v874
      %v1129 = vunpack.c.h.b16 %v874
      %v1130 = vunpack.c.l.b16 %v875
      %v1131 = vunpack.c.h.b16 %v875
      %v1132 = vunpack.c.l.b16 %v876
      %v1133 = vunpack.c.h.b16 %v876
      %v1134 = vunpack.c.l.b16 %v877
      %v1135 = vunpack.c.h.b16 %v877
      %v1136 = vunpack.c.l.b16 %v878
      %v1137 = vunpack.c.h.b16 %v878
      %v1138 = vunpack.c.l.b16 %v879
      %v1139 = vunpack.c.h.b16 %v879
      %v1140 = vunpack.c.l.b16 %v880
      %v1141 = vunpack.c.h.b16 %v880
      %v1142 = vunpack.c.l.b16 %v881
      %v1143 = vunpack.c.h.b16 %v881
      %v1144 = vunpack.c.l.b16 %v882
      %v1145 = vunpack.c.h.b16 %v882
      %v1146 = vunpack.c.l.b16 %v883
      %v1147 = vunpack.c.h.b16 %v883
      %v1148 = vunpack.c.l.b16 %v884
      %v1149 = vunpack.c.h.b16 %v884
      %v1150 = vunpack.c.l.b16 %v885
      %v1151 = vunpack.c.h.b16 %v885
      %v1152 = vunpack.c.l.b16 %v886
      %v1153 = vunpack.c.h.b16 %v886
      %v1154 = vunpack.c.l.b16 %v887
      %v1155 = vunpack.c.h.b16 %v887
      %v1156 = vunpack.c.l.b16 %v888
      %v1157 = vunpack.c.h.b16 %v888
      %v1158 = vunpack.c.l.b16 %v889
      %v1159 = vunpack.c.h.b16 %v889
      %v1160 = vunpack.c.l.b16 %v890
      %v1161 = vunpack.c.h.b16 %v890
      %v1162 = vunpack.c.l.b16 %v891
      %v1163 = vunpack.c.h.b16 %v891
      %v1164 = vunpack.c.l.b16 %v892
      %v1165 = vunpack.c.h.b16 %v892
      %v1166 = vunpack.c.l.b16 %v893
      %v1167 = vunpack.c.h.b16 %v893
      %v1168 = vunpack.c.l.b16 %v894
      %v1169 = vunpack.c.h.b16 %v894
      %v1170 = vunpack.c.l.b16 %v895
      %v1171 = vunpack.c.h.b16 %v895
      %v1172 = vunpack.c.l.b16 %v896
      %v1173 = vunpack.c.h.b16 %v896
      %v1174 = vunpack.c.l.b16 %v897
      %v1175 = vunpack.c.h.b16 %v897
      %v1176 = vunpack.c.l.b16 %v898
      %v1177 = vunpack.c.h.b16 %v898
      %v1178 = vunpack.c.l.b16 %v899
      %v1179 = vunpack.c.h.b16 %v899
      %v1180 = vunpack.c.l.b16 %v900
      %v1181 = vunpack.c.h.b16 %v900
      %v1182 = vunpack.c.l.b16 %v901
      %v1183 = vunpack.c.h.b16 %v901
      %v1184 = vunpack.c.l.b16 %v902
      %v1185 = vunpack.c.h.b16 %v902
      %v1186 = vunpack.c.l.b16 %v903
      %v1187 = vunpack.c.h.b16 %v903
      %v1188 = vunpack.c.l.b16 %v904
      %v1189 = vunpack.c.h.b16 %v904
      %v1190 = vunpack.c.l.b16 %v905
      %v1191 = vunpack.c.h.b16 %v905
      %v1192 = vunpack.c.l.b16 %v906
      %v1193 = vunpack.c.h.b16 %v906
      %v1194 = vunpack.c.l.b16 %v907
      %v1195 = vunpack.c.h.b16 %v907
      %v1196 = vunpack.c.l.b16 %v908
      %v1197 = vunpack.c.h.b16 %v908
      %v1198 = vunpack.c.l.b16 %v909
      %v1199 = vunpack.c.h.b16 %v909
      %v1200 = vunpack.c.l.b16 %v910
      %v1201 = vunpack.c.h.b16 %v910
      %v1202 = vunpack.c.l.b16 %v911
      %v1203 = vunpack.c.h.b16 %v911
      %v1204 = vunpack.c.l.b16 %v912
      %v1205 = vunpack.c.h.b16 %v912
      %v1206 = vunpack.c.l.b16 %v913
      %v1207 = vunpack.c.h.b16 %v913
      %v1208 = vunpack.c.l.b16 %v914
      %v1209 = vunpack.c.h.b16 %v914
      %v1210 = vunpack.c.l.b16 %v915
      %v1211 = vunpack.c.h.b16 %v915
      %v1212 = vunpack.c.l.b16 %v916
      %v1213 = vunpack.c.h.b16 %v916
      %v1214 = vunpack.c.l.b16 %v917
      %v1215 = vunpack.c.h.b16 %v917
      %v1216 = vunpack.c.l.b16 %v918
      %v1217 = vunpack.c.h.b16 %v918
      %v1218 = vunpack.c.l.b16 %v919
      %v1219 = vunpack.c.h.b16 %v919
      %v1220 = vunpack.c.l.b16 %v920
      %v1221 = vunpack.c.h.b16 %v920
      %v1222 = vunpack.c.l.b16 %v921
      %v1223 = vunpack.c.h.b16 %v921
      %v1224 = vunpack.c.l.b16 %v922
      %v1225 = vunpack.c.h.b16 %v922
      %v1226 = vunpack.c.l.b16 %v923
      %v1227 = vunpack.c.h.b16 %v923
      %v1228 = vunpack.c.l.b16 %v924
      %v1229 = vunpack.c.h.b16 %v924
      %v1230 = vunpack.c.l.b16 %v925
      %v1231 = vunpack.c.h.b16 %v925
      %v1232 = vunpack.c.l.b16 %v926
      %v1233 = vunpack.c.h.b16 %v926
      %v1234 = vunpack.c.l.b16 %v927
      %v1235 = vunpack.c.h.b16 %v927
      %v1236 = vunpack.c.l.b16 %v928
      %v1237 = vunpack.c.h.b16 %v928
      %v1238 = vunpack.c.l.b16 %v929
      %v1239 = vunpack.c.h.b16 %v929
      %v1240 = vunpack.c.l.b16 %v930
      %v1241 = vunpack.c.h.b16 %v930
      %v1242 = vunpack.c.l.b16 %v931
      %v1243 = vunpack.c.h.b16 %v931
      %v1244 = vunpack.c.l.b16 %v932
      %v1245 = vunpack.c.h.b16 %v932
      %v1246 = vunpack.c.l.b16 %v933
      %v1247 = vunpack.c.h.b16 %v933
      %v1248 = vunpack.c.l.b16 %v934
      %v1249 = vunpack.c.h.b16 %v934
      %v1250 = vunpack.c.l.b16 %v935
      %v1251 = vunpack.c.h.b16 %v935
      %v1252 = vunpack.c.l.b16 %v936
      %v1253 = vunpack.c.h.b16 %v936
      %v1254 = vunpack.c.l.b16 %v937
      %v1255 = vunpack.c.h.b16 %v937
      %v1256 = vunpack.c.l.b16 %v938
      %v1257 = vunpack.c.h.b16 %v938
      %v1258 = vunpack.c.l.b16 %v939
      %v1259 = vunpack.c.h.b16 %v939
      %v1260 = vpack.c.b16 %v1074, %v1068
      %v1261 = vpack.c.b16 %v1075, %v1069
      %v1262 = vpack.c.b16 %v1076, %v1070
      %v1263 = vpack.c.b16 %v1077, %v1071
      %v1264 = vpack.c.b16 %v1078, %v1072
      %v1265 = vpack.c.b16 %v1079, %v1073
      %v1266 = vpack.c.b16 %v1086, %v1080
      %v1267 = vpack.c.b16 %v1087, %v1081
      %v1268 = vpack.c.b16 %v1088, %v1082
      %v1269 = vpack.c.b16 %v1089, %v1083
      %v1270 = vpack.c.b16 %v1090, %v1084
      %v1271 = vpack.c.b16 %v1091, %v1085
      %v1272 = vpack.c.b16 %v1098, %v1092
      %v1273 = vpack.c.b16 %v1099, %v1093
      %v1274 = vpack.c.b16 %v1100, %v1094
      %v1275 = vpack.c.b16 %v1101, %v1095
      %v1276 = vpack.c.b16 %v1102, %v1096
      %v1277 = vpack.c.b16 %v1103, %v1097
      %v1278 = vpack.c.b16 %v1110, %v1104
      %v1279 = vpack.c.b16 %v1111, %v1105
      %v1280 = vpack.c.b16 %v1112, %v1106
      %v1281 = vpack.c.b16 %v1113, %v1107
      %v1282 = vpack.c.b16 %v1114, %v1108
      %v1283 = vpack.c.b16 %v1115, %v1109
      %v1284 = vpack.c.b16 %v1122, %v1116
      %v1285 = vpack.c.b16 %v1123, %v1117
      %v1286 = vpack.c.b16 %v1124, %v1118
      %v1287 = vpack.c.b16 %v1125, %v1119
      %v1288 = vpack.c.b16 %v1126, %v1120
      %v1289 = vpack.c.b16 %v1127, %v1121
      %v1290 = vpack.c.b16 %v1134, %v1128
      %v1291 = vpack.c.b16 %v1135, %v1129
      %v1292 = vpack.c.b16 %v1136, %v1130
      %v1293 = vpack.c.b16 %v1137, %v1131
      %v1294 = vpack.c.b16 %v1138, %v1132
      %v1295 = vpack.c.b16 %v1139, %v1133
      %v1296 = vpack.c.b16 %v1146, %v1140
      %v1297 = vpack.c.b16 %v1147, %v1141
      %v1298 = vpack.c.b16 %v1148, %v1142
      %v1299 = vpack.c.b16 %v1149, %v1143
      %v1300 = vpack.c.b16 %v1150, %v1144
      %v1301 = vpack.c.b16 %v1151, %v1145
      %v1302 = vpack.c.b16 %v1158, %v1152
      %v1303 = vpack.c.b16 %v1159, %v1153
      %v1304 = vpack.c.b16 %v1160, %v1154
      %v1305 = vpack.c.b16 %v1161, %v1155
      %v1306 = vpack.c.b16 %v1162, %v1156
      %v1307 = vpack.c.b16 %v1163, %v1157
      %v1308 = vpack.c.b16 %v1170, %v1164
      %v1309 = vpack.c.b16 %v1171, %v1165
      %v1310 = vpack.c.b16 %v1172, %v1166
      %v1311 = vpack.c.b16 %v1173, %v1167
      %v1312 = vpack.c.b16 %v1174, %v1168
      %v1313 = vpack.c.b16 %v1175, %v1169
      %v1314 = vpack.c.b16 %v1182, %v1176
      %v1315 = vpack.c.b16 %v1183, %v1177
      %v1316 = vpack.c.b16 %v1184, %v1178
      %v1317 = vpack.c.b16 %v1185, %v1179
      %v1318 = vpack.c.b16 %v1186, %v1180
      %v1319 = vpack.c.b16 %v1187, %v1181
      %v1320 = vpack.c.b16 %v1194, %v1188
      %v1321 = vpack.c.b16 %v1195, %v1189
      %v1322 = vpack.c.b16 %v1196, %v1190
      %v1323 = vpack.c.b16 %v1197, %v1191
      %v1324 = vpack.c.b16 %v1198, %v1192
      %v1325 = vpack.c.b16 %v1199, %v1193
      %v1326 = vpack.c.b16 %v1206, %v1200
      %v1327 = vpack.c.b16 %v1207, %v1201
      %v1328 = vpack.c.b16 %v1208, %v1202
      %v1329 = vpack.c.b16 %v1209, %v1203
      %v1330 = vpack.c.b16 %v1210, %v1204
      %v1331 = vpack.c.b16 %v1211, %v1205
      %v1332 = vpack.c.b16 %v1218, %v1212
      %v1333 = vpack.c.b16 %v1219, %v1213
      %v1334 = vpack.c.b16 %v1220, %v1214
      %v1335 = vpack.c.b16 %v1221, %v1215
      %v1336 = vpack.c.b16 %v1222, %v1216
      %v1337 = vpack.c.b16 %v1223, %v1217
      %v1338 = vpack.c.b16 %v1230, %v1224
      %v1339 = vpack.c.b16 %v1231, %v1225
      %v1340 = vpack.c.b16 %v1232, %v1226
      %v1341 = vpack.c.b16 %v1233, %v1227
      %v1342 = vpack.c.b16 %v1234, %v1228
      %v1343 = vpack.c.b16 %v1235, %v1229
      %v1344 = vpack.c.b16 %v1242, %v1236
      %v1345 = vpack.c.b16 %v1243, %v1237
      %v1346 = vpack.c.b16 %v1244, %v1238
      %v1347 = vpack.c.b16 %v1245, %v1239
      %v1348 = vpack.c.b16 %v1246, %v1240
      %v1349 = vpack.c.b16 %v1247, %v1241
      %v1350 = vpack.c.b16 %v1254, %v1248
      %v1351 = vpack.c.b16 %v1255, %v1249
      %v1352 = vpack.c.b16 %v1256, %v1250
      %v1353 = vpack.c.b16 %v1257, %v1251
      %v1354 = vpack.c.b16 %v1258, %v1252
      %v1355 = vpack.c.b16 %v1259, %v1253
      %1452 = vmatprep.subr.bf16.mxu0 %v1261
      %1453 = vmatpush1.bf16.msra.mxu0 %v1260
      %1454 = vmatprep.subr.bf16.mxu0 %v1267
      %1455 = vmatpush1.bf16.msra.mxu0 %v1266
      %1456 = vmatprep.subr.bf16.mxu0 %v1273
      %1457 = vmatpush1.bf16.msra.mxu0 %v1272
      %1458 = vmatprep.subr.bf16.mxu0 %v1279
      %1459 = vmatpush1.bf16.msra.mxu0 %v1278
      %1460 = vmatprep.subr.bf16.mxu0 %v1285
      %1461 = vmatpush1.bf16.msra.mxu0 %v1284
      %1462 = vmatprep.subr.bf16.mxu0 %v1291
      %1463 = vmatpush1.bf16.msra.mxu0 %v1290
      %1464 = vmatprep.subr.bf16.mxu0 %v1297
      %1465 = vmatpush1.bf16.msra.mxu0 %v1296
      %1466 = vmatprep.subr.bf16.mxu0 %v1303
      %1467 = vmatpush1.bf16.msra.mxu0 %v1302
      %1468 = vmatprep.subr.bf16.mxu0 %v1309
      %1469 = vmatpush1.bf16.msra.mxu0 %v1308
      %1470 = vmatprep.subr.bf16.mxu0 %v1315
      %1471 = vmatpush1.bf16.msra.mxu0 %v1314
      %1472 = vmatprep.subr.bf16.mxu0 %v1321
      %1473 = vmatpush1.bf16.msra.mxu0 %v1320
      %1474 = vmatprep.subr.bf16.mxu0 %v1327
      %1475 = vmatpush1.bf16.msra.mxu0 %v1326
      %1476 = vmatprep.subr.bf16.mxu0 %v1333
      %1477 = vmatpush1.bf16.msra.mxu0 %v1332
      %1478 = vmatprep.subr.bf16.mxu0 %v1339
      %1479 = vmatpush1.bf16.msra.mxu0 %v1338
      %1480 = vmatprep.subr.bf16.mxu0 %v1345
      %1481 = vmatpush1.bf16.msra.mxu0 %v1344
      %1482 = vmatprep.subr.bf16.mxu0 %v1351
      %1483 = vmatpush1.bf16.msra.mxu0 %v1350
      %1484 = vmatprep.mubr.bf16.mxu0 %v829
      %1485 = vmatmul.mubr.bf16.gmra.mrb[0].mxu0 %v828
      %v1486 = vpop.f32.mrb[0].mxu0
      %v1487 = vadd.f32 %v945, %v1486
      %v1488 = vpop.f32.mrb[0].mxu0
      %v1489 = vadd.f32 %v949, %v1488
      %v1490 = vpop.f32.mrb[0].mxu0
      %v1491 = vadd.f32 %v945, %v1490
      %v1492 = vpop.f32.mrb[0].mxu0
      %v1493 = vadd.f32 %v949, %v1492
      %1494 = vmatprep.mubr.bf16.mxu0 %v831
      %1495 = vmatmul.mubr.bf16.gmra.mrb[0].mxu0 %v830
      %v1496 = vpop.f32.mrb[0].mxu0
      %v1497 = vadd.f32 %v945, %v1496
      %v1498 = vpop.f32.mrb[0].mxu0
      %v1499 = vadd.f32 %v949, %v1498
      %v1500 = vpop.f32.mrb[0].mxu0
      %v1501 = vadd.f32 %v945, %v1500
      %v1502 = vpop.f32.mrb[0].mxu0
      %v1503 = vadd.f32 %v949, %v1502
      %1504 = vmatprep.mubr.bf16.mxu0 %v833
      %1505 = vmatmul.mubr.bf16.gmra.mrb[0].mxu0 %v832
      %v1506 = vpop.f32.mrb[0].mxu0
      %v1507 = vadd.f32 %v945, %v1506
      %v1508 = vpop.f32.mrb[0].mxu0
      %v1509 = vadd.f32 %v949, %v1508
      %v1510 = vpop.f32.mrb[0].mxu0
      %v1511 = vadd.f32 %v945, %v1510
      %v1512 = vpop.f32.mrb[0].mxu0
      %v1513 = vadd.f32 %v949, %v1512
      %1514 = vmatprep.mubr.bf16.mxu0 %v835
      %1515 = vmatmul.mubr.bf16.gmra.mrb[0].mxu0 %v834
      %v1516 = vpop.f32.mrb[0].mxu0
      %v1517 = vadd.f32 %v945, %v1516
      %v1518 = vpop.f32.mrb[0].mxu0
      %v1519 = vadd.f32 %v949, %v1518
      %v1520 = vpop.f32.mrb[0].mxu0
      %v1521 = vadd.f32 %v945, %v1520
      %v1522 = vpop.f32.mrb[0].mxu0
      %v1523 = vadd.f32 %v949, %v1522
      %1524 = vmatprep.mubr.bf16.mxu0 %v837
      %1525 = vmatmul.mubr.bf16.gmra.mrb[0].mxu0 %v836
      %v1526 = vpop.f32.mrb[0].mxu0
      %v1527 = vadd.f32 %v945, %v1526
      %v1528 = vpop.f32.mrb[0].mxu0
      %v1529 = vadd.f32 %v949, %v1528
      %v1530 = vpop.f32.mrb[0].mxu0
      %v1531 = vadd.f32 %v945, %v1530
      %v1532 = vpop.f32.mrb[0].mxu0
      %v1533 = vadd.f32 %v949, %v1532
      %1534 = vmatprep.mubr.bf16.mxu0 %v839
      %1535 = vmatmul.mubr.bf16.gmra.mrb[0].mxu0 %v838
      %v1536 = vpop.f32.mrb[0].mxu0
      %v1537 = vadd.f32 %v945, %v1536
      %v1538 = vpop.f32.mrb[0].mxu0
      %v1539 = vadd.f32 %v949, %v1538
      %v1540 = vpop.f32.mrb[0].mxu0
      %v1541 = vadd.f32 %v945, %v1540
      %v1542 = vpop.f32.mrb[0].mxu0
      %v1543 = vadd.f32 %v949, %v1542
      %1544 = vmatprep.mubr.bf16.mxu0 %v841
      %1545 = vmatmul.mubr.bf16.gmra.mrb[0].mxu0 %v840
      %v1546 = vpop.f32.mrb[0].mxu0
      %v1547 = vadd.f32 %v945, %v1546
      %v1548 = vpop.f32.mrb[0].mxu0
      %v1549 = vadd.f32 %v949, %v1548
      %v1550 = vpop.f32.mrb[0].mxu0
      %v1551 = vadd.f32 %v945, %v1550
      %v1552 = vpop.f32.mrb[0].mxu0
      %v1553 = vadd.f32 %v949, %v1552
      %1554 = vmatprep.mubr.bf16.mxu0 %v843
      %1555 = vmatmul.mubr.bf16.gmra.mrb[0].mxu0 %v842
      %v1556 = vpop.f32.mrb[0].mxu0
      %v1557 = vadd.f32 %v945, %v1556
      %v1558 = vpop.f32.mrb[0].mxu0
      %v1559 = vadd.f32 %v949, %v1558
      %v1560 = vpop.f32.mrb[0].mxu0
      %v1561 = vadd.f32 %v945, %v1560
      %v1562 = vpop.f32.mrb[0].mxu0
      %v1563 = vadd.f32 %v949, %v1562
      %1564 = vdwg.mxu0
      %1565 = vmatprep.subr.bf16.mxu0 %v1263
      %1566 = vmatpush1.bf16.msra.mxu0 %v1262
      %1567 = vmatprep.subr.bf16.mxu0 %v1269
      %1568 = vmatpush1.bf16.msra.mxu0 %v1268
      %1569 = vmatprep.subr.bf16.mxu0 %v1275
      %1570 = vmatpush1.bf16.msra.mxu0 %v1274
      %1571 = vmatprep.subr.bf16.mxu0 %v1281
      %1572 = vmatpush1.bf16.msra.mxu0 %v1280
      %1573 = vmatprep.subr.bf16.mxu0 %v1287
      %1574 = vmatpush1.bf16.msra.mxu0 %v1286
      %1575 = vmatprep.subr.bf16.mxu0 %v1293
      %1576 = vmatpush1.bf16.msra.mxu0 %v1292
      %1577 = vmatprep.subr.bf16.mxu0 %v1299
      %1578 = vmatpush1.bf16.msra.mxu0 %v1298
      %1579 = vmatprep.subr.bf16.mxu0 %v1305
      %1580 = vmatpush1.bf16.msra.mxu0 %v1304
      %1581 = vmatprep.subr.bf16.mxu0 %v1311
      %1582 = vmatpush1.bf16.msra.mxu0 %v1310
      %1583 = vmatprep.subr.bf16.mxu0 %v1317
      %1584 = vmatpush1.bf16.msra.mxu0 %v1316
      %1585 = vmatprep.subr.bf16.mxu0 %v1323
      %1586 = vmatpush1.bf16.msra.mxu0 %v1322
      %1587 = vmatprep.subr.bf16.mxu0 %v1329
      %1588 = vmatpush1.bf16.msra.mxu0 %v1328
      %1589 = vmatprep.subr.bf16.mxu0 %v1335
      %1590 = vmatpush1.bf16.msra.mxu0 %v1334
      %1591 = vmatprep.subr.bf16.mxu0 %v1341
      %1592 = vmatpush1.bf16.msra.mxu0 %v1340
      %1593 = vmatprep.subr.bf16.mxu0 %v1347
      %1594 = vmatpush1.bf16.msra.mxu0 %v1346
      %1595 = vmatprep.subr.bf16.mxu0 %v1353
      %1596 = vmatpush1.bf16.msra.mxu0 %v1352
      %1597 = vmatprep.mubr.bf16.mxu0 %v829
      %1598 = vmatmul.mubr.bf16.gmra.mrb[0].mxu0 %v828
      %v1599 = vpop.f32.mrb[0].mxu0
      %v1600 = vadd.f32 %v953, %v1599
      %v1601 = vpop.f32.mrb[0].mxu0
      %v1602 = vadd.f32 %v957, %v1601
      %v1603 = vpop.f32.mrb[0].mxu0
      %v1604 = vadd.f32 %v953, %v1603
      %v1605 = vpop.f32.mrb[0].mxu0
      %v1606 = vadd.f32 %v957, %v1605
      %1607 = vmatprep.mubr.bf16.mxu0 %v831
      %1608 = vmatmul.mubr.bf16.gmra.mrb[0].mxu0 %v830
      %v1609 = vpop.f32.mrb[0].mxu0
      %v1610 = vadd.f32 %v953, %v1609
      %v1611 = vpop.f32.mrb[0].mxu0
      %v1612 = vadd.f32 %v957, %v1611
      %v1613 = vpop.f32.mrb[0].mxu0
      %v1614 = vadd.f32 %v953, %v1613
      %v1615 = vpop.f32.mrb[0].mxu0
      %v1616 = vadd.f32 %v957, %v1615
      %1617 = vmatprep.mubr.bf16.mxu0 %v833
      %1618 = vmatmul.mubr.bf16.gmra.mrb[0].mxu0 %v832
      %v1619 = vpop.f32.mrb[0].mxu0
      %v1620 = vadd.f32 %v953, %v1619
      %v1621 = vpop.f32.mrb[0].mxu0
      %v1622 = vadd.f32 %v957, %v1621
      %v1623 = vpop.f32.mrb[0].mxu0
      %v1624 = vadd.f32 %v953, %v1623
      %v1625 = vpop.f32.mrb[0].mxu0
      %v1626 = vadd.f32 %v957, %v1625
      %1627 = vmatprep.mubr.bf16.mxu0 %v835
      %1628 = vmatmul.mubr.bf16.gmra.mrb[0].mxu0 %v834
      %v1629 = vpop.f32.mrb[0].mxu0
      %v1630 = vadd.f32 %v953, %v1629
      %v1631 = vpop.f32.mrb[0].mxu0
      %v1632 = vadd.f32 %v957, %v1631
      %v1633 = vpop.f32.mrb[0].mxu0
      %v1634 = vadd.f32 %v953, %v1633
      %v1635 = vpop.f32.mrb[0].mxu0
      %v1636 = vadd.f32 %v957, %v1635
      %1637 = vmatprep.mubr.bf16.mxu0 %v837
      %1638 = vmatmul.mubr.bf16.gmra.mrb[0].mxu0 %v836
      %v1639 = vpop.f32.mrb[0].mxu0
      %v1640 = vadd.f32 %v953, %v1639
      %v1641 = vpop.f32.mrb[0].mxu0
      %v1642 = vadd.f32 %v957, %v1641
      %v1643 = vpop.f32.mrb[0].mxu0
      %v1644 = vadd.f32 %v953, %v1643
      %v1645 = vpop.f32.mrb[0].mxu0
      %v1646 = vadd.f32 %v957, %v1645
      %1647 = vmatprep.mubr.bf16.mxu0 %v839
      %1648 = vmatmul.mubr.bf16.gmra.mrb[0].mxu0 %v838
      %v1649 = vpop.f32.mrb[0].mxu0
      %v1650 = vadd.f32 %v953, %v1649
      %v1651 = vpop.f32.mrb[0].mxu0
      %v1652 = vadd.f32 %v957, %v1651
      %v1653 = vpop.f32.mrb[0].mxu0
      %v1654 = vadd.f32 %v953, %v1653
      %v1655 = vpop.f32.mrb[0].mxu0
      %v1656 = vadd.f32 %v957, %v1655
      %1657 = vmatprep.mubr.bf16.mxu0 %v841
      %1658 = vmatmul.mubr.bf16.gmra.mrb[0].mxu0 %v840
      %v1659 = vpop.f32.mrb[0].mxu0
      %v1660 = vadd.f32 %v953, %v1659
      %v1661 = vpop.f32.mrb[0].mxu0
      %v1662 = vadd.f32 %v957, %v1661
      %v1663 = vpop.f32.mrb[0].mxu0
      %v1664 = vadd.f32 %v953, %v1663
      %v1665 = vpop.f32.mrb[0].mxu0
      %v1666 = vadd.f32 %v957, %v1665
      %1667 = vmatprep.mubr.bf16.mxu0 %v843
      %1668 = vmatmul.mubr.bf16.gmra.mrb[0].mxu0 %v842
      %v1669 = vpop.f32.mrb[0].mxu0
      %v1670 = vadd.f32 %v953, %v1669
      %v1671 = vpop.f32.mrb[0].mxu0
      %v1672 = vadd.f32 %v957, %v1671
      %v1673 = vpop.f32.mrb[0].mxu0
      %v1674 = vadd.f32 %v953, %v1673
      %v1675 = vpop.f32.mrb[0].mxu0
      %v1676 = vadd.f32 %v957, %v1675
      %1677 = vdwg.mxu0
      %1678 = vmatprep.subr.bf16.mxu0 %v1265
      %1679 = vmatpush1.bf16.msra.mxu0 %v1264
      %1680 = vmatprep.subr.bf16.mxu0 %v1271
      %1681 = vmatpush1.bf16.msra.mxu0 %v1270
      %1682 = vmatprep.subr.bf16.mxu0 %v1277
      %1683 = vmatpush1.bf16.msra.mxu0 %v1276
      %1684 = vmatprep.subr.bf16.mxu0 %v1283
      %1685 = vmatpush1.bf16.msra.mxu0 %v1282
      %1686 = vmatprep.subr.bf16.mxu0 %v1289
      %1687 = vmatpush1.bf16.msra.mxu0 %v1288
      %1688 = vmatprep.subr.bf16.mxu0 %v1295
      %1689 = vmatpush1.bf16.msra.mxu0 %v1294
      %1690 = vmatprep.subr.bf16.mxu0 %v1301
      %1691 = vmatpush1.bf16.msra.mxu0 %v1300
      %1692 = vmatprep.subr.bf16.mxu0 %v1307
      %1693 = vmatpush1.bf16.msra.mxu0 %v1306
      %1694 = vmatprep.subr.bf16.mxu0 %v1313
      %1695 = vmatpush1.bf16.msra.mxu0 %v1312
      %1696 = vmatprep.subr.bf16.mxu0 %v1319
      %1697 = vmatpush1.bf16.msra.mxu0 %v1318
      %1698 = vmatprep.subr.bf16.mxu0 %v1325
      %1699 = vmatpush1.bf16.msra.mxu0 %v1324
      %1700 = vmatprep.subr.bf16.mxu0 %v1331
      %1701 = vmatpush1.bf16.msra.mxu0 %v1330
      %1702 = vmatprep.subr.bf16.mxu0 %v1337
      %1703 = vmatpush1.bf16.msra.mxu0 %v1336
      %1704 = vmatprep.subr.bf16.mxu0 %v1343
      %1705 = vmatpush1.bf16.msra.mxu0 %v1342
      %1706 = vmatprep.subr.bf16.mxu0 %v1349
      %1707 = vmatpush1.bf16.msra.mxu0 %v1348
      %1708 = vmatprep.subr.bf16.mxu0 %v1355
      %1709 = vmatpush1.bf16.msra.mxu0 %v1354
      %1710 = vmatprep.mubr.bf16.mxu0 %v829
      %1711 = vmatmul.mubr.bf16.gmra.mrb[0].mxu0 %v828
      %v1712 = vpop.f32.mrb[0].mxu0
      %v1713 = vadd.f32 %v961, %v1712
      %v1714 = vpop.f32.mrb[0].mxu0
      %v1715 = vadd.f32 %v965, %v1714
      %v1716 = vpop.f32.mrb[0].mxu0
      %v1717 = vadd.f32 %v961, %v1716
      %v1718 = vpop.f32.mrb[0].mxu0
      %v1719 = vadd.f32 %v965, %v1718
      %1720 = vmatprep.mubr.bf16.mxu0 %v831
      %1721 = vmatmul.mubr.bf16.gmra.mrb[0].mxu0 %v830
      %v1722 = vpop.f32.mrb[0].mxu0
      %v1723 = vadd.f32 %v961, %v1722
      %v1724 = vpop.f32.mrb[0].mxu0
      %v1725 = vadd.f32 %v965, %v1724
      %v1726 = vpop.f32.mrb[0].mxu0
      %v1727 = vadd.f32 %v961, %v1726
      %v1728 = vpop.f32.mrb[0].mxu0
      %v1729 = vadd.f32 %v965, %v1728
      %1730 = vmatprep.mubr.bf16.mxu0 %v833
      %1731 = vmatmul.mubr.bf16.gmra.mrb[0].mxu0 %v832
      %v1732 = vpop.f32.mrb[0].mxu0
      %v1733 = vadd.f32 %v961, %v1732
      %v1734 = vpop.f32.mrb[0].mxu0
      %v1735 = vadd.f32 %v965, %v1734
      %v1736 = vpop.f32.mrb[0].mxu0
      %v1737 = vadd.f32 %v961, %v1736
      %v1738 = vpop.f32.mrb[0].mxu0
      %v1739 = vadd.f32 %v965, %v1738
      %1740 = vmatprep.mubr.bf16.mxu0 %v835
      %1741 = vmatmul.mubr.bf16.gmra.mrb[0].mxu0 %v834
      %v1742 = vpop.f32.mrb[0].mxu0
      %v1743 = vadd.f32 %v961, %v1742
      %v1744 = vpop.f32.mrb[0].mxu0
      %v1745 = vadd.f32 %v965, %v1744
      %v1746 = vpop.f32.mrb[0].mxu0
      %v1747 = vadd.f32 %v961, %v1746
      %v1748 = vpop.f32.mrb[0].mxu0
      %v1749 = vadd.f32 %v965, %v1748
      %1750 = vmatprep.mubr.bf16.mxu0 %v837
      %1751 = vmatmul.mubr.bf16.gmra.mrb[0].mxu0 %v836
      %v1752 = vpop.f32.mrb[0].mxu0
      %v1753 = vadd.f32 %v961, %v1752
      %v1754 = vpop.f32.mrb[0].mxu0
      %v1755 = vadd.f32 %v965, %v1754
      %v1756 = vpop.f32.mrb[0].mxu0
      %v1757 = vadd.f32 %v961, %v1756
      %v1758 = vpop.f32.mrb[0].mxu0
      %v1759 = vadd.f32 %v965, %v1758
      %1760 = vmatprep.mubr.bf16.mxu0 %v839
      %1761 = vmatmul.mubr.bf16.gmra.mrb[0].mxu0 %v838
      %v1762 = vpop.f32.mrb[0].mxu0
      %v1763 = vadd.f32 %v961, %v1762
      %v1764 = vpop.f32.mrb[0].mxu0
      %v1765 = vadd.f32 %v965, %v1764
      %v1766 = vpop.f32.mrb[0].mxu0
      %v1767 = vadd.f32 %v961, %v1766
      %v1768 = vpop.f32.mrb[0].mxu0
      %v1769 = vadd.f32 %v965, %v1768
      %1770 = vmatprep.mubr.bf16.mxu0 %v841
      %1771 = vmatmul.mubr.bf16.gmra.mrb[0].mxu0 %v840
      %v1772 = vpop.f32.mrb[0].mxu0
      %v1773 = vadd.f32 %v961, %v1772
      %v1774 = vpop.f32.mrb[0].mxu0
      %v1775 = vadd.f32 %v965, %v1774
      %v1776 = vpop.f32.mrb[0].mxu0
      %v1777 = vadd.f32 %v961, %v1776
      %v1778 = vpop.f32.mrb[0].mxu0
      %v1779 = vadd.f32 %v965, %v1778
      %1780 = vmatprep.mubr.bf16.mxu0 %v843
      %1781 = vmatmul.mubr.bf16.gmra.mrb[0].mxu0 %v842
      %v1782 = vpop.f32.mrb[0].mxu0
      %v1783 = vadd.f32 %v961, %v1782
      %v1784 = vpop.f32.mrb[0].mxu0
      %v1785 = vadd.f32 %v965, %v1784
      %v1786 = vpop.f32.mrb[0].mxu0
      %v1787 = vadd.f32 %v961, %v1786
      %v1788 = vpop.f32.mrb[0].mxu0
      %v1789 = vadd.f32 %v965, %v1788
      %1790 = vdwg.mxu0
      %v1791 = vpack.c.bf16 %v1491, %v1487
      %v1792 = vpack.c.bf16 %v1493, %v1489
      %v1793 = vpack.c.bf16 %v1604, %v1600
      %v1794 = vpack.c.bf16 %v1606, %v1602
      %v1795 = vpack.c.bf16 %v1717, %v1713
      %v1796 = vpack.c.bf16 %v1719, %v1715
      %v1797 = vpack.c.bf16 %v1501, %v1497
      %v1798 = vpack.c.bf16 %v1503, %v1499
      %v1799 = vpack.c.bf16 %v1614, %v1610
      %v1800 = vpack.c.bf16 %v1616, %v1612
      %v1801 = vpack.c.bf16 %v1727, %v1723
      %v1802 = vpack.c.bf16 %v1729, %v1725
      %v1803 = vpack.c.bf16 %v1511, %v1507
      %v1804 = vpack.c.bf16 %v1513, %v1509
      %v1805 = vpack.c.bf16 %v1624, %v1620
      %v1806 = vpack.c.bf16 %v1626, %v1622
      %v1807 = vpack.c.bf16 %v1737, %v1733
      %v1808 = vpack.c.bf16 %v1739, %v1735
      %v1809 = vpack.c.bf16 %v1521, %v1517
      %v1810 = vpack.c.bf16 %v1523, %v1519
      %v1811 = vpack.c.bf16 %v1634, %v1630
      %v1812 = vpack.c.bf16 %v1636, %v1632
      %v1813 = vpack.c.bf16 %v1747, %v1743
      %v1814 = vpack.c.bf16 %v1749, %v1745
      %v1815 = vpack.c.bf16 %v1531, %v1527
      %v1816 = vpack.c.bf16 %v1533, %v1529
      %v1817 = vpack.c.bf16 %v1644, %v1640
      %v1818 = vpack.c.bf16 %v1646, %v1642
      %v1819 = vpack.c.bf16 %v1757, %v1753
      %v1820 = vpack.c.bf16 %v1759, %v1755
      %v1821 = vpack.c.bf16 %v1541, %v1537
      %v1822 = vpack.c.bf16 %v1543, %v1539
      %v1823 = vpack.c.bf16 %v1654, %v1650
      %v1824 = vpack.c.bf16 %v1656, %v1652
      %v1825 = vpack.c.bf16 %v1767, %v1763
      %v1826 = vpack.c.bf16 %v1769, %v1765
      %v1827 = vpack.c.bf16 %v1551, %v1547
      %v1828 = vpack.c.bf16 %v1553, %v1549
      %v1829 = vpack.c.bf16 %v1664, %v1660
      %v1830 = vpack.c.bf16 %v1666, %v1662
      %v1831 = vpack.c.bf16 %v1777, %v1773
      %v1832 = vpack.c.bf16 %v1779, %v1775
      %v1833 = vpack.c.bf16 %v1561, %v1557
      %v1834 = vpack.c.bf16 %v1563, %v1559
      %v1835 = vpack.c.bf16 %v1674, %v1670
      %v1836 = vpack.c.bf16 %v1676, %v1672
      %v1837 = vpack.c.bf16 %v1787, %v1783
      %v1838 = vpack.c.bf16 %v1789, %v1785
      %v1840 = vlaneseq
      %v1841 = vshrl.u32 %v1840, 7
      %v1842 = vsub.s32 0, %v1841
      %v1843 = vrot.slane %v827, %v1842
      %1845 = vmatprep.subr.bf16.mxu0 0
      %1846 = vmatpush1.bf16.xpose.msra.mxu0 %v1793
      %1847 = vmatprep.subr.bf16.mxu0 0
      %1848 = vmatpush1.bf16.xpose.msra.mxu0 %v1799
      %1849 = vmatprep.subr.bf16.mxu0 0
      %1850 = vmatpush1.bf16.xpose.msra.mxu0 %v1805
      %1851 = vmatprep.subr.bf16.mxu0 0
      %1852 = vmatpush1.bf16.xpose.msra.mxu0 %v1811
      %1853 = vmatprep.subr.bf16.mxu0 0
      %1854 = vmatpush1.bf16.xpose.msra.mxu0 %v1817
      %1855 = vmatprep.subr.bf16.mxu0 0
      %1856 = vmatpush1.bf16.xpose.msra.mxu0 %v1823
      %1857 = vmatprep.subr.bf16.mxu0 0
      %1858 = vmatpush1.bf16.xpose.msra.mxu0 %v1829
      %1859 = vmatprep.subr.bf16.mxu0 0
      %1860 = vmatpush1.bf16.xpose.msra.mxu0 %v1835
      %1861 = vmatprep.subr.bf16.mxu0 0
      %1862 = vmatpush1.bf16.xpose.msra.mxu0 0
      %1863 = vmatprep.subr.bf16.mxu0 0
      %1864 = vmatpush1.bf16.xpose.msra.mxu0 0
      %1865 = vmatprep.subr.bf16.mxu0 0
      %1866 = vmatpush1.bf16.xpose.msra.mxu0 0
      %1867 = vmatprep.subr.bf16.mxu0 0
      %1868 = vmatpush1.bf16.xpose.msra.mxu0 0
      %1869 = vmatprep.subr.bf16.mxu0 0
      %1870 = vmatpush1.bf16.xpose.msra.mxu0 0
      %1871 = vmatprep.subr.bf16.mxu0 0
      %1872 = vmatpush1.bf16.xpose.msra.mxu0 0
      %1873 = vmatprep.subr.bf16.mxu0 0
      %1874 = vmatpush1.bf16.xpose.msra.mxu0 0
      %1875 = vmatprep.subr.bf16.mxu0 0
      %1876 = vmatpush1.bf16.xpose.msra.mxu0 0
      %1877 = vmatprep.mubr.bf16.mxu0 0
      %1878 = vmatmul.mubr.bf16.gmra.mrb[0].mxu0 %v1791
      %v1879 = vpop.f32.mrb[0].mxu0
      %v1880 = vadd.f32 %v1843, %v1879
      %v1881 = vpop.f32.mrb[0].mxu0
      %v1882 = vpop.f32.mrb[0].mxu0
      %v1883 = vadd.f32 %v1843, %v1882
      %v1884 = vpop.f32.mrb[0].mxu0
      %1885 = vmatprep.mubr.bf16.mxu0 0
      %1886 = vmatmul.mubr.bf16.gmra.mrb[0].mxu0 %v1797
      %v1887 = vpop.f32.mrb[0].mxu0
      %v1888 = vadd.f32 %v1843, %v1887
      %v1889 = vpop.f32.mrb[0].mxu0
      %v1890 = vpop.f32.mrb[0].mxu0
      %v1891 = vadd.f32 %v1843, %v1890
      %v1892 = vpop.f32.mrb[0].mxu0
      %1893 = vmatprep.mubr.bf16.mxu0 0
      %1894 = vmatmul.mubr.bf16.gmra.mrb[0].mxu0 %v1803
      %v1895 = vpop.f32.mrb[0].mxu0
      %v1896 = vadd.f32 %v1843, %v1895
      %v1897 = vpop.f32.mrb[0].mxu0
      %v1898 = vpop.f32.mrb[0].mxu0
      %v1899 = vadd.f32 %v1843, %v1898
      %v1900 = vpop.f32.mrb[0].mxu0
      %1901 = vmatprep.mubr.bf16.mxu0 0
      %1902 = vmatmul.mubr.bf16.gmra.mrb[0].mxu0 %v1809
      %v1903 = vpop.f32.mrb[0].mxu0
      %v1904 = vadd.f32 %v1843, %v1903
      %v1905 = vpop.f32.mrb[0].mxu0
      %v1906 = vpop.f32.mrb[0].mxu0
      %v1907 = vadd.f32 %v1843, %v1906
      %v1908 = vpop.f32.mrb[0].mxu0
      %1909 = vmatprep.mubr.bf16.mxu0 0
      %1910 = vmatmul.mubr.bf16.gmra.mrb[0].mxu0 %v1815
      %v1911 = vpop.f32.mrb[0].mxu0
      %v1912 = vadd.f32 %v1843, %v1911
      %v1913 = vpop.f32.mrb[0].mxu0
      %v1914 = vpop.f32.mrb[0].mxu0
      %v1915 = vadd.f32 %v1843, %v1914
      %v1916 = vpop.f32.mrb[0].mxu0
      %1917 = vmatprep.mubr.bf16.mxu0 0
      %1918 = vmatmul.mubr.bf16.gmra.mrb[0].mxu0 %v1821
      %v1919 = vpop.f32.mrb[0].mxu0
      %v1920 = vadd.f32 %v1843, %v1919
      %v1921 = vpop.f32.mrb[0].mxu0
      %v1922 = vpop.f32.mrb[0].mxu0
      %v1923 = vadd.f32 %v1843, %v1922
      %v1924 = vpop.f32.mrb[0].mxu0
      %1925 = vmatprep.mubr.bf16.mxu0 0
      %1926 = vmatmul.mubr.bf16.gmra.mrb[0].mxu0 %v1827
      %v1927 = vpop.f32.mrb[0].mxu0
      %v1928 = vadd.f32 %v1843, %v1927
      %v1929 = vpop.f32.mrb[0].mxu0
      %v1930 = vpop.f32.mrb[0].mxu0
      %v1931 = vadd.f32 %v1843, %v1930
      %v1932 = vpop.f32.mrb[0].mxu0
      %1933 = vmatprep.mubr.bf16.mxu0 0
      %1934 = vmatmul.mubr.bf16.gmra.mrb[0].mxu0 %v1833
      %v1935 = vpop.f32.mrb[0].mxu0
      %v1936 = vadd.f32 %v1843, %v1935
      %v1937 = vpop.f32.mrb[0].mxu0
      %v1938 = vpop.f32.mrb[0].mxu0
      %v1939 = vadd.f32 %v1843, %v1938
      %v1940 = vpop.f32.mrb[0].mxu0
      %1941 = vdwg.mxu0
      %1942 = vmax.xlane.f32.xlu0 %v1880
      %v1943 = vpop.xlane.xlu0 %1942
      %1944 = vmax.xlane.f32.xlu0 %v1883
      %v1945 = vpop.xlane.xlu0 %1944
      %1946 = vmax.xlane.f32.xlu0 %v1888
      %v1947 = vpop.xlane.xlu0 %1946
      %1948 = vmax.xlane.f32.xlu0 %v1891
      %v1949 = vpop.xlane.xlu0 %1948
      %1950 = vmax.xlane.f32.xlu0 %v1896
      %v1951 = vpop.xlane.xlu0 %1950
      %1952 = vmax.xlane.f32.xlu0 %v1899
      %v1953 = vpop.xlane.xlu0 %1952
      %1954 = vmax.xlane.f32.xlu0 %v1904
      %v1955 = vpop.xlane.xlu0 %1954
      %1956 = vmax.xlane.f32.xlu0 %v1907
      %v1957 = vpop.xlane.xlu0 %1956
      %1958 = vmax.xlane.f32.xlu0 %v1912
      %v1959 = vpop.xlane.xlu0 %1958
      %1960 = vmax.xlane.f32.xlu0 %v1915
      %v1961 = vpop.xlane.xlu0 %1960
      %1962 = vmax.xlane.f32.xlu0 %v1920
      %v1963 = vpop.xlane.xlu0 %1962
      %1964 = vmax.xlane.f32.xlu0 %v1923
      %v1965 = vpop.xlane.xlu0 %1964
      %1966 = vmax.xlane.f32.xlu0 %v1928
      %v1967 = vpop.xlane.xlu0 %1966
      %1968 = vmax.xlane.f32.xlu0 %v1931
      %v1969 = vpop.xlane.xlu0 %1968
      %1970 = vmax.xlane.f32.xlu0 %v1936
      %v1971 = vpop.xlane.xlu0 %1970
      %1972 = vmax.xlane.f32.xlu0 %v1939
      %v1973 = vpop.xlane.xlu0 %1972
      %v1974 = vsub.f32 %v1880, %v1943
      %v1975 = vsub.f32 %v1883, %v1945
      %v1976 = vsub.f32 %v1888, %v1947
      %v1977 = vsub.f32 %v1891, %v1949
      %v1978 = vsub.f32 %v1896, %v1951
      %v1979 = vsub.f32 %v1899, %v1953
      %v1980 = vsub.f32 %v1904, %v1955
      %v1981 = vsub.f32 %v1907, %v1957
      %v1982 = vsub.f32 %v1912, %v1959
      %v1983 = vsub.f32 %v1915, %v1961
      %v1984 = vsub.f32 %v1920, %v1963
      %v1985 = vsub.f32 %v1923, %v1965
      %v1986 = vsub.f32 %v1928, %v1967
      %v1987 = vsub.f32 %v1931, %v1969
      %v1988 = vsub.f32 %v1936, %v1971
      %v1989 = vsub.f32 %v1939, %v1973
      %v1990 = vmul.f32 %v1974, 1.442695
      %v1991 = vpow.pop %v1990
      %v1992 = vmul.f32 %v1975, 1.442695
      %v1993 = vpow.pop %v1992
      %v1994 = vmul.f32 %v1976, 1.442695
      %v1995 = vpow.pop %v1994
      %v1996 = vmul.f32 %v1977, 1.442695
      %v1997 = vpow.pop %v1996
      %v1998 = vmul.f32 %v1978, 1.442695
      %v1999 = vpow.pop %v1998
      %v2000 = vmul.f32 %v1979, 1.442695
      %v2001 = vpow.pop %v2000
      %v2002 = vmul.f32 %v1980, 1.442695
      %v2003 = vpow.pop %v2002
      %v2004 = vmul.f32 %v1981, 1.442695
      %v2005 = vpow.pop %v2004
      %v2006 = vmul.f32 %v1982, 1.442695
      %v2007 = vpow.pop %v2006
      %v2008 = vmul.f32 %v1983, 1.442695
      %v2009 = vpow.pop %v2008
      %v2010 = vmul.f32 %v1984, 1.442695
      %v2011 = vpow.pop %v2010
      %v2012 = vmul.f32 %v1985, 1.442695
      %v2013 = vpow.pop %v2012
      %v2014 = vmul.f32 %v1986, 1.442695
      %v2015 = vpow.pop %v2014
      %v2016 = vmul.f32 %v1987, 1.442695
      %v2017 = vpow.pop %v2016
      %v2018 = vmul.f32 %v1988, 1.442695
      %v2019 = vpow.pop %v2018
      %v2020 = vmul.f32 %v1989, 1.442695
      %v2021 = vpow.pop %v2020
      %2022 = vadd.xlane.f32.xlu0 %v1991
      %v2023 = vpop.xlane.xlu0 %2022
      %2024 = vadd.xlane.f32.xlu0 %v1993
      %v2025 = vpop.xlane.xlu0 %2024
      %2026 = vadd.xlane.f32.xlu0 %v1995
      %v2027 = vpop.xlane.xlu0 %2026
      %2028 = vadd.xlane.f32.xlu0 %v1997
      %v2029 = vpop.xlane.xlu0 %2028
      %2030 = vadd.xlane.f32.xlu0 %v1999
      %v2031 = vpop.xlane.xlu0 %2030
      %2032 = vadd.xlane.f32.xlu0 %v2001
      %v2033 = vpop.xlane.xlu0 %2032
      %2034 = vadd.xlane.f32.xlu0 %v2003
      %v2035 = vpop.xlane.xlu0 %2034
      %2036 = vadd.xlane.f32.xlu0 %v2005
      %v2037 = vpop.xlane.xlu0 %2036
      %2038 = vadd.xlane.f32.xlu0 %v2007
      %v2039 = vpop.xlane.xlu0 %2038
      %2040 = vadd.xlane.f32.xlu0 %v2009
      %v2041 = vpop.xlane.xlu0 %2040
      %2042 = vadd.xlane.f32.xlu0 %v2011
      %v2043 = vpop.xlane.xlu0 %2042
      %2044 = vadd.xlane.f32.xlu0 %v2013
      %v2045 = vpop.xlane.xlu0 %2044
      %2046 = vadd.xlane.f32.xlu0 %v2015
      %v2047 = vpop.xlane.xlu0 %2046
      %2048 = vadd.xlane.f32.xlu0 %v2017
      %v2049 = vpop.xlane.xlu0 %2048
      %2050 = vadd.xlane.f32.xlu0 %v2019
      %v2051 = vpop.xlane.xlu0 %2050
      %2052 = vadd.xlane.f32.xlu0 %v2021
      %v2053 = vpop.xlane.xlu0 %2052
      %v2054 = vrcp.pop %v2023
      %v2055 = vrcp.pop %v2025
      %v2056 = vrcp.pop %v2027
      %v2057 = vrcp.pop %v2029
      %v2058 = vrcp.pop %v2031
      %v2059 = vrcp.pop %v2033
      %v2060 = vrcp.pop %v2035
      %v2061 = vrcp.pop %v2037
      %v2062 = vrcp.pop %v2039
      %v2063 = vrcp.pop %v2041
      %v2064 = vrcp.pop %v2043
      %v2065 = vrcp.pop %v2045
      %v2066 = vrcp.pop %v2047
      %v2067 = vrcp.pop %v2049
      %v2068 = vrcp.pop %v2051
      %v2069 = vrcp.pop %v2053
      %v2070 = vmul.f32 %v1991, %v2054
      %v2071 = vmul.f32 %v1993, %v2055
      %v2072 = vmul.f32 %v1995, %v2056
      %v2073 = vmul.f32 %v1997, %v2057
      %v2074 = vmul.f32 %v1999, %v2058
      %v2075 = vmul.f32 %v2001, %v2059
      %v2076 = vmul.f32 %v2003, %v2060
      %v2077 = vmul.f32 %v2005, %v2061
      %v2078 = vmul.f32 %v2007, %v2062
      %v2079 = vmul.f32 %v2009, %v2063
      %v2080 = vmul.f32 %v2011, %v2064
      %v2081 = vmul.f32 %v2013, %v2065
      %v2082 = vmul.f32 %v2015, %v2066
      %v2083 = vmul.f32 %v2017, %v2067
      %v2084 = vmul.f32 %v2019, %v2068
      %v2085 = vmul.f32 %v2021, %v2069
      %v2086 = vpack.c.bf16 %v2071, %v2070
      %v2087 = vpack.c.bf16 %v2073, %v2072
      %v2088 = vpack.c.bf16 %v2075, %v2074
      %v2089 = vpack.c.bf16 %v2077, %v2076
      %v2090 = vpack.c.bf16 %v2079, %v2078
      %v2091 = vpack.c.bf16 %v2081, %v2080
      %v2092 = vpack.c.bf16 %v2083, %v2082
      %v2093 = vpack.c.bf16 %v2085, %v2084
      %2094 = vmatprep.subr.bf16.mxu0 0
      %2095 = vmatpush1.bf16.msra.mxu0 %v1795
      %2096 = vmatprep.subr.bf16.mxu0 0
      %2097 = vmatpush1.bf16.msra.mxu0 %v1801
      %2098 = vmatprep.subr.bf16.mxu0 0
      %2099 = vmatpush1.bf16.msra.mxu0 %v1807
      %2100 = vmatprep.subr.bf16.mxu0 0
      %2101 = vmatpush1.bf16.msra.mxu0 %v1813
      %2102 = vmatprep.subr.bf16.mxu0 0
      %2103 = vmatpush1.bf16.msra.mxu0 %v1819
      %2104 = vmatprep.subr.bf16.mxu0 0
      %2105 = vmatpush1.bf16.msra.mxu0 %v1825
      %2106 = vmatprep.subr.bf16.mxu0 0
      %2107 = vmatpush1.bf16.msra.mxu0 %v1831
      %2108 = vmatprep.subr.bf16.mxu0 0
      %2109 = vmatpush1.bf16.msra.mxu0 %v1837
      %2110 = vmatprep.subr.bf16.mxu0 0
      %2111 = vmatpush1.bf16.msra.mxu0 0
      %2112 = vmatprep.subr.bf16.mxu0 0
      %2113 = vmatpush1.bf16.msra.mxu0 0
      %2114 = vmatprep.subr.bf16.mxu0 0
      %2115 = vmatpush1.bf16.msra.mxu0 0
      %2116 = vmatprep.subr.bf16.mxu0 0
      %2117 = vmatpush1.bf16.msra.mxu0 0
      %2118 = vmatprep.subr.bf16.mxu0 0
      %2119 = vmatpush1.bf16.msra.mxu0 0
      %2120 = vmatprep.subr.bf16.mxu0 0
      %2121 = vmatpush1.bf16.msra.mxu0 0
      %2122 = vmatprep.subr.bf16.mxu0 0
      %2123 = vmatpush1.bf16.msra.mxu0 0
      %2124 = vmatprep.subr.bf16.mxu0 0
      %2125 = vmatpush1.bf16.msra.mxu0 0
      %2126 = vmatprep.mubr.bf16.mxu0 0
      %2127 = vmatmul.mubr.bf16.gmra.mrb[0].mxu0 %v2086
      %v2128 = vpop.f32.mrb[0].mxu0
      %v2129 = vadd.f32 0.0, %v2128
      %v2130 = vpop.f32.mrb[0].mxu0
      %v2131 = vpop.f32.mrb[0].mxu0
      %v2132 = vadd.f32 0.0, %v2131
      %v2133 = vpop.f32.mrb[0].mxu0
      %2134 = vmatprep.mubr.bf16.mxu0 0
      %2135 = vmatmul.mubr.bf16.gmra.mrb[0].mxu0 %v2087
      %v2136 = vpop.f32.mrb[0].mxu0
      %v2137 = vadd.f32 0.0, %v2136
      %v2138 = vpop.f32.mrb[0].mxu0
      %v2139 = vpop.f32.mrb[0].mxu0
      %v2140 = vadd.f32 0.0, %v2139
      %v2141 = vpop.f32.mrb[0].mxu0
      %2142 = vmatprep.mubr.bf16.mxu0 0
      %2143 = vmatmul.mubr.bf16.gmra.mrb[0].mxu0 %v2088
      %v2144 = vpop.f32.mrb[0].mxu0
      %v2145 = vadd.f32 0.0, %v2144
      %v2146 = vpop.f32.mrb[0].mxu0
      %v2147 = vpop.f32.mrb[0].mxu0
      %v2148 = vadd.f32 0.0, %v2147
      %v2149 = vpop.f32.mrb[0].mxu0
      %2150 = vmatprep.mubr.bf16.mxu0 0
      %2151 = vmatmul.mubr.bf16.gmra.mrb[0].mxu0 %v2089
      %v2152 = vpop.f32.mrb[0].mxu0
      %v2153 = vadd.f32 0.0, %v2152
      %v2154 = vpop.f32.mrb[0].mxu0
      %v2155 = vpop.f32.mrb[0].mxu0
      %v2156 = vadd.f32 0.0, %v2155
      %v2157 = vpop.f32.mrb[0].mxu0
      %2158 = vmatprep.mubr.bf16.mxu0 0
      %2159 = vmatmul.mubr.bf16.gmra.mrb[0].mxu0 %v2090
      %v2160 = vpop.f32.mrb[0].mxu0
      %v2161 = vadd.f32 0.0, %v2160
      %v2162 = vpop.f32.mrb[0].mxu0
      %v2163 = vpop.f32.mrb[0].mxu0
      %v2164 = vadd.f32 0.0, %v2163
      %v2165 = vpop.f32.mrb[0].mxu0
      %2166 = vmatprep.mubr.bf16.mxu0 0
      %2167 = vmatmul.mubr.bf16.gmra.mrb[0].mxu0 %v2091
      %v2168 = vpop.f32.mrb[0].mxu0
      %v2169 = vadd.f32 0.0, %v2168
      %v2170 = vpop.f32.mrb[0].mxu0
      %v2171 = vpop.f32.mrb[0].mxu0
      %v2172 = vadd.f32 0.0, %v2171
      %v2173 = vpop.f32.mrb[0].mxu0
      %2174 = vmatprep.mubr.bf16.mxu0 0
      %2175 = vmatmul.mubr.bf16.gmra.mrb[0].mxu0 %v2092
      %v2176 = vpop.f32.mrb[0].mxu0
      %v2177 = vadd.f32 0.0, %v2176
      %v2178 = vpop.f32.mrb[0].mxu0
      %v2179 = vpop.f32.mrb[0].mxu0
      %v2180 = vadd.f32 0.0, %v2179
      %v2181 = vpop.f32.mrb[0].mxu0
      %2182 = vmatprep.mubr.bf16.mxu0 0
      %2183 = vmatmul.mubr.bf16.gmra.mrb[0].mxu0 %v2093
      %v2184 = vpop.f32.mrb[0].mxu0
      %v2185 = vadd.f32 0.0, %v2184
      %v2186 = vpop.f32.mrb[0].mxu0
      %v2187 = vpop.f32.mrb[0].mxu0
      %v2188 = vadd.f32 0.0, %v2187
      %v2189 = vpop.f32.mrb[0].mxu0
      %2190 = vdwg.mxu0
      %2191 = vmatprep.subr.bf16.mxu0 0
      %2192 = vmatpush1.bf16.xpose.msra.mxu0 %v1794
      %2193 = vmatprep.subr.bf16.mxu0 0
      %2194 = vmatpush1.bf16.xpose.msra.mxu0 %v1800
      %2195 = vmatprep.subr.bf16.mxu0 0
      %2196 = vmatpush1.bf16.xpose.msra.mxu0 %v1806
      %2197 = vmatprep.subr.bf16.mxu0 0
      %2198 = vmatpush1.bf16.xpose.msra.mxu0 %v1812
      %2199 = vmatprep.subr.bf16.mxu0 0
      %2200 = vmatpush1.bf16.xpose.msra.mxu0 %v1818
      %2201 = vmatprep.subr.bf16.mxu0 0
      %2202 = vmatpush1.bf16.xpose.msra.mxu0 %v1824
      %2203 = vmatprep.subr.bf16.mxu0 0
      %2204 = vmatpush1.bf16.xpose.msra.mxu0 %v1830
      %2205 = vmatprep.subr.bf16.mxu0 0
      %2206 = vmatpush1.bf16.xpose.msra.mxu0 %v1836
      %2207 = vmatprep.subr.bf16.mxu0 0
      %2208 = vmatpush1.bf16.xpose.msra.mxu0 0
      %2209 = vmatprep.subr.bf16.mxu0 0
      %2210 = vmatpush1.bf16.xpose.msra.mxu0 0
      %2211 = vmatprep.subr.bf16.mxu0 0
      %2212 = vmatpush1.bf16.xpose.msra.mxu0 0
      %2213 = vmatprep.subr.bf16.mxu0 0
      %2214 = vmatpush1.bf16.xpose.msra.mxu0 0
      %2215 = vmatprep.subr.bf16.mxu0 0
      %2216 = vmatpush1.bf16.xpose.msra.mxu0 0
      %2217 = vmatprep.subr.bf16.mxu0 0
      %2218 = vmatpush1.bf16.xpose.msra.mxu0 0
      %2219 = vmatprep.subr.bf16.mxu0 0
      %2220 = vmatpush1.bf16.xpose.msra.mxu0 0
      %2221 = vmatprep.subr.bf16.mxu0 0
      %2222 = vmatpush1.bf16.xpose.msra.mxu0 0
      %2223 = vmatprep.mubr.bf16.mxu0 0
      %2224 = vmatmul.mubr.bf16.gmra.mrb[0].mxu0 %v1792
      %v2225 = vpop.f32.mrb[0].mxu0
      %v2226 = vadd.f32 %v1843, %v2225
      %v2227 = vpop.f32.mrb[0].mxu0
      %v2228 = vpop.f32.mrb[0].mxu0
      %v2229 = vadd.f32 %v1843, %v2228
      %v2230 = vpop.f32.mrb[0].mxu0
      %2231 = vmatprep.mubr.bf16.mxu0 0
      %2232 = vmatmul.mubr.bf16.gmra.mrb[0].mxu0 %v1798
      %v2233 = vpop.f32.mrb[0].mxu0
      %v2234 = vadd.f32 %v1843, %v2233
      %v2235 = vpop.f32.mrb[0].mxu0
      %v2236 = vpop.f32.mrb[0].mxu0
      %v2237 = vadd.f32 %v1843, %v2236
      %v2238 = vpop.f32.mrb[0].mxu0
      %2239 = vmatprep.mubr.bf16.mxu0 0
      %2240 = vmatmul.mubr.bf16.gmra.mrb[0].mxu0 %v1804
      %v2241 = vpop.f32.mrb[0].mxu0
      %v2242 = vadd.f32 %v1843, %v2241
      %v2243 = vpop.f32.mrb[0].mxu0
      %v2244 = vpop.f32.mrb[0].mxu0
      %v2245 = vadd.f32 %v1843, %v2244
      %v2246 = vpop.f32.mrb[0].mxu0
      %2247 = vmatprep.mubr.bf16.mxu0 0
      %2248 = vmatmul.mubr.bf16.gmra.mrb[0].mxu0 %v1810
      %v2249 = vpop.f32.mrb[0].mxu0
      %v2250 = vadd.f32 %v1843, %v2249
      %v2251 = vpop.f32.mrb[0].mxu0
      %v2252 = vpop.f32.mrb[0].mxu0
      %v2253 = vadd.f32 %v1843, %v2252
      %v2254 = vpop.f32.mrb[0].mxu0
      %2255 = vmatprep.mubr.bf16.mxu0 0
      %2256 = vmatmul.mubr.bf16.gmra.mrb[0].mxu0 %v1816
      %v2257 = vpop.f32.mrb[0].mxu0
      %v2258 = vadd.f32 %v1843, %v2257
      %v2259 = vpop.f32.mrb[0].mxu0
      %v2260 = vpop.f32.mrb[0].mxu0
      %v2261 = vadd.f32 %v1843, %v2260
      %v2262 = vpop.f32.mrb[0].mxu0
      %2263 = vmatprep.mubr.bf16.mxu0 0
      %2264 = vmatmul.mubr.bf16.gmra.mrb[0].mxu0 %v1822
      %v2265 = vpop.f32.mrb[0].mxu0
      %v2266 = vadd.f32 %v1843, %v2265
      %v2267 = vpop.f32.mrb[0].mxu0
      %v2268 = vpop.f32.mrb[0].mxu0
      %v2269 = vadd.f32 %v1843, %v2268
      %v2270 = vpop.f32.mrb[0].mxu0
      %2271 = vmatprep.mubr.bf16.mxu0 0
      %2272 = vmatmul.mubr.bf16.gmra.mrb[0].mxu0 %v1828
      %v2273 = vpop.f32.mrb[0].mxu0
      %v2274 = vadd.f32 %v1843, %v2273
      %v2275 = vpop.f32.mrb[0].mxu0
      %v2276 = vpop.f32.mrb[0].mxu0
      %v2277 = vadd.f32 %v1843, %v2276
      %v2278 = vpop.f32.mrb[0].mxu0
      %2279 = vmatprep.mubr.bf16.mxu0 0
      %2280 = vmatmul.mubr.bf16.gmra.mrb[0].mxu0 %v1834
      %v2281 = vpop.f32.mrb[0].mxu0
      %v2282 = vadd.f32 %v1843, %v2281
      %v2283 = vpop.f32.mrb[0].mxu0
      %v2284 = vpop.f32.mrb[0].mxu0
      %v2285 = vadd.f32 %v1843, %v2284
      %v2286 = vpop.f32.mrb[0].mxu0
      %2287 = vdwg.mxu0
      %2288 = vmax.xlane.f32.xlu0 %v2226
      %v2289 = vpop.xlane.xlu0 %2288
      %2290 = vmax.xlane.f32.xlu0 %v2229
      %v2291 = vpop.xlane.xlu0 %2290
      %2292 = vmax.xlane.f32.xlu0 %v2234
      %v2293 = vpop.xlane.xlu0 %2292
      %2294 = vmax.xlane.f32.xlu0 %v2237
      %v2295 = vpop.xlane.xlu0 %2294
      %2296 = vmax.xlane.f32.xlu0 %v2242
      %v2297 = vpop.xlane.xlu0 %2296
      %2298 = vmax.xlane.f32.xlu0 %v2245
      %v2299 = vpop.xlane.xlu0 %2298
      %2300 = vmax.xlane.f32.xlu0 %v2250
      %v2301 = vpop.xlane.xlu0 %2300
      %2302 = vmax.xlane.f32.xlu0 %v2253
      %v2303 = vpop.xlane.xlu0 %2302
      %2304 = vmax.xlane.f32.xlu0 %v2258
      %v2305 = vpop.xlane.xlu0 %2304
      %2306 = vmax.xlane.f32.xlu0 %v2261
      %v2307 = vpop.xlane.xlu0 %2306
      %2308 = vmax.xlane.f32.xlu0 %v2266
      %v2309 = vpop.xlane.xlu0 %2308
      %2310 = vmax.xlane.f32.xlu0 %v2269
      %v2311 = vpop.xlane.xlu0 %2310
      %2312 = vmax.xlane.f32.xlu0 %v2274
      %v2313 = vpop.xlane.xlu0 %2312
      %2314 = vmax.xlane.f32.xlu0 %v2277
      %v2315 = vpop.xlane.xlu0 %2314
      %2316 = vmax.xlane.f32.xlu0 %v2282
      %v2317 = vpop.xlane.xlu0 %2316
      %2318 = vmax.xlane.f32.xlu0 %v2285
      %v2319 = vpop.xlane.xlu0 %2318
      %v2320 = vsub.f32 %v2226, %v2289
      %v2321 = vsub.f32 %v2229, %v2291
      %v2322 = vsub.f32 %v2234, %v2293
      %v2323 = vsub.f32 %v2237, %v2295
      %v2324 = vsub.f32 %v2242, %v2297
      %v2325 = vsub.f32 %v2245, %v2299
      %v2326 = vsub.f32 %v2250, %v2301
      %v2327 = vsub.f32 %v2253, %v2303
      %v2328 = vsub.f32 %v2258, %v2305
      %v2329 = vsub.f32 %v2261, %v2307
      %v2330 = vsub.f32 %v2266, %v2309
      %v2331 = vsub.f32 %v2269, %v2311
      %v2332 = vsub.f32 %v2274, %v2313
      %v2333 = vsub.f32 %v2277, %v2315
      %v2334 = vsub.f32 %v2282, %v2317
      %v2335 = vsub.f32 %v2285, %v2319
      %v2336 = vmul.f32 %v2320, 1.442695
      %v2337 = vpow.pop %v2336
      %v2338 = vmul.f32 %v2321, 1.442695
      %v2339 = vpow.pop %v2338
      %v2340 = vmul.f32 %v2322, 1.442695
      %v2341 = vpow.pop %v2340
      %v2342 = vmul.f32 %v2323, 1.442695
      %v2343 = vpow.pop %v2342
      %v2344 = vmul.f32 %v2324, 1.442695
      %v2345 = vpow.pop %v2344
      %v2346 = vmul.f32 %v2325, 1.442695
      %v2347 = vpow.pop %v2346
      %v2348 = vmul.f32 %v2326, 1.442695
      %v2349 = vpow.pop %v2348
      %v2350 = vmul.f32 %v2327, 1.442695
      %v2351 = vpow.pop %v2350
      %v2352 = vmul.f32 %v2328, 1.442695
      %v2353 = vpow.pop %v2352
      %v2354 = vmul.f32 %v2329, 1.442695
      %v2355 = vpow.pop %v2354
      %v2356 = vmul.f32 %v2330, 1.442695
      %v2357 = vpow.pop %v2356
      %v2358 = vmul.f32 %v2331, 1.442695
      %v2359 = vpow.pop %v2358
      %v2360 = vmul.f32 %v2332, 1.442695
      %v2361 = vpow.pop %v2360
      %v2362 = vmul.f32 %v2333, 1.442695
      %v2363 = vpow.pop %v2362
      %v2364 = vmul.f32 %v2334, 1.442695
      %v2365 = vpow.pop %v2364
      %v2366 = vmul.f32 %v2335, 1.442695
      %v2367 = vpow.pop %v2366
      %2368 = vadd.xlane.f32.xlu0 %v2337
      %v2369 = vpop.xlane.xlu0 %2368
      %2370 = vadd.xlane.f32.xlu0 %v2339
      %v2371 = vpop.xlane.xlu0 %2370
      %2372 = vadd.xlane.f32.xlu0 %v2341
      %v2373 = vpop.xlane.xlu0 %2372
      %2374 = vadd.xlane.f32.xlu0 %v2343
      %v2375 = vpop.xlane.xlu0 %2374
      %2376 = vadd.xlane.f32.xlu0 %v2345
      %v2377 = vpop.xlane.xlu0 %2376
      %2378 = vadd.xlane.f32.xlu0 %v2347
      %v2379 = vpop.xlane.xlu0 %2378
      %2380 = vadd.xlane.f32.xlu0 %v2349
      %v2381 = vpop.xlane.xlu0 %2380
      %2382 = vadd.xlane.f32.xlu0 %v2351
      %v2383 = vpop.xlane.xlu0 %2382
      %2384 = vadd.xlane.f32.xlu0 %v2353
      %v2385 = vpop.xlane.xlu0 %2384
      %2386 = vadd.xlane.f32.xlu0 %v2355
      %v2387 = vpop.xlane.xlu0 %2386
      %2388 = vadd.xlane.f32.xlu0 %v2357
      %v2389 = vpop.xlane.xlu0 %2388
      %2390 = vadd.xlane.f32.xlu0 %v2359
      %v2391 = vpop.xlane.xlu0 %2390
      %2392 = vadd.xlane.f32.xlu0 %v2361
      %v2393 = vpop.xlane.xlu0 %2392
      %2394 = vadd.xlane.f32.xlu0 %v2363
      %v2395 = vpop.xlane.xlu0 %2394
      %2396 = vadd.xlane.f32.xlu0 %v2365
      %v2397 = vpop.xlane.xlu0 %2396
      %2398 = vadd.xlane.f32.xlu0 %v2367
      %v2399 = vpop.xlane.xlu0 %2398
      %v2400 = vrcp.pop %v2369
      %v2401 = vrcp.pop %v2371
      %v2402 = vrcp.pop %v2373
      %v2403 = vrcp.pop %v2375
      %v2404 = vrcp.pop %v2377
      %v2405 = vrcp.pop %v2379
      %v2406 = vrcp.pop %v2381
      %v2407 = vrcp.pop %v2383
      %v2408 = vrcp.pop %v2385
      %v2409 = vrcp.pop %v2387
      %v2410 = vrcp.pop %v2389
      %v2411 = vrcp.pop %v2391
      %v2412 = vrcp.pop %v2393
      %v2413 = vrcp.pop %v2395
      %v2414 = vrcp.pop %v2397
      %v2415 = vrcp.pop %v2399
      %v2416 = vmul.f32 %v2337, %v2400
      %v2417 = vmul.f32 %v2339, %v2401
      %v2418 = vmul.f32 %v2341, %v2402
      %v2419 = vmul.f32 %v2343, %v2403
      %v2420 = vmul.f32 %v2345, %v2404
      %v2421 = vmul.f32 %v2347, %v2405
      %v2422 = vmul.f32 %v2349, %v2406
      %v2423 = vmul.f32 %v2351, %v2407
      %v2424 = vmul.f32 %v2353, %v2408
      %v2425 = vmul.f32 %v2355, %v2409
      %v2426 = vmul.f32 %v2357, %v2410
      %v2427 = vmul.f32 %v2359, %v2411
      %v2428 = vmul.f32 %v2361, %v2412
      %v2429 = vmul.f32 %v2363, %v2413
      %v2430 = vmul.f32 %v2365, %v2414
      %v2431 = vmul.f32 %v2367, %v2415
      %v2432 = vpack.c.bf16 %v2417, %v2416
      %v2433 = vpack.c.bf16 %v2419, %v2418
      %v2434 = vpack.c.bf16 %v2421, %v2420
      %v2435 = vpack.c.bf16 %v2423, %v2422
      %v2436 = vpack.c.bf16 %v2425, %v2424
      %v2437 = vpack.c.bf16 %v2427, %v2426
      %v2438 = vpack.c.bf16 %v2429, %v2428
      %v2439 = vpack.c.bf16 %v2431, %v2430
      %2440 = vmatprep.subr.bf16.mxu0 0
      %2441 = vmatpush1.bf16.msra.mxu0 %v1796
      %2442 = vmatprep.subr.bf16.mxu0 0
      %2443 = vmatpush1.bf16.msra.mxu0 %v1802
      %2444 = vmatprep.subr.bf16.mxu0 0
      %2445 = vmatpush1.bf16.msra.mxu0 %v1808
      %2446 = vmatprep.subr.bf16.mxu0 0
      %2447 = vmatpush1.bf16.msra.mxu0 %v1814
      %2448 = vmatprep.subr.bf16.mxu0 0
      %2449 = vmatpush1.bf16.msra.mxu0 %v1820
      %2450 = vmatprep.subr.bf16.mxu0 0
      %2451 = vmatpush1.bf16.msra.mxu0 %v1826
      %2452 = vmatprep.subr.bf16.mxu0 0
      %2453 = vmatpush1.bf16.msra.mxu0 %v1832
      %2454 = vmatprep.subr.bf16.mxu0 0
      %2455 = vmatpush1.bf16.msra.mxu0 %v1838
      %2456 = vmatprep.subr.bf16.mxu0 0
      %2457 = vmatpush1.bf16.msra.mxu0 0
      %2458 = vmatprep.subr.bf16.mxu0 0
      %2459 = vmatpush1.bf16.msra.mxu0 0
      %2460 = vmatprep.subr.bf16.mxu0 0
      %2461 = vmatpush1.bf16.msra.mxu0 0
      %2462 = vmatprep.subr.bf16.mxu0 0
      %2463 = vmatpush1.bf16.msra.mxu0 0
      %2464 = vmatprep.subr.bf16.mxu0 0
      %2465 = vmatpush1.bf16.msra.mxu0 0
      %2466 = vmatprep.subr.bf16.mxu0 0
      %2467 = vmatpush1.bf16.msra.mxu0 0
      %2468 = vmatprep.subr.bf16.mxu0 0
      %2469 = vmatpush1.bf16.msra.mxu0 0
      %2470 = vmatprep.subr.bf16.mxu0 0
      %2471 = vmatpush1.bf16.msra.mxu0 0
      %2472 = vmatprep.mubr.bf16.mxu0 0
      %2473 = vmatmul.mubr.bf16.gmra.mrb[0].mxu0 %v2432
      %v2474 = vpop.f32.mrb[0].mxu0
      %v2475 = vadd.f32 0.0, %v2474
      %v2476 = vpop.f32.mrb[0].mxu0
      %v2477 = vpop.f32.mrb[0].mxu0
      %v2478 = vadd.f32 0.0, %v2477
      %v2479 = vpop.f32.mrb[0].mxu0
      %2480 = vmatprep.mubr.bf16.mxu0 0
      %2481 = vmatmul.mubr.bf16.gmra.mrb[0].mxu0 %v2433
      %v2482 = vpop.f32.mrb[0].mxu0
      %v2483 = vadd.f32 0.0, %v2482
      %v2484 = vpop.f32.mrb[0].mxu0
      %v2485 = vpop.f32.mrb[0].mxu0
      %v2486 = vadd.f32 0.0, %v2485
      %v2487 = vpop.f32.mrb[0].mxu0
      %2488 = vmatprep.mubr.bf16.mxu0 0
      %2489 = vmatmul.mubr.bf16.gmra.mrb[0].mxu0 %v2434
      %v2490 = vpop.f32.mrb[0].mxu0
      %v2491 = vadd.f32 0.0, %v2490
      %v2492 = vpop.f32.mrb[0].mxu0
      %v2493 = vpop.f32.mrb[0].mxu0
      %v2494 = vadd.f32 0.0, %v2493
      %v2495 = vpop.f32.mrb[0].mxu0
      %2496 = vmatprep.mubr.bf16.mxu0 0
      %2497 = vmatmul.mubr.bf16.gmra.mrb[0].mxu0 %v2435
      %v2498 = vpop.f32.mrb[0].mxu0
      %v2499 = vadd.f32 0.0, %v2498
      %v2500 = vpop.f32.mrb[0].mxu0
      %v2501 = vpop.f32.mrb[0].mxu0
      %v2502 = vadd.f32 0.0, %v2501
      %v2503 = vpop.f32.mrb[0].mxu0
      %2504 = vmatprep.mubr.bf16.mxu0 0
      %2505 = vmatmul.mubr.bf16.gmra.mrb[0].mxu0 %v2436
      %v2506 = vpop.f32.mrb[0].mxu0
      %v2507 = vadd.f32 0.0, %v2506
      %v2508 = vpop.f32.mrb[0].mxu0
      %v2509 = vpop.f32.mrb[0].mxu0
      %v2510 = vadd.f32 0.0, %v2509
      %v2511 = vpop.f32.mrb[0].mxu0
      %2512 = vmatprep.mubr.bf16.mxu0 0
      %2513 = vmatmul.mubr.bf16.gmra.mrb[0].mxu0 %v2437
      %v2514 = vpop.f32.mrb[0].mxu0
      %v2515 = vadd.f32 0.0, %v2514
      %v2516 = vpop.f32.mrb[0].mxu0
      %v2517 = vpop.f32.mrb[0].mxu0
      %v2518 = vadd.f32 0.0, %v2517
      %v2519 = vpop.f32.mrb[0].mxu0
      %2520 = vmatprep.mubr.bf16.mxu0 0
      %2521 = vmatmul.mubr.bf16.gmra.mrb[0].mxu0 %v2438
      %v2522 = vpop.f32.mrb[0].mxu0
      %v2523 = vadd.f32 0.0, %v2522
      %v2524 = vpop.f32.mrb[0].mxu0
      %v2525 = vpop.f32.mrb[0].mxu0
      %v2526 = vadd.f32 0.0, %v2525
      %v2527 = vpop.f32.mrb[0].mxu0
      %2528 = vmatprep.mubr.bf16.mxu0 0
      %2529 = vmatmul.mubr.bf16.gmra.mrb[0].mxu0 %v2439
      %v2530 = vpop.f32.mrb[0].mxu0
      %v2531 = vadd.f32 0.0, %v2530
      %v2532 = vpop.f32.mrb[0].mxu0
      %v2533 = vpop.f32.mrb[0].mxu0
      %v2534 = vadd.f32 0.0, %v2533
      %v2535 = vpop.f32.mrb[0].mxu0
      %2536 = vdwg.mxu0
      %v2537 = vpack.c.bf16 %v2132, %v2129
      %v2538 = vpack.c.bf16 %v2478, %v2475
      %v2539 = vpack.c.bf16 %v2140, %v2137
      %v2540 = vpack.c.bf16 %v2486, %v2483
      %v2541 = vpack.c.bf16 %v2148, %v2145
      %v2542 = vpack.c.bf16 %v2494, %v2491
      %v2543 = vpack.c.bf16 %v2156, %v2153
      %v2544 = vpack.c.bf16 %v2502, %v2499
      %v2545 = vpack.c.bf16 %v2164, %v2161
      %v2546 = vpack.c.bf16 %v2510, %v2507
      %v2547 = vpack.c.bf16 %v2172, %v2169
      %v2548 = vpack.c.bf16 %v2518, %v2515
      %v2549 = vpack.c.bf16 %v2180, %v2177
      %v2550 = vpack.c.bf16 %v2526, %v2523
      %v2551 = vpack.c.bf16 %v2188, %v2185
      %v2552 = vpack.c.bf16 %v2534, %v2531
      %v2553 = vld [vmem:[%s666] sm:$0xff]
      %v2554 = vld [vmem:[%s666 + $0x8] sm:$0xff]
      %v2555 = vld [vmem:[%s666 + $0x10] sm:$0xff]
      %v2556 = vld [vmem:[%s666 + $0x18] sm:$0xff]
      %v2557 = vld [vmem:[%s666 + $0x20] sm:$0xff]
      %v2558 = vld [vmem:[%s666 + $0x28] sm:$0xff]
      %v2559 = vld [vmem:[%s666 + $0x30] sm:$0xff]
      %v2560 = vld [vmem:[%s666 + $0x38] sm:$0xff]
      %v2561 = vld [vmem:[%s666 + $0x40] sm:$0xff]
      %v2562 = vld [vmem:[%s666 + $0x48] sm:$0xff]
      %v2563 = vld [vmem:[%s666 + $0x50] sm:$0xff]
      %v2564 = vld [vmem:[%s666 + $0x58] sm:$0xff]
      %v2565 = vld [vmem:[%s666 + $0x60] sm:$0xff]
      %v2566 = vld [vmem:[%s666 + $0x68] sm:$0xff]
      %v2567 = vld [vmem:[%s666 + $0x70] sm:$0xff]
      %v2568 = vld [vmem:[%s666 + $0x78] sm:$0xff]
      %v2569 = vld [vmem:[%s666 + $0x80] sm:$0xff]
      %v2570 = vld [vmem:[%s666 + $0x88] sm:$0xff]
      %v2571 = vld [vmem:[%s666 + $0x90] sm:$0xff]
      %v2572 = vld [vmem:[%s666 + $0x98] sm:$0xff]
      %v2573 = vld [vmem:[%s666 + $0xa0] sm:$0xff]
      %v2574 = vld [vmem:[%s666 + $0xa8] sm:$0xff]
      %v2575 = vld [vmem:[%s666 + $0xb0] sm:$0xff]
      %v2576 = vld [vmem:[%s666 + $0xb8] sm:$0xff]
      %v2577 = vld [vmem:[%s666 + $0xc0] sm:$0xff]
      %v2578 = vld [vmem:[%s666 + $0xc8] sm:$0xff]
      %v2579 = vld [vmem:[%s666 + $0xd0] sm:$0xff]
      %v2580 = vld [vmem:[%s666 + $0xd8] sm:$0xff]
      %v2581 = vld [vmem:[%s666 + $0xe0] sm:$0xff]
      %v2582 = vld [vmem:[%s666 + $0xe8] sm:$0xff]
      %v2583 = vld [vmem:[%s666 + $0xf0] sm:$0xff]
      %v2584 = vld [vmem:[%s666 + $0xf8] sm:$0xff]
      %v2585 = vld [vmem:[%s670] sm:$0x3]
      %v2587 = vlaneseq
      %v2588 = vshrl.u32 %v2587, 7
      %v2589 = vsub.s32 0, %v2588
      %v2590 = vrot.slane %v2585, %v2589
      %v2591 = vlaneseq
      %v2592 = vshrl.u32 %v2591, 7
      %v2593 = vsub.s32 1, %v2592
      %v2594 = vrot.slane %v2585, %v2593
      %v2629 = vunpack.c.l.b16 %v2553
      %v2630 = vunpack.c.h.b16 %v2553
      %v2631 = vunpack.c.l.b16 %v2554
      %v2632 = vunpack.c.h.b16 %v2554
      %v2633 = vunpack.c.l.b16 %v2555
      %v2634 = vunpack.c.h.b16 %v2555
      %v2635 = vunpack.c.l.b16 %v2556
      %v2636 = vunpack.c.h.b16 %v2556
      %v2637 = vunpack.c.l.b16 %v2557
      %v2638 = vunpack.c.h.b16 %v2557
      %v2639 = vunpack.c.l.b16 %v2558
      %v2640 = vunpack.c.h.b16 %v2558
      %v2641 = vunpack.c.l.b16 %v2559
      %v2642 = vunpack.c.h.b16 %v2559
      %v2643 = vunpack.c.l.b16 %v2560
      %v2644 = vunpack.c.h.b16 %v2560
      %v2645 = vunpack.c.l.b16 %v2561
      %v2646 = vunpack.c.h.b16 %v2561
      %v2647 = vunpack.c.l.b16 %v2562
      %v2648 = vunpack.c.h.b16 %v2562
      %v2649 = vunpack.c.l.b16 %v2563
      %v2650 = vunpack.c.h.b16 %v2563
      %v2651 = vunpack.c.l.b16 %v2564
      %v2652 = vunpack.c.h.b16 %v2564
      %v2653 = vunpack.c.l.b16 %v2565
      %v2654 = vunpack.c.h.b16 %v2565
      %v2655 = vunpack.c.l.b16 %v2566
      %v2656 = vunpack.c.h.b16 %v2566
      %v2657 = vunpack.c.l.b16 %v2567
      %v2658 = vunpack.c.h.b16 %v2567
      %v2659 = vunpack.c.l.b16 %v2568
      %v2660 = vunpack.c.h.b16 %v2568
      %v2661 = vunpack.c.l.b16 %v2569
      %v2662 = vunpack.c.h.b16 %v2569
      %v2663 = vunpack.c.l.b16 %v2570
      %v2664 = vunpack.c.h.b16 %v2570
      %v2665 = vunpack.c.l.b16 %v2571
      %v2666 = vunpack.c.h.b16 %v2571
      %v2667 = vunpack.c.l.b16 %v2572
      %v2668 = vunpack.c.h.b16 %v2572
      %v2669 = vunpack.c.l.b16 %v2573
      %v2670 = vunpack.c.h.b16 %v2573
      %v2671 = vunpack.c.l.b16 %v2574
      %v2672 = vunpack.c.h.b16 %v2574
      %v2673 = vunpack.c.l.b16 %v2575
      %v2674 = vunpack.c.h.b16 %v2575
      %v2675 = vunpack.c.l.b16 %v2576
      %v2676 = vunpack.c.h.b16 %v2576
      %v2677 = vunpack.c.l.b16 %v2577
      %v2678 = vunpack.c.h.b16 %v2577
      %v2679 = vunpack.c.l.b16 %v2578
      %v2680 = vunpack.c.h.b16 %v2578
      %v2681 = vunpack.c.l.b16 %v2579
      %v2682 = vunpack.c.h.b16 %v2579
      %v2683 = vunpack.c.l.b16 %v2580
      %v2684 = vunpack.c.h.b16 %v2580
      %v2685 = vunpack.c.l.b16 %v2581
      %v2686 = vunpack.c.h.b16 %v2581
      %v2687 = vunpack.c.l.b16 %v2582
      %v2688 = vunpack.c.h.b16 %v2582
      %v2689 = vunpack.c.l.b16 %v2583
      %v2690 = vunpack.c.h.b16 %v2583
      %v2691 = vunpack.c.l.b16 %v2584
      %v2692 = vunpack.c.h.b16 %v2584
      %v2693 = vpack.c.b16 %v2631, %v2629
      %v2694 = vpack.c.b16 %v2632, %v2630
      %v2695 = vpack.c.b16 %v2635, %v2633
      %v2696 = vpack.c.b16 %v2636, %v2634
      %v2697 = vpack.c.b16 %v2639, %v2637
      %v2698 = vpack.c.b16 %v2640, %v2638
      %v2699 = vpack.c.b16 %v2643, %v2641
      %v2700 = vpack.c.b16 %v2644, %v2642
      %v2701 = vpack.c.b16 %v2647, %v2645
      %v2702 = vpack.c.b16 %v2648, %v2646
      %v2703 = vpack.c.b16 %v2651, %v2649
      %v2704 = vpack.c.b16 %v2652, %v2650
      %v2705 = vpack.c.b16 %v2655, %v2653
      %v2706 = vpack.c.b16 %v2656, %v2654
      %v2707 = vpack.c.b16 %v2659, %v2657
      %v2708 = vpack.c.b16 %v2660, %v2658
      %v2709 = vpack.c.b16 %v2663, %v2661
      %v2710 = vpack.c.b16 %v2664, %v2662
      %v2711 = vpack.c.b16 %v2667, %v2665
      %v2712 = vpack.c.b16 %v2668, %v2666
      %v2713 = vpack.c.b16 %v2671, %v2669
      %v2714 = vpack.c.b16 %v2672, %v2670
      %v2715 = vpack.c.b16 %v2675, %v2673
      %v2716 = vpack.c.b16 %v2676, %v2674
      %v2717 = vpack.c.b16 %v2679, %v2677
      %v2718 = vpack.c.b16 %v2680, %v2678
      %v2719 = vpack.c.b16 %v2683, %v2681
      %v2720 = vpack.c.b16 %v2684, %v2682
      %v2721 = vpack.c.b16 %v2687, %v2685
      %v2722 = vpack.c.b16 %v2688, %v2686
      %v2723 = vpack.c.b16 %v2691, %v2689
      %v2724 = vpack.c.b16 %v2692, %v2690
      %2757 = vmatprep.subr.bf16.mxu0 %v2694
      %2758 = vmatpush1.bf16.msra.mxu0 %v2693
      %2759 = vmatprep.subr.bf16.mxu0 %v2696
      %2760 = vmatpush1.bf16.msra.mxu0 %v2695
      %2761 = vmatprep.subr.bf16.mxu0 %v2698
      %2762 = vmatpush1.bf16.msra.mxu0 %v2697
      %2763 = vmatprep.subr.bf16.mxu0 %v2700
      %2764 = vmatpush1.bf16.msra.mxu0 %v2699
      %2765 = vmatprep.subr.bf16.mxu0 %v2702
      %2766 = vmatpush1.bf16.msra.mxu0 %v2701
      %2767 = vmatprep.subr.bf16.mxu0 %v2704
      %2768 = vmatpush1.bf16.msra.mxu0 %v2703
      %2769 = vmatprep.subr.bf16.mxu0 %v2706
      %2770 = vmatpush1.bf16.msra.mxu0 %v2705
      %2771 = vmatprep.subr.bf16.mxu0 %v2708
      %2772 = vmatpush1.bf16.msra.mxu0 %v2707
      %2773 = vmatprep.subr.bf16.mxu0 %v2710
      %2774 = vmatpush1.bf16.msra.mxu0 %v2709
      %2775 = vmatprep.subr.bf16.mxu0 %v2712
      %2776 = vmatpush1.bf16.msra.mxu0 %v2711
      %2777 = vmatprep.subr.bf16.mxu0 %v2714
      %2778 = vmatpush1.bf16.msra.mxu0 %v2713
      %2779 = vmatprep.subr.bf16.mxu0 %v2716
      %2780 = vmatpush1.bf16.msra.mxu0 %v2715
      %2781 = vmatprep.subr.bf16.mxu0 %v2718
      %2782 = vmatpush1.bf16.msra.mxu0 %v2717
      %2783 = vmatprep.subr.bf16.mxu0 %v2720
      %2784 = vmatpush1.bf16.msra.mxu0 %v2719
      %2785 = vmatprep.subr.bf16.mxu0 %v2722
      %2786 = vmatpush1.bf16.msra.mxu0 %v2721
      %2787 = vmatprep.subr.bf16.mxu0 %v2724
      %2788 = vmatpush1.bf16.msra.mxu0 %v2723
      %2789 = vmatprep.mubr.bf16.mxu0 %v2538
      %2790 = vmatmul.mubr.bf16.gmra.mrb[0].mxu0 %v2537
      %v2791 = vpop.f32.mrb[0].mxu0
      %v2792 = vadd.f32 %v2590, %v2791
      %v2793 = vpop.f32.mrb[0].mxu0
      %v2794 = vadd.f32 %v2594, %v2793
      %v2795 = vpop.f32.mrb[0].mxu0
      %v2796 = vadd.f32 %v2590, %v2795
      %v2797 = vpop.f32.mrb[0].mxu0
      %v2798 = vadd.f32 %v2594, %v2797
      %2799 = vmatprep.mubr.bf16.mxu0 %v2540
      %2800 = vmatmul.mubr.bf16.gmra.mrb[0].mxu0 %v2539
      %v2801 = vpop.f32.mrb[0].mxu0
      %v2802 = vadd.f32 %v2590, %v2801
      %v2803 = vpop.f32.mrb[0].mxu0
      %v2804 = vadd.f32 %v2594, %v2803
      %v2805 = vpop.f32.mrb[0].mxu0
      %v2806 = vadd.f32 %v2590, %v2805
      %v2807 = vpop.f32.mrb[0].mxu0
      %v2808 = vadd.f32 %v2594, %v2807
      %2809 = vmatprep.mubr.bf16.mxu0 %v2542
      %2810 = vmatmul.mubr.bf16.gmra.mrb[0].mxu0 %v2541
      %v2811 = vpop.f32.mrb[0].mxu0
      %v2812 = vadd.f32 %v2590, %v2811
      %v2813 = vpop.f32.mrb[0].mxu0
      %v2814 = vadd.f32 %v2594, %v2813
      %v2815 = vpop.f32.mrb[0].mxu0
      %v2816 = vadd.f32 %v2590, %v2815
      %v2817 = vpop.f32.mrb[0].mxu0
      %v2818 = vadd.f32 %v2594, %v2817
      %2819 = vmatprep.mubr.bf16.mxu0 %v2544
      %2820 = vmatmul.mubr.bf16.gmra.mrb[0].mxu0 %v2543
      %v2821 = vpop.f32.mrb[0].mxu0
      %v2822 = vadd.f32 %v2590, %v2821
      %v2823 = vpop.f32.mrb[0].mxu0
      %v2824 = vadd.f32 %v2594, %v2823
      %v2825 = vpop.f32.mrb[0].mxu0
      %v2826 = vadd.f32 %v2590, %v2825
      %v2827 = vpop.f32.mrb[0].mxu0
      %v2828 = vadd.f32 %v2594, %v2827
      %2829 = vmatprep.mubr.bf16.mxu0 %v2546
      %2830 = vmatmul.mubr.bf16.gmra.mrb[0].mxu0 %v2545
      %v2831 = vpop.f32.mrb[0].mxu0
      %v2832 = vadd.f32 %v2590, %v2831
      %v2833 = vpop.f32.mrb[0].mxu0
      %v2834 = vadd.f32 %v2594, %v2833
      %v2835 = vpop.f32.mrb[0].mxu0
      %v2836 = vadd.f32 %v2590, %v2835
      %v2837 = vpop.f32.mrb[0].mxu0
      %v2838 = vadd.f32 %v2594, %v2837
      %2839 = vmatprep.mubr.bf16.mxu0 %v2548
      %2840 = vmatmul.mubr.bf16.gmra.mrb[0].mxu0 %v2547
      %v2841 = vpop.f32.mrb[0].mxu0
      %v2842 = vadd.f32 %v2590, %v2841
      %v2843 = vpop.f32.mrb[0].mxu0
      %v2844 = vadd.f32 %v2594, %v2843
      %v2845 = vpop.f32.mrb[0].mxu0
      %v2846 = vadd.f32 %v2590, %v2845
      %v2847 = vpop.f32.mrb[0].mxu0
      %v2848 = vadd.f32 %v2594, %v2847
      %2849 = vmatprep.mubr.bf16.mxu0 %v2550
      %2850 = vmatmul.mubr.bf16.gmra.mrb[0].mxu0 %v2549
      %v2851 = vpop.f32.mrb[0].mxu0
      %v2852 = vadd.f32 %v2590, %v2851
      %v2853 = vpop.f32.mrb[0].mxu0
      %v2854 = vadd.f32 %v2594, %v2853
      %v2855 = vpop.f32.mrb[0].mxu0
      %v2856 = vadd.f32 %v2590, %v2855
      %v2857 = vpop.f32.mrb[0].mxu0
      %v2858 = vadd.f32 %v2594, %v2857
      %2859 = vmatprep.mubr.bf16.mxu0 %v2552
      %2860 = vmatmul.mubr.bf16.gmra.mrb[0].mxu0 %v2551
      %v2861 = vpop.f32.mrb[0].mxu0
      %v2862 = vadd.f32 %v2590, %v2861
      %v2863 = vpop.f32.mrb[0].mxu0
      %v2864 = vadd.f32 %v2594, %v2863
      %v2865 = vpop.f32.mrb[0].mxu0
      %v2866 = vadd.f32 %v2590, %v2865
      %v2867 = vpop.f32.mrb[0].mxu0
      %v2868 = vadd.f32 %v2594, %v2867
      %2869 = vdwg.mxu0
      %v2870 = vadd.f32 %v2792, %v795
      %v2871 = vadd.f32 %v2794, %v796
      %v2872 = vadd.f32 %v2796, %v797
      %v2873 = vadd.f32 %v2798, %v798
      %v2874 = vadd.f32 %v2802, %v799
      %v2875 = vadd.f32 %v2804, %v800
      %v2876 = vadd.f32 %v2806, %v801
      %v2877 = vadd.f32 %v2808, %v802
      %v2878 = vadd.f32 %v2812, %v803
      %v2879 = vadd.f32 %v2814, %v804
      %v2880 = vadd.f32 %v2816, %v805
      %v2881 = vadd.f32 %v2818, %v806
      %v2882 = vadd.f32 %v2822, %v807
      %v2883 = vadd.f32 %v2824, %v808
      %v2884 = vadd.f32 %v2826, %v809
      %v2885 = vadd.f32 %v2828, %v810
      %v2886 = vadd.f32 %v2832, %v811
      %v2887 = vadd.f32 %v2834, %v812
      %v2888 = vadd.f32 %v2836, %v813
      %v2889 = vadd.f32 %v2838, %v814
      %v2890 = vadd.f32 %v2842, %v815
      %v2891 = vadd.f32 %v2844, %v816
      %v2892 = vadd.f32 %v2846, %v817
      %v2893 = vadd.f32 %v2848, %v818
      %v2894 = vadd.f32 %v2852, %v819
      %v2895 = vadd.f32 %v2854, %v820
      %v2896 = vadd.f32 %v2856, %v821
      %v2897 = vadd.f32 %v2858, %v822
      %v2898 = vadd.f32 %v2862, %v823
      %v2899 = vadd.f32 %v2864, %v824
      %v2900 = vadd.f32 %v2866, %v825
      %v2901 = vadd.f32 %v2868, %v826
      %v2902 = vld [vmem:[%s674] sm:$0x3]
      %v2903 = vld [vmem:[%s678] sm:$0x3]
      %v2904 = vadd.f32 %v2870, %v2871
      %2905 = vadd.xlane.f32.xlu0 %v2904
      %v2906 = vpop.xlane.xlu0 %2905
      %v2907 = vadd.f32 %v2872, %v2873
      %2908 = vadd.xlane.f32.xlu0 %v2907
      %v2909 = vpop.xlane.xlu0 %2908
      %v2910 = vadd.f32 %v2874, %v2875
      %2911 = vadd.xlane.f32.xlu0 %v2910
      %v2912 = vpop.xlane.xlu0 %2911
      %v2913 = vadd.f32 %v2876, %v2877
      %2914 = vadd.xlane.f32.xlu0 %v2913
      %v2915 = vpop.xlane.xlu0 %2914
      %v2916 = vadd.f32 %v2878, %v2879
      %2917 = vadd.xlane.f32.xlu0 %v2916
      %v2918 = vpop.xlane.xlu0 %2917
      %v2919 = vadd.f32 %v2880, %v2881
      %2920 = vadd.xlane.f32.xlu0 %v2919
      %v2921 = vpop.xlane.xlu0 %2920
      %v2922 = vadd.f32 %v2882, %v2883
      %2923 = vadd.xlane.f32.xlu0 %v2922
      %v2924 = vpop.xlane.xlu0 %2923
      %v2925 = vadd.f32 %v2884, %v2885
      %2926 = vadd.xlane.f32.xlu0 %v2925
      %v2927 = vpop.xlane.xlu0 %2926
      %v2928 = vadd.f32 %v2886, %v2887
      %2929 = vadd.xlane.f32.xlu0 %v2928
      %v2930 = vpop.xlane.xlu0 %2929
      %v2931 = vadd.f32 %v2888, %v2889
      %2932 = vadd.xlane.f32.xlu0 %v2931
      %v2933 = vpop.xlane.xlu0 %2932
      %v2934 = vadd.f32 %v2890, %v2891
      %2935 = vadd.xlane.f32.xlu0 %v2934
      %v2936 = vpop.xlane.xlu0 %2935
      %v2937 = vadd.f32 %v2892, %v2893
      %2938 = vadd.xlane.f32.xlu0 %v2937
      %v2939 = vpop.xlane.xlu0 %2938
      %v2940 = vadd.f32 %v2894, %v2895
      %2941 = vadd.xlane.f32.xlu0 %v2940
      %v2942 = vpop.xlane.xlu0 %2941
      %v2943 = vadd.f32 %v2896, %v2897
      %2944 = vadd.xlane.f32.xlu0 %v2943
      %v2945 = vpop.xlane.xlu0 %2944
      %v2946 = vadd.f32 %v2898, %v2899
      %2947 = vadd.xlane.f32.xlu0 %v2946
      %v2948 = vpop.xlane.xlu0 %2947
      %v2949 = vadd.f32 %v2900, %v2901
      %2950 = vadd.xlane.f32.xlu0 %v2949
      %v2951 = vpop.xlane.xlu0 %2950
      %v2952 = vrcp.pop 256.0
      %v2953 = vmul.f32 %v2906, %v2952
      %v2954 = vmul.f32 %v2909, %v2952
      %v2955 = vmul.f32 %v2912, %v2952
      %v2956 = vmul.f32 %v2915, %v2952
      %v2957 = vmul.f32 %v2918, %v2952
      %v2958 = vmul.f32 %v2921, %v2952
      %v2959 = vmul.f32 %v2924, %v2952
      %v2960 = vmul.f32 %v2927, %v2952
      %v2961 = vmul.f32 %v2930, %v2952
      %v2962 = vmul.f32 %v2933, %v2952
      %v2963 = vmul.f32 %v2936, %v2952
      %v2964 = vmul.f32 %v2939, %v2952
      %v2965 = vmul.f32 %v2942, %v2952
      %v2966 = vmul.f32 %v2945, %v2952
      %v2967 = vmul.f32 %v2948, %v2952
      %v2968 = vmul.f32 %v2951, %v2952
      %v2969 = vsub.f32 %v2870, %v2953
      %v2970 = vsub.f32 %v2871, %v2953
      %v2971 = vsub.f32 %v2872, %v2954
      %v2972 = vsub.f32 %v2873, %v2954
      %v2973 = vsub.f32 %v2874, %v2955
      %v2974 = vsub.f32 %v2875, %v2955
      %v2975 = vsub.f32 %v2876, %v2956
      %v2976 = vsub.f32 %v2877, %v2956
      %v2977 = vsub.f32 %v2878, %v2957
      %v2978 = vsub.f32 %v2879, %v2957
      %v2979 = vsub.f32 %v2880, %v2958
      %v2980 = vsub.f32 %v2881, %v2958
      %v2981 = vsub.f32 %v2882, %v2959
      %v2982 = vsub.f32 %v2883, %v2959
      %v2983 = vsub.f32 %v2884, %v2960
      %v2984 = vsub.f32 %v2885, %v2960
      %v2985 = vsub.f32 %v2886, %v2961
      %v2986 = vsub.f32 %v2887, %v2961
      %v2987 = vsub.f32 %v2888, %v2962
      %v2988 = vsub.f32 %v2889, %v2962
      %v2989 = vsub.f32 %v2890, %v2963
      %v2990 = vsub.f32 %v2891, %v2963
      %v2991 = vsub.f32 %v2892, %v2964
      %v2992 = vsub.f32 %v2893, %v2964
      %v2993 = vsub.f32 %v2894, %v2965
      %v2994 = vsub.f32 %v2895, %v2965
      %v2995 = vsub.f32 %v2896, %v2966
      %v2996 = vsub.f32 %v2897, %v2966
      %v2997 = vsub.f32 %v2898, %v2967
      %v2998 = vsub.f32 %v2899, %v2967
      %v2999 = vsub.f32 %v2900, %v2968
      %v3000 = vsub.f32 %v2901, %v2968
      %v3001 = vmul.f32 %v2969, %v2969
      %v3002 = vmul.f32 %v2970, %v2970
      %v3003 = vmul.f32 %v2971, %v2971
      %v3004 = vmul.f32 %v2972, %v2972
      %v3005 = vmul.f32 %v2973, %v2973
      %v3006 = vmul.f32 %v2974, %v2974
      %v3007 = vmul.f32 %v2975, %v2975
      %v3008 = vmul.f32 %v2976, %v2976
      %v3009 = vmul.f32 %v2977, %v2977
      %v3010 = vmul.f32 %v2978, %v2978
      %v3011 = vmul.f32 %v2979, %v2979
      %v3012 = vmul.f32 %v2980, %v2980
      %v3013 = vmul.f32 %v2981, %v2981
      %v3014 = vmul.f32 %v2982, %v2982
      %v3015 = vmul.f32 %v2983, %v2983
      %v3016 = vmul.f32 %v2984, %v2984
      %v3017 = vmul.f32 %v2985, %v2985
      %v3018 = vmul.f32 %v2986, %v2986
      %v3019 = vmul.f32 %v2987, %v2987
      %v3020 = vmul.f32 %v2988, %v2988
      %v3021 = vmul.f32 %v2989, %v2989
      %v3022 = vmul.f32 %v2990, %v2990
      %v3023 = vmul.f32 %v2991, %v2991
      %v3024 = vmul.f32 %v2992, %v2992
      %v3025 = vmul.f32 %v2993, %v2993
      %v3026 = vmul.f32 %v2994, %v2994
      %v3027 = vmul.f32 %v2995, %v2995
      %v3028 = vmul.f32 %v2996, %v2996
      %v3029 = vmul.f32 %v2997, %v2997
      %v3030 = vmul.f32 %v2998, %v2998
      %v3031 = vmul.f32 %v2999, %v2999
      %v3032 = vmul.f32 %v3000, %v3000
      %v3033 = vadd.f32 %v3001, %v3002
      %3034 = vadd.xlane.f32.xlu0 %v3033
      %v3035 = vpop.xlane.xlu0 %3034
      %v3036 = vadd.f32 %v3003, %v3004
      %3037 = vadd.xlane.f32.xlu0 %v3036
      %v3038 = vpop.xlane.xlu0 %3037
      %v3039 = vadd.f32 %v3005, %v3006
      %3040 = vadd.xlane.f32.xlu0 %v3039
      %v3041 = vpop.xlane.xlu0 %3040
      %v3042 = vadd.f32 %v3007, %v3008
      %3043 = vadd.xlane.f32.xlu0 %v3042
      %v3044 = vpop.xlane.xlu0 %3043
      %v3045 = vadd.f32 %v3009, %v3010
      %3046 = vadd.xlane.f32.xlu0 %v3045
      %v3047 = vpop.xlane.xlu0 %3046
      %v3048 = vadd.f32 %v3011, %v3012
      %3049 = vadd.xlane.f32.xlu0 %v3048
      %v3050 = vpop.xlane.xlu0 %3049
      %v3051 = vadd.f32 %v3013, %v3014
      %3052 = vadd.xlane.f32.xlu0 %v3051
      %v3053 = vpop.xlane.xlu0 %3052
      %v3054 = vadd.f32 %v3015, %v3016
      %3055 = vadd.xlane.f32.xlu0 %v3054
      %v3056 = vpop.xlane.xlu0 %3055
      %v3057 = vadd.f32 %v3017, %v3018
      %3058 = vadd.xlane.f32.xlu0 %v3057
      %v3059 = vpop.xlane.xlu0 %3058
      %v3060 = vadd.f32 %v3019, %v3020
      %3061 = vadd.xlane.f32.xlu0 %v3060
      %v3062 = vpop.xlane.xlu0 %3061
      %v3063 = vadd.f32 %v3021, %v3022
      %3064 = vadd.xlane.f32.xlu0 %v3063
      %v3065 = vpop.xlane.xlu0 %3064
      %v3066 = vadd.f32 %v3023, %v3024
      %3067 = vadd.xlane.f32.xlu0 %v3066
      %v3068 = vpop.xlane.xlu0 %3067
      %v3069 = vadd.f32 %v3025, %v3026
      %3070 = vadd.xlane.f32.xlu0 %v3069
      %v3071 = vpop.xlane.xlu0 %3070
      %v3072 = vadd.f32 %v3027, %v3028
      %3073 = vadd.xlane.f32.xlu0 %v3072
      %v3074 = vpop.xlane.xlu0 %3073
      %v3075 = vadd.f32 %v3029, %v3030
      %3076 = vadd.xlane.f32.xlu0 %v3075
      %v3077 = vpop.xlane.xlu0 %3076
      %v3078 = vadd.f32 %v3031, %v3032
      %3079 = vadd.xlane.f32.xlu0 %v3078
      %v3080 = vpop.xlane.xlu0 %3079
      %v3081 = vmul.f32 %v3035, %v2952
      %v3082 = vmul.f32 %v3038, %v2952
      %v3083 = vmul.f32 %v3041, %v2952
      %v3084 = vmul.f32 %v3044, %v2952
      %v3085 = vmul.f32 %v3047, %v2952
      %v3086 = vmul.f32 %v3050, %v2952
      %v3087 = vmul.f32 %v3053, %v2952
      %v3088 = vmul.f32 %v3056, %v2952
      %v3089 = vmul.f32 %v3059, %v2952
      %v3090 = vmul.f32 %v3062, %v2952
      %v3091 = vmul.f32 %v3065, %v2952
      %v3092 = vmul.f32 %v3068, %v2952
      %v3093 = vmul.f32 %v3071, %v2952
      %v3094 = vmul.f32 %v3074, %v2952
      %v3095 = vmul.f32 %v3077, %v2952
      %v3096 = vmul.f32 %v3080, %v2952
      %v3097 = vadd.f32 %v3081, 1e-12
      %v3098 = vadd.f32 %v3082, 1e-12
      %v3099 = vadd.f32 %v3083, 1e-12
      %v3100 = vadd.f32 %v3084, 1e-12
      %v3101 = vadd.f32 %v3085, 1e-12
      %v3102 = vadd.f32 %v3086, 1e-12
      %v3103 = vadd.f32 %v3087, 1e-12
      %v3104 = vadd.f32 %v3088, 1e-12
      %v3105 = vadd.f32 %v3089, 1e-12
      %v3106 = vadd.f32 %v3090, 1e-12
      %v3107 = vadd.f32 %v3091, 1e-12
      %v3108 = vadd.f32 %v3092, 1e-12
      %v3109 = vadd.f32 %v3093, 1e-12
      %v3110 = vadd.f32 %v3094, 1e-12
      %v3111 = vadd.f32 %v3095, 1e-12
      %v3112 = vadd.f32 %v3096, 1e-12
      %v3113 = vrsqrt.pop %v3097
      %v3114 = vrsqrt.pop %v3098
      %v3115 = vrsqrt.pop %v3099
      %v3116 = vrsqrt.pop %v3100
      %v3117 = vrsqrt.pop %v3101
      %v3118 = vrsqrt.pop %v3102
      %v3119 = vrsqrt.pop %v3103
      %v3120 = vrsqrt.pop %v3104
      %v3121 = vrsqrt.pop %v3105
      %v3122 = vrsqrt.pop %v3106
      %v3123 = vrsqrt.pop %v3107
      %v3124 = vrsqrt.pop %v3108
      %v3125 = vrsqrt.pop %v3109
      %v3126 = vrsqrt.pop %v3110
      %v3127 = vrsqrt.pop %v3111
      %v3128 = vrsqrt.pop %v3112
      %v3129 = vmul.f32 %v2969, %v3113
      %v3130 = vmul.f32 %v2970, %v3113
      %v3131 = vmul.f32 %v2971, %v3114
      %v3132 = vmul.f32 %v2972, %v3114
      %v3133 = vmul.f32 %v2973, %v3115
      %v3134 = vmul.f32 %v2974, %v3115
      %v3135 = vmul.f32 %v2975, %v3116
      %v3136 = vmul.f32 %v2976, %v3116
      %v3137 = vmul.f32 %v2977, %v3117
      %v3138 = vmul.f32 %v2978, %v3117
      %v3139 = vmul.f32 %v2979, %v3118
      %v3140 = vmul.f32 %v2980, %v3118
      %v3141 = vmul.f32 %v2981, %v3119
      %v3142 = vmul.f32 %v2982, %v3119
      %v3143 = vmul.f32 %v2983, %v3120
      %v3144 = vmul.f32 %v2984, %v3120
      %v3145 = vmul.f32 %v2985, %v3121
      %v3146 = vmul.f32 %v2986, %v3121
      %v3147 = vmul.f32 %v2987, %v3122
      %v3148 = vmul.f32 %v2988, %v3122
      %v3149 = vmul.f32 %v2989, %v3123
      %v3150 = vmul.f32 %v2990, %v3123
      %v3151 = vmul.f32 %v2991, %v3124
      %v3152 = vmul.f32 %v2992, %v3124
      %v3153 = vmul.f32 %v2993, %v3125
      %v3154 = vmul.f32 %v2994, %v3125
      %v3155 = vmul.f32 %v2995, %v3126
      %v3156 = vmul.f32 %v2996, %v3126
      %v3157 = vmul.f32 %v2997, %v3127
      %v3158 = vmul.f32 %v2998, %v3127
      %v3159 = vmul.f32 %v2999, %v3128
      %v3160 = vmul.f32 %v3000, %v3128
      %v3162 = vlaneseq
      %v3163 = vshrl.u32 %v3162, 7
      %v3164 = vsub.s32 0, %v3163
      %v3165 = vrot.slane %v2902, %v3164
      %v3166 = vlaneseq
      %v3167 = vshrl.u32 %v3166, 7
      %v3168 = vsub.s32 1, %v3167
      %v3169 = vrot.slane %v2902, %v3168
      %v3172 = vmul.f32 %v3129, %v3165
      %v3173 = vmul.f32 %v3130, %v3169
      %v3174 = vmul.f32 %v3131, %v3165
      %v3175 = vmul.f32 %v3132, %v3169
      %v3176 = vmul.f32 %v3133, %v3165
      %v3177 = vmul.f32 %v3134, %v3169
      %v3178 = vmul.f32 %v3135, %v3165
      %v3179 = vmul.f32 %v3136, %v3169
      %v3180 = vmul.f32 %v3137, %v3165
      %v3181 = vmul.f32 %v3138, %v3169
      %v3182 = vmul.f32 %v3139, %v3165
      %v3183 = vmul.f32 %v3140, %v3169
      %v3184 = vmul.f32 %v3141, %v3165
      %v3185 = vmul.f32 %v3142, %v3169
      %v3186 = vmul.f32 %v3143, %v3165
      %v3187 = vmul.f32 %v3144, %v3169
      %v3188 = vmul.f32 %v3145, %v3165
      %v3189 = vmul.f32 %v3146, %v3169
      %v3190 = vmul.f32 %v3147, %v3165
      %v3191 = vmul.f32 %v3148, %v3169
      %v3192 = vmul.f32 %v3149, %v3165
      %v3193 = vmul.f32 %v3150, %v3169
      %v3194 = vmul.f32 %v3151, %v3165
      %v3195 = vmul.f32 %v3152, %v3169
      %v3196 = vmul.f32 %v3153, %v3165
      %v3197 = vmul.f32 %v3154, %v3169
      %v3198 = vmul.f32 %v3155, %v3165
      %v3199 = vmul.f32 %v3156, %v3169
      %v3200 = vmul.f32 %v3157, %v3165
      %v3201 = vmul.f32 %v3158, %v3169
      %v3202 = vmul.f32 %v3159, %v3165
      %v3203 = vmul.f32 %v3160, %v3169
      %v3205 = vlaneseq
      %v3206 = vshrl.u32 %v3205, 7
      %v3207 = vsub.s32 0, %v3206
      %v3208 = vrot.slane %v2903, %v3207
      %v3209 = vlaneseq
      %v3210 = vshrl.u32 %v3209, 7
      %v3211 = vsub.s32 1, %v3210
      %v3212 = vrot.slane %v2903, %v3211
      %v3215 = vadd.f32 %v3172, %v3208
      %v3216 = vadd.f32 %v3173, %v3212
      %v3217 = vadd.f32 %v3174, %v3208
      %v3218 = vadd.f32 %v3175, %v3212
      %v3219 = vadd.f32 %v3176, %v3208
      %v3220 = vadd.f32 %v3177, %v3212
      %v3221 = vadd.f32 %v3178, %v3208
      %v3222 = vadd.f32 %v3179, %v3212
      %v3223 = vadd.f32 %v3180, %v3208
      %v3224 = vadd.f32 %v3181, %v3212
      %v3225 = vadd.f32 %v3182, %v3208
      %v3226 = vadd.f32 %v3183, %v3212
      %v3227 = vadd.f32 %v3184, %v3208
      %v3228 = vadd.f32 %v3185, %v3212
      %v3229 = vadd.f32 %v3186, %v3208
      %v3230 = vadd.f32 %v3187, %v3212
      %v3231 = vadd.f32 %v3188, %v3208
      %v3232 = vadd.f32 %v3189, %v3212
      %v3233 = vadd.f32 %v3190, %v3208
      %v3234 = vadd.f32 %v3191, %v3212
      %v3235 = vadd.f32 %v3192, %v3208
      %v3236 = vadd.f32 %v3193, %v3212
      %v3237 = vadd.f32 %v3194, %v3208
      %v3238 = vadd.f32 %v3195, %v3212
      %v3239 = vadd.f32 %v3196, %v3208
      %v3240 = vadd.f32 %v3197, %v3212
      %v3241 = vadd.f32 %v3198, %v3208
      %v3242 = vadd.f32 %v3199, %v3212
      %v3243 = vadd.f32 %v3200, %v3208
      %v3244 = vadd.f32 %v3201, %v3212
      %v3245 = vadd.f32 %v3202, %v3208
      %v3246 = vadd.f32 %v3203, %v3212
      %v3247 = vpack.c.bf16 %v3217, %v3215
      %v3248 = vpack.c.bf16 %v3218, %v3216
      %v3249 = vpack.c.bf16 %v3221, %v3219
      %v3250 = vpack.c.bf16 %v3222, %v3220
      %v3251 = vpack.c.bf16 %v3225, %v3223
      %v3252 = vpack.c.bf16 %v3226, %v3224
      %v3253 = vpack.c.bf16 %v3229, %v3227
      %v3254 = vpack.c.bf16 %v3230, %v3228
      %v3255 = vpack.c.bf16 %v3233, %v3231
      %v3256 = vpack.c.bf16 %v3234, %v3232
      %v3257 = vpack.c.bf16 %v3237, %v3235
      %v3258 = vpack.c.bf16 %v3238, %v3236
      %v3259 = vpack.c.bf16 %v3241, %v3239
      %v3260 = vpack.c.bf16 %v3242, %v3240
      %v3261 = vpack.c.bf16 %v3245, %v3243
      %v3262 = vpack.c.bf16 %v3246, %v3244
      %v3263 = vld [vmem:[%s683] sm:$0xff]
      %v3264 = vld [vmem:[%s683 + $0x8] sm:$0xff]
      %v3265 = vld [vmem:[%s683 + $0x10] sm:$0xff]
      %v3266 = vld [vmem:[%s683 + $0x18] sm:$0xff]
      %v3267 = vld [vmem:[%s683 + $0x20] sm:$0xff]
      %v3268 = vld [vmem:[%s683 + $0x28] sm:$0xff]
      %v3269 = vld [vmem:[%s683 + $0x30] sm:$0xff]
      %v3270 = vld [vmem:[%s683 + $0x38] sm:$0xff]
      %v3271 = vld [vmem:[%s683 + $0x40] sm:$0xff]
      %v3272 = vld [vmem:[%s683 + $0x48] sm:$0xff]
      %v3273 = vld [vmem:[%s683 + $0x50] sm:$0xff]
      %v3274 = vld [vmem:[%s683 + $0x58] sm:$0xff]
      %v3275 = vld [vmem:[%s683 + $0x60] sm:$0xff]
      %v3276 = vld [vmem:[%s683 + $0x68] sm:$0xff]
      %v3277 = vld [vmem:[%s683 + $0x70] sm:$0xff]
      %v3278 = vld [vmem:[%s683 + $0x78] sm:$0xff]
      %v3279 = vld [vmem:[%s683 + $0x80] sm:$0xff]
      %v3280 = vld [vmem:[%s683 + $0x88] sm:$0xff]
      %v3281 = vld [vmem:[%s683 + $0x90] sm:$0xff]
      %v3282 = vld [vmem:[%s683 + $0x98] sm:$0xff]
      %v3283 = vld [vmem:[%s683 + $0xa0] sm:$0xff]
      %v3284 = vld [vmem:[%s683 + $0xa8] sm:$0xff]
      %v3285 = vld [vmem:[%s683 + $0xb0] sm:$0xff]
      %v3286 = vld [vmem:[%s683 + $0xb8] sm:$0xff]
      %v3287 = vld [vmem:[%s683 + $0xc0] sm:$0xff]
      %v3288 = vld [vmem:[%s683 + $0xc8] sm:$0xff]
      %v3289 = vld [vmem:[%s683 + $0xd0] sm:$0xff]
      %v3290 = vld [vmem:[%s683 + $0xd8] sm:$0xff]
      %v3291 = vld [vmem:[%s683 + $0xe0] sm:$0xff]
      %v3292 = vld [vmem:[%s683 + $0xe8] sm:$0xff]
      %v3293 = vld [vmem:[%s683 + $0xf0] sm:$0xff]
      %v3294 = vld [vmem:[%s683 + $0xf8] sm:$0xff]
      %v3295 = vld [vmem:[%s683 + $0x100] sm:$0xff]
      %v3296 = vld [vmem:[%s683 + $0x108] sm:$0xff]
      %v3297 = vld [vmem:[%s683 + $0x110] sm:$0xff]
      %v3298 = vld [vmem:[%s683 + $0x118] sm:$0xff]
      %v3299 = vld [vmem:[%s683 + $0x120] sm:$0xff]
      %v3300 = vld [vmem:[%s683 + $0x128] sm:$0xff]
      %v3301 = vld [vmem:[%s683 + $0x130] sm:$0xff]
      %v3302 = vld [vmem:[%s683 + $0x138] sm:$0xff]
      %v3303 = vld [vmem:[%s683 + $0x140] sm:$0xff]
      %v3304 = vld [vmem:[%s683 + $0x148] sm:$0xff]
      %v3305 = vld [vmem:[%s683 + $0x150] sm:$0xff]
      %v3306 = vld [vmem:[%s683 + $0x158] sm:$0xff]
      %v3307 = vld [vmem:[%s683 + $0x160] sm:$0xff]
      %v3308 = vld [vmem:[%s683 + $0x168] sm:$0xff]
      %v3309 = vld [vmem:[%s683 + $0x170] sm:$0xff]
      %v3310 = vld [vmem:[%s683 + $0x178] sm:$0xff]
      %v3311 = vld [vmem:[%s683 + $0x180] sm:$0xff]
      %v3312 = vld [vmem:[%s683 + $0x188] sm:$0xff]
      %v3313 = vld [vmem:[%s683 + $0x190] sm:$0xff]
      %v3314 = vld [vmem:[%s683 + $0x198] sm:$0xff]
      %v3315 = vld [vmem:[%s683 + $0x1a0] sm:$0xff]
      %v3316 = vld [vmem:[%s683 + $0x1a8] sm:$0xff]
      %v3317 = vld [vmem:[%s683 + $0x1b0] sm:$0xff]
      %v3318 = vld [vmem:[%s683 + $0x1b8] sm:$0xff]
      %v3319 = vld [vmem:[%s683 + $0x1c0] sm:$0xff]
      %v3320 = vld [vmem:[%s683 + $0x1c8] sm:$0xff]
      %v3321 = vld [vmem:[%s683 + $0x1d0] sm:$0xff]
      %v3322 = vld [vmem:[%s683 + $0x1d8] sm:$0xff]
      %v3323 = vld [vmem:[%s683 + $0x1e0] sm:$0xff]
      %v3324 = vld [vmem:[%s683 + $0x1e8] sm:$0xff]
      %v3325 = vld [vmem:[%s683 + $0x1f0] sm:$0xff]
      %v3326 = vld [vmem:[%s683 + $0x1f8] sm:$0xff]
      %v3327 = vld [vmem:[%s687] sm:$0xf]
      %v3329 = vlaneseq
      %v3330 = vshrl.u32 %v3329, 7
      %v3331 = vsub.s32 0, %v3330
      %v3332 = vrot.slane %v3327, %v3331
      %v3333 = vlaneseq
      %v3334 = vshrl.u32 %v3333, 7
      %v3335 = vsub.s32 1, %v3334
      %v3336 = vrot.slane %v3327, %v3335
      %v3337 = vlaneseq
      %v3338 = vshrl.u32 %v3337, 7
      %v3339 = vsub.s32 2, %v3338
      %v3340 = vrot.slane %v3327, %v3339
      %v3341 = vlaneseq
      %v3342 = vshrl.u32 %v3341, 7
      %v3343 = vsub.s32 3, %v3342
      %v3344 = vrot.slane %v3327, %v3343
      %v3413 = vunpack.c.l.b16 %v3263
      %v3414 = vunpack.c.h.b16 %v3263
      %v3415 = vunpack.c.l.b16 %v3264
      %v3416 = vunpack.c.h.b16 %v3264
      %v3417 = vunpack.c.l.b16 %v3265
      %v3418 = vunpack.c.h.b16 %v3265
      %v3419 = vunpack.c.l.b16 %v3266
      %v3420 = vunpack.c.h.b16 %v3266
      %v3421 = vunpack.c.l.b16 %v3267
      %v3422 = vunpack.c.h.b16 %v3267
      %v3423 = vunpack.c.l.b16 %v3268
      %v3424 = vunpack.c.h.b16 %v3268
      %v3425 = vunpack.c.l.b16 %v3269
      %v3426 = vunpack.c.h.b16 %v3269
      %v3427 = vunpack.c.l.b16 %v3270
      %v3428 = vunpack.c.h.b16 %v3270
      %v3429 = vunpack.c.l.b16 %v3271
      %v3430 = vunpack.c.h.b16 %v3271
      %v3431 = vunpack.c.l.b16 %v3272
      %v3432 = vunpack.c.h.b16 %v3272
      %v3433 = vunpack.c.l.b16 %v3273
      %v3434 = vunpack.c.h.b16 %v3273
      %v3435 = vunpack.c.l.b16 %v3274
      %v3436 = vunpack.c.h.b16 %v3274
      %v3437 = vunpack.c.l.b16 %v3275
      %v3438 = vunpack.c.h.b16 %v3275
      %v3439 = vunpack.c.l.b16 %v3276
      %v3440 = vunpack.c.h.b16 %v3276
      %v3441 = vunpack.c.l.b16 %v3277
      %v3442 = vunpack.c.h.b16 %v3277
      %v3443 = vunpack.c.l.b16 %v3278
      %v3444 = vunpack.c.h.b16 %v3278
      %v3445 = vunpack.c.l.b16 %v3279
      %v3446 = vunpack.c.h.b16 %v3279
      %v3447 = vunpack.c.l.b16 %v3280
      %v3448 = vunpack.c.h.b16 %v3280
      %v3449 = vunpack.c.l.b16 %v3281
      %v3450 = vunpack.c.h.b16 %v3281
      %v3451 = vunpack.c.l.b16 %v3282
      %v3452 = vunpack.c.h.b16 %v3282
      %v3453 = vunpack.c.l.b16 %v3283
      %v3454 = vunpack.c.h.b16 %v3283
      %v3455 = vunpack.c.l.b16 %v3284
      %v3456 = vunpack.c.h.b16 %v3284
      %v3457 = vunpack.c.l.b16 %v3285
      %v3458 = vunpack.c.h.b16 %v3285
      %v3459 = vunpack.c.l.b16 %v3286
      %v3460 = vunpack.c.h.b16 %v3286
      %v3461 = vunpack.c.l.b16 %v3287
      %v3462 = vunpack.c.h.b16 %v3287
      %v3463 = vunpack.c.l.b16 %v3288
      %v3464 = vunpack.c.h.b16 %v3288
      %v3465 = vunpack.c.l.b16 %v3289
      %v3466 = vunpack.c.h.b16 %v3289
      %v3467 = vunpack.c.l.b16 %v3290
      %v3468 = vunpack.c.h.b16 %v3290
      %v3469 = vunpack.c.l.b16 %v3291
      %v3470 = vunpack.c.h.b16 %v3291
      %v3471 = vunpack.c.l.b16 %v3292
      %v3472 = vunpack.c.h.b16 %v3292
      %v3473 = vunpack.c.l.b16 %v3293
      %v3474 = vunpack.c.h.b16 %v3293
      %v3475 = vunpack.c.l.b16 %v3294
      %v3476 = vunpack.c.h.b16 %v3294
      %v3477 = vunpack.c.l.b16 %v3295
      %v3478 = vunpack.c.h.b16 %v3295
      %v3479 = vunpack.c.l.b16 %v3296
      %v3480 = vunpack.c.h.b16 %v3296
      %v3481 = vunpack.c.l.b16 %v3297
      %v3482 = vunpack.c.h.b16 %v3297
      %v3483 = vunpack.c.l.b16 %v3298
      %v3484 = vunpack.c.h.b16 %v3298
      %v3485 = vunpack.c.l.b16 %v3299
      %v3486 = vunpack.c.h.b16 %v3299
      %v3487 = vunpack.c.l.b16 %v3300
      %v3488 = vunpack.c.h.b16 %v3300
      %v3489 = vunpack.c.l.b16 %v3301
      %v3490 = vunpack.c.h.b16 %v3301
      %v3491 = vunpack.c.l.b16 %v3302
      %v3492 = vunpack.c.h.b16 %v3302
      %v3493 = vunpack.c.l.b16 %v3303
      %v3494 = vunpack.c.h.b16 %v3303
      %v3495 = vunpack.c.l.b16 %v3304
      %v3496 = vunpack.c.h.b16 %v3304
      %v3497 = vunpack.c.l.b16 %v3305
      %v3498 = vunpack.c.h.b16 %v3305
      %v3499 = vunpack.c.l.b16 %v3306
      %v3500 = vunpack.c.h.b16 %v3306
      %v3501 = vunpack.c.l.b16 %v3307
      %v3502 = vunpack.c.h.b16 %v3307
      %v3503 = vunpack.c.l.b16 %v3308
      %v3504 = vunpack.c.h.b16 %v3308
      %v3505 = vunpack.c.l.b16 %v3309
      %v3506 = vunpack.c.h.b16 %v3309
      %v3507 = vunpack.c.l.b16 %v3310
      %v3508 = vunpack.c.h.b16 %v3310
      %v3509 = vunpack.c.l.b16 %v3311
      %v3510 = vunpack.c.h.b16 %v3311
      %v3511 = vunpack.c.l.b16 %v3312
      %v3512 = vunpack.c.h.b16 %v3312
      %v3513 = vunpack.c.l.b16 %v3313
      %v3514 = vunpack.c.h.b16 %v3313
      %v3515 = vunpack.c.l.b16 %v3314
      %v3516 = vunpack.c.h.b16 %v3314
      %v3517 = vunpack.c.l.b16 %v3315
      %v3518 = vunpack.c.h.b16 %v3315
      %v3519 = vunpack.c.l.b16 %v3316
      %v3520 = vunpack.c.h.b16 %v3316
      %v3521 = vunpack.c.l.b16 %v3317
      %v3522 = vunpack.c.h.b16 %v3317
      %v3523 = vunpack.c.l.b16 %v3318
      %v3524 = vunpack.c.h.b16 %v3318
      %v3525 = vunpack.c.l.b16 %v3319
      %v3526 = vunpack.c.h.b16 %v3319
      %v3527 = vunpack.c.l.b16 %v3320
      %v3528 = vunpack.c.h.b16 %v3320
      %v3529 = vunpack.c.l.b16 %v3321
      %v3530 = vunpack.c.h.b16 %v3321
      %v3531 = vunpack.c.l.b16 %v3322
      %v3532 = vunpack.c.h.b16 %v3322
      %v3533 = vunpack.c.l.b16 %v3323
      %v3534 = vunpack.c.h.b16 %v3323
      %v3535 = vunpack.c.l.b16 %v3324
      %v3536 = vunpack.c.h.b16 %v3324
      %v3537 = vunpack.c.l.b16 %v3325
      %v3538 = vunpack.c.h.b16 %v3325
      %v3539 = vunpack.c.l.b16 %v3326
      %v3540 = vunpack.c.h.b16 %v3326
      %v3541 = vpack.c.b16 %v3417, %v3413
      %v3542 = vpack.c.b16 %v3418, %v3414
      %v3543 = vpack.c.b16 %v3419, %v3415
      %v3544 = vpack.c.b16 %v3420, %v3416
      %v3545 = vpack.c.b16 %v3425, %v3421
      %v3546 = vpack.c.b16 %v3426, %v3422
      %v3547 = vpack.c.b16 %v3427, %v3423
      %v3548 = vpack.c.b16 %v3428, %v3424
      %v3549 = vpack.c.b16 %v3433, %v3429
      %v3550 = vpack.c.b16 %v3434, %v3430
      %v3551 = vpack.c.b16 %v3435, %v3431
      %v3552 = vpack.c.b16 %v3436, %v3432
      %v3553 = vpack.c.b16 %v3441, %v3437
      %v3554 = vpack.c.b16 %v3442, %v3438
      %v3555 = vpack.c.b16 %v3443, %v3439
      %v3556 = vpack.c.b16 %v3444, %v3440
      %v3557 = vpack.c.b16 %v3449, %v3445
      %v3558 = vpack.c.b16 %v3450, %v3446
      %v3559 = vpack.c.b16 %v3451, %v3447
      %v3560 = vpack.c.b16 %v3452, %v3448
      %v3561 = vpack.c.b16 %v3457, %v3453
      %v3562 = vpack.c.b16 %v3458, %v3454
      %v3563 = vpack.c.b16 %v3459, %v3455
      %v3564 = vpack.c.b16 %v3460, %v3456
      %v3565 = vpack.c.b16 %v3465, %v3461
      %v3566 = vpack.c.b16 %v3466, %v3462
      %v3567 = vpack.c.b16 %v3467, %v3463
      %v3568 = vpack.c.b16 %v3468, %v3464
      %v3569 = vpack.c.b16 %v3473, %v3469
      %v3570 = vpack.c.b16 %v3474, %v3470
      %v3571 = vpack.c.b16 %v3475, %v3471
      %v3572 = vpack.c.b16 %v3476, %v3472
      %v3573 = vpack.c.b16 %v3481, %v3477
      %v3574 = vpack.c.b16 %v3482, %v3478
      %v3575 = vpack.c.b16 %v3483, %v3479
      %v3576 = vpack.c.b16 %v3484, %v3480
      %v3577 = vpack.c.b16 %v3489, %v3485
      %v3578 = vpack.c.b16 %v3490, %v3486
      %v3579 = vpack.c.b16 %v3491, %v3487
      %v3580 = vpack.c.b16 %v3492, %v3488
      %v3581 = vpack.c.b16 %v3497, %v3493
      %v3582 = vpack.c.b16 %v3498, %v3494
      %v3583 = vpack.c.b16 %v3499, %v3495
      %v3584 = vpack.c.b16 %v3500, %v3496
      %v3585 = vpack.c.b16 %v3505, %v3501
      %v3586 = vpack.c.b16 %v3506, %v3502
      %v3587 = vpack.c.b16 %v3507, %v3503
      %v3588 = vpack.c.b16 %v3508, %v3504
      %v3589 = vpack.c.b16 %v3513, %v3509
      %v3590 = vpack.c.b16 %v3514, %v3510
      %v3591 = vpack.c.b16 %v3515, %v3511
      %v3592 = vpack.c.b16 %v3516, %v3512
      %v3593 = vpack.c.b16 %v3521, %v3517
      %v3594 = vpack.c.b16 %v3522, %v3518
      %v3595 = vpack.c.b16 %v3523, %v3519
      %v3596 = vpack.c.b16 %v3524, %v3520
      %v3597 = vpack.c.b16 %v3529, %v3525
      %v3598 = vpack.c.b16 %v3530, %v3526
      %v3599 = vpack.c.b16 %v3531, %v3527
      %v3600 = vpack.c.b16 %v3532, %v3528
      %v3601 = vpack.c.b16 %v3537, %v3533
      %v3602 = vpack.c.b16 %v3538, %v3534
      %v3603 = vpack.c.b16 %v3539, %v3535
      %v3604 = vpack.c.b16 %v3540, %v3536
      %3669 = vmatprep.subr.bf16.mxu0 %v3542
      %3670 = vmatpush1.bf16.msra.mxu0 %v3541
      %3671 = vmatprep.subr.bf16.mxu0 %v3546
      %3672 = vmatpush1.bf16.msra.mxu0 %v3545
      %3673 = vmatprep.subr.bf16.mxu0 %v3550
      %3674 = vmatpush1.bf16.msra.mxu0 %v3549
      %3675 = vmatprep.subr.bf16.mxu0 %v3554
      %3676 = vmatpush1.bf16.msra.mxu0 %v3553
      %3677 = vmatprep.subr.bf16.mxu0 %v3558
      %3678 = vmatpush1.bf16.msra.mxu0 %v3557
      %3679 = vmatprep.subr.bf16.mxu0 %v3562
      %3680 = vmatpush1.bf16.msra.mxu0 %v3561
      %3681 = vmatprep.subr.bf16.mxu0 %v3566
      %3682 = vmatpush1.bf16.msra.mxu0 %v3565
      %3683 = vmatprep.subr.bf16.mxu0 %v3570
      %3684 = vmatpush1.bf16.msra.mxu0 %v3569
      %3685 = vmatprep.subr.bf16.mxu0 %v3574
      %3686 = vmatpush1.bf16.msra.mxu0 %v3573
      %3687 = vmatprep.subr.bf16.mxu0 %v3578
      %3688 = vmatpush1.bf16.msra.mxu0 %v3577
      %3689 = vmatprep.subr.bf16.mxu0 %v3582
      %3690 = vmatpush1.bf16.msra.mxu0 %v3581
      %3691 = vmatprep.subr.bf16.mxu0 %v3586
      %3692 = vmatpush1.bf16.msra.mxu0 %v3585
      %3693 = vmatprep.subr.bf16.mxu0 %v3590
      %3694 = vmatpush1.bf16.msra.mxu0 %v3589
      %3695 = vmatprep.subr.bf16.mxu0 %v3594
      %3696 = vmatpush1.bf16.msra.mxu0 %v3593
      %3697 = vmatprep.subr.bf16.mxu0 %v3598
      %3698 = vmatpush1.bf16.msra.mxu0 %v3597
      %3699 = vmatprep.subr.bf16.mxu0 %v3602
      %3700 = vmatpush1.bf16.msra.mxu0 %v3601
      %3701 = vmatprep.mubr.bf16.mxu0 %v3248
      %3702 = vmatmul.mubr.bf16.gmra.mrb[0].mxu0 %v3247
      %v3703 = vpop.f32.mrb[0].mxu0
      %v3704 = vadd.f32 %v3332, %v3703
      %v3705 = vpop.f32.mrb[0].mxu0
      %v3706 = vadd.f32 %v3336, %v3705
      %v3707 = vpop.f32.mrb[0].mxu0
      %v3708 = vadd.f32 %v3332, %v3707
      %v3709 = vpop.f32.mrb[0].mxu0
      %v3710 = vadd.f32 %v3336, %v3709
      %3711 = vmatprep.mubr.bf16.mxu0 %v3250
      %3712 = vmatmul.mubr.bf16.gmra.mrb[0].mxu0 %v3249
      %v3713 = vpop.f32.mrb[0].mxu0
      %v3714 = vadd.f32 %v3332, %v3713
      %v3715 = vpop.f32.mrb[0].mxu0
      %v3716 = vadd.f32 %v3336, %v3715
      %v3717 = vpop.f32.mrb[0].mxu0
      %v3718 = vadd.f32 %v3332, %v3717
      %v3719 = vpop.f32.mrb[0].mxu0
      %v3720 = vadd.f32 %v3336, %v3719
      %3721 = vmatprep.mubr.bf16.mxu0 %v3252
      %3722 = vmatmul.mubr.bf16.gmra.mrb[0].mxu0 %v3251
      %v3723 = vpop.f32.mrb[0].mxu0
      %v3724 = vadd.f32 %v3332, %v3723
      %v3725 = vpop.f32.mrb[0].mxu0
      %v3726 = vadd.f32 %v3336, %v3725
      %v3727 = vpop.f32.mrb[0].mxu0
      %v3728 = vadd.f32 %v3332, %v3727
      %v3729 = vpop.f32.mrb[0].mxu0
      %v3730 = vadd.f32 %v3336, %v3729
      %3731 = vmatprep.mubr.bf16.mxu0 %v3254
      %3732 = vmatmul.mubr.bf16.gmra.mrb[0].mxu0 %v3253
      %v3733 = vpop.f32.mrb[0].mxu0
      %v3734 = vadd.f32 %v3332, %v3733
      %v3735 = vpop.f32.mrb[0].mxu0
      %v3736 = vadd.f32 %v3336, %v3735
      %v3737 = vpop.f32.mrb[0].mxu0
      %v3738 = vadd.f32 %v3332, %v3737
      %v3739 = vpop.f32.mrb[0].mxu0
      %v3740 = vadd.f32 %v3336, %v3739
      %3741 = vmatprep.mubr.bf16.mxu0 %v3256
      %3742 = vmatmul.mubr.bf16.gmra.mrb[0].mxu0 %v3255
      %v3743 = vpop.f32.mrb[0].mxu0
      %v3744 = vadd.f32 %v3332, %v3743
      %v3745 = vpop.f32.mrb[0].mxu0
      %v3746 = vadd.f32 %v3336, %v3745
      %v3747 = vpop.f32.mrb[0].mxu0
      %v3748 = vadd.f32 %v3332, %v3747
      %v3749 = vpop.f32.mrb[0].mxu0
      %v3750 = vadd.f32 %v3336, %v3749
      %3751 = vmatprep.mubr.bf16.mxu0 %v3258
      %3752 = vmatmul.mubr.bf16.gmra.mrb[0].mxu0 %v3257
      %v3753 = vpop.f32.mrb[0].mxu0
      %v3754 = vadd.f32 %v3332, %v3753
      %v3755 = vpop.f32.mrb[0].mxu0
      %v3756 = vadd.f32 %v3336, %v3755
      %v3757 = vpop.f32.mrb[0].mxu0
      %v3758 = vadd.f32 %v3332, %v3757
      %v3759 = vpop.f32.mrb[0].mxu0
      %v3760 = vadd.f32 %v3336, %v3759
      %3761 = vmatprep.mubr.bf16.mxu0 %v3260
      %3762 = vmatmul.mubr.bf16.gmra.mrb[0].mxu0 %v3259
      %v3763 = vpop.f32.mrb[0].mxu0
      %v3764 = vadd.f32 %v3332, %v3763
      %v3765 = vpop.f32.mrb[0].mxu0
      %v3766 = vadd.f32 %v3336, %v3765
      %v3767 = vpop.f32.mrb[0].mxu0
      %v3768 = vadd.f32 %v3332, %v3767
      %v3769 = vpop.f32.mrb[0].mxu0
      %v3770 = vadd.f32 %v3336, %v3769
      %3771 = vmatprep.mubr.bf16.mxu0 %v3262
      %3772 = vmatmul.mubr.bf16.gmra.mrb[0].mxu0 %v3261
      %v3773 = vpop.f32.mrb[0].mxu0
      %v3774 = vadd.f32 %v3332, %v3773
      %v3775 = vpop.f32.mrb[0].mxu0
      %v3776 = vadd.f32 %v3336, %v3775
      %v3777 = vpop.f32.mrb[0].mxu0
      %v3778 = vadd.f32 %v3332, %v3777
      %v3779 = vpop.f32.mrb[0].mxu0
      %v3780 = vadd.f32 %v3336, %v3779
      %3781 = vdwg.mxu0
      %3782 = vmatprep.subr.bf16.mxu0 %v3544
      %3783 = vmatpush1.bf16.msra.mxu0 %v3543
      %3784 = vmatprep.subr.bf16.mxu0 %v3548
      %3785 = vmatpush1.bf16.msra.mxu0 %v3547
      %3786 = vmatprep.subr.bf16.mxu0 %v3552
      %3787 = vmatpush1.bf16.msra.mxu0 %v3551
      %3788 = vmatprep.subr.bf16.mxu0 %v3556
      %3789 = vmatpush1.bf16.msra.mxu0 %v3555
      %3790 = vmatprep.subr.bf16.mxu0 %v3560
      %3791 = vmatpush1.bf16.msra.mxu0 %v3559
      %3792 = vmatprep.subr.bf16.mxu0 %v3564
      %3793 = vmatpush1.bf16.msra.mxu0 %v3563
      %3794 = vmatprep.subr.bf16.mxu0 %v3568
      %3795 = vmatpush1.bf16.msra.mxu0 %v3567
      %3796 = vmatprep.subr.bf16.mxu0 %v3572
      %3797 = vmatpush1.bf16.msra.mxu0 %v3571
      %3798 = vmatprep.subr.bf16.mxu0 %v3576
      %3799 = vmatpush1.bf16.msra.mxu0 %v3575
      %3800 = vmatprep.subr.bf16.mxu0 %v3580
      %3801 = vmatpush1.bf16.msra.mxu0 %v3579
      %3802 = vmatprep.subr.bf16.mxu0 %v3584
      %3803 = vmatpush1.bf16.msra.mxu0 %v3583
      %3804 = vmatprep.subr.bf16.mxu0 %v3588
      %3805 = vmatpush1.bf16.msra.mxu0 %v3587
      %3806 = vmatprep.subr.bf16.mxu0 %v3592
      %3807 = vmatpush1.bf16.msra.mxu0 %v3591
      %3808 = vmatprep.subr.bf16.mxu0 %v3596
      %3809 = vmatpush1.bf16.msra.mxu0 %v3595
      %3810 = vmatprep.subr.bf16.mxu0 %v3600
      %3811 = vmatpush1.bf16.msra.mxu0 %v3599
      %3812 = vmatprep.subr.bf16.mxu0 %v3604
      %3813 = vmatpush1.bf16.msra.mxu0 %v3603
      %3814 = vmatprep.mubr.bf16.mxu0 %v3248
      %3815 = vmatmul.mubr.bf16.gmra.mrb[0].mxu0 %v3247
      %v3816 = vpop.f32.mrb[0].mxu0
      %v3817 = vadd.f32 %v3340, %v3816
      %v3818 = vpop.f32.mrb[0].mxu0
      %v3819 = vadd.f32 %v3344, %v3818
      %v3820 = vpop.f32.mrb[0].mxu0
      %v3821 = vadd.f32 %v3340, %v3820
      %v3822 = vpop.f32.mrb[0].mxu0
      %v3823 = vadd.f32 %v3344, %v3822
      %3824 = vmatprep.mubr.bf16.mxu0 %v3250
      %3825 = vmatmul.mubr.bf16.gmra.mrb[0].mxu0 %v3249
      %v3826 = vpop.f32.mrb[0].mxu0
      %v3827 = vadd.f32 %v3340, %v3826
      %v3828 = vpop.f32.mrb[0].mxu0
      %v3829 = vadd.f32 %v3344, %v3828
      %v3830 = vpop.f32.mrb[0].mxu0
      %v3831 = vadd.f32 %v3340, %v3830
      %v3832 = vpop.f32.mrb[0].mxu0
      %v3833 = vadd.f32 %v3344, %v3832
      %3834 = vmatprep.mubr.bf16.mxu0 %v3252
      %3835 = vmatmul.mubr.bf16.gmra.mrb[0].mxu0 %v3251
      %v3836 = vpop.f32.mrb[0].mxu0
      %v3837 = vadd.f32 %v3340, %v3836
      %v3838 = vpop.f32.mrb[0].mxu0
      %v3839 = vadd.f32 %v3344, %v3838
      %v3840 = vpop.f32.mrb[0].mxu0
      %v3841 = vadd.f32 %v3340, %v3840
      %v3842 = vpop.f32.mrb[0].mxu0
      %v3843 = vadd.f32 %v3344, %v3842
      %3844 = vmatprep.mubr.bf16.mxu0 %v3254
      %3845 = vmatmul.mubr.bf16.gmra.mrb[0].mxu0 %v3253
      %v3846 = vpop.f32.mrb[0].mxu0
      %v3847 = vadd.f32 %v3340, %v3846
      %v3848 = vpop.f32.mrb[0].mxu0
      %v3849 = vadd.f32 %v3344, %v3848
      %v3850 = vpop.f32.mrb[0].mxu0
      %v3851 = vadd.f32 %v3340, %v3850
      %v3852 = vpop.f32.mrb[0].mxu0
      %v3853 = vadd.f32 %v3344, %v3852
      %3854 = vmatprep.mubr.bf16.mxu0 %v3256
      %3855 = vmatmul.mubr.bf16.gmra.mrb[0].mxu0 %v3255
      %v3856 = vpop.f32.mrb[0].mxu0
      %v3857 = vadd.f32 %v3340, %v3856
      %v3858 = vpop.f32.mrb[0].mxu0
      %v3859 = vadd.f32 %v3344, %v3858
      %v3860 = vpop.f32.mrb[0].mxu0
      %v3861 = vadd.f32 %v3340, %v3860
      %v3862 = vpop.f32.mrb[0].mxu0
      %v3863 = vadd.f32 %v3344, %v3862
      %3864 = vmatprep.mubr.bf16.mxu0 %v3258
      %3865 = vmatmul.mubr.bf16.gmra.mrb[0].mxu0 %v3257
      %v3866 = vpop.f32.mrb[0].mxu0
      %v3867 = vadd.f32 %v3340, %v3866
      %v3868 = vpop.f32.mrb[0].mxu0
      %v3869 = vadd.f32 %v3344, %v3868
      %v3870 = vpop.f32.mrb[0].mxu0
      %v3871 = vadd.f32 %v3340, %v3870
      %v3872 = vpop.f32.mrb[0].mxu0
      %v3873 = vadd.f32 %v3344, %v3872
      %3874 = vmatprep.mubr.bf16.mxu0 %v3260
      %3875 = vmatmul.mubr.bf16.gmra.mrb[0].mxu0 %v3259
      %v3876 = vpop.f32.mrb[0].mxu0
      %v3877 = vadd.f32 %v3340, %v3876
      %v3878 = vpop.f32.mrb[0].mxu0
      %v3879 = vadd.f32 %v3344, %v3878
      %v3880 = vpop.f32.mrb[0].mxu0
      %v3881 = vadd.f32 %v3340, %v3880
      %v3882 = vpop.f32.mrb[0].mxu0
      %v3883 = vadd.f32 %v3344, %v3882
      %3884 = vmatprep.mubr.bf16.mxu0 %v3262
      %3885 = vmatmul.mubr.bf16.gmra.mrb[0].mxu0 %v3261
      %v3886 = vpop.f32.mrb[0].mxu0
      %v3887 = vadd.f32 %v3340, %v3886
      %v3888 = vpop.f32.mrb[0].mxu0
      %v3889 = vadd.f32 %v3344, %v3888
      %v3890 = vpop.f32.mrb[0].mxu0
      %v3891 = vadd.f32 %v3340, %v3890
      %v3892 = vpop.f32.mrb[0].mxu0
      %v3893 = vadd.f32 %v3344, %v3892
      %3894 = vdwg.mxu0
      %v3895 = vmul.f32 %v3704, %v3704
      %v3896 = vmul.f32 %v3706, %v3706
      %v3897 = vmul.f32 %v3817, %v3817
      %v3898 = vmul.f32 %v3819, %v3819
      %v3899 = vmul.f32 %v3708, %v3708
      %v3900 = vmul.f32 %v3710, %v3710
      %v3901 = vmul.f32 %v3821, %v3821
      %v3902 = vmul.f32 %v3823, %v3823
      %v3903 = vmul.f32 %v3714, %v3714
      %v3904 = vmul.f32 %v3716, %v3716
      %v3905 = vmul.f32 %v3827, %v3827
      %v3906 = vmul.f32 %v3829, %v3829
      %v3907 = vmul.f32 %v3718, %v3718
      %v3908 = vmul.f32 %v3720, %v3720
      %v3909 = vmul.f32 %v3831, %v3831
      %v3910 = vmul.f32 %v3833, %v3833
      %v3911 = vmul.f32 %v3724, %v3724
      %v3912 = vmul.f32 %v3726, %v3726
      %v3913 = vmul.f32 %v3837, %v3837
      %v3914 = vmul.f32 %v3839, %v3839
      %v3915 = vmul.f32 %v3728, %v3728
      %v3916 = vmul.f32 %v3730, %v3730
      %v3917 = vmul.f32 %v3841, %v3841
      %v3918 = vmul.f32 %v3843, %v3843
      %v3919 = vmul.f32 %v3734, %v3734
      %v3920 = vmul.f32 %v3736, %v3736
      %v3921 = vmul.f32 %v3847, %v3847
      %v3922 = vmul.f32 %v3849, %v3849
      %v3923 = vmul.f32 %v3738, %v3738
      %v3924 = vmul.f32 %v3740, %v3740
      %v3925 = vmul.f32 %v3851, %v3851
      %v3926 = vmul.f32 %v3853, %v3853
      %v3927 = vmul.f32 %v3744, %v3744
      %v3928 = vmul.f32 %v3746, %v3746
      %v3929 = vmul.f32 %v3857, %v3857
      %v3930 = vmul.f32 %v3859, %v3859
      %v3931 = vmul.f32 %v3748, %v3748
      %v3932 = vmul.f32 %v3750, %v3750
      %v3933 = vmul.f32 %v3861, %v3861
      %v3934 = vmul.f32 %v3863, %v3863
      %v3935 = vmul.f32 %v3754, %v3754
      %v3936 = vmul.f32 %v3756, %v3756
      %v3937 = vmul.f32 %v3867, %v3867
      %v3938 = vmul.f32 %v3869, %v3869
      %v3939 = vmul.f32 %v3758, %v3758
      %v3940 = vmul.f32 %v3760, %v3760
      %v3941 = vmul.f32 %v3871, %v3871
      %v3942 = vmul.f32 %v3873, %v3873
      %v3943 = vmul.f32 %v3764, %v3764
      %v3944 = vmul.f32 %v3766, %v3766
      %v3945 = vmul.f32 %v3877, %v3877
      %v3946 = vmul.f32 %v3879, %v3879
      %v3947 = vmul.f32 %v3768, %v3768
      %v3948 = vmul.f32 %v3770, %v3770
      %v3949 = vmul.f32 %v3881, %v3881
      %v3950 = vmul.f32 %v3883, %v3883
      %v3951 = vmul.f32 %v3774, %v3774
      %v3952 = vmul.f32 %v3776, %v3776
      %v3953 = vmul.f32 %v3887, %v3887
      %v3954 = vmul.f32 %v3889, %v3889
      %v3955 = vmul.f32 %v3778, %v3778
      %v3956 = vmul.f32 %v3780, %v3780
      %v3957 = vmul.f32 %v3891, %v3891
      %v3958 = vmul.f32 %v3893, %v3893
      %v3959 = vmul.f32 %v3704, %v3895
      %v3960 = vmul.f32 %v3706, %v3896
      %v3961 = vmul.f32 %v3817, %v3897
      %v3962 = vmul.f32 %v3819, %v3898
      %v3963 = vmul.f32 %v3708, %v3899
      %v3964 = vmul.f32 %v3710, %v3900
      %v3965 = vmul.f32 %v3821, %v3901
      %v3966 = vmul.f32 %v3823, %v3902
      %v3967 = vmul.f32 %v3714, %v3903
      %v3968 = vmul.f32 %v3716, %v3904
      %v3969 = vmul.f32 %v3827, %v3905
      %v3970 = vmul.f32 %v3829, %v3906
      %v3971 = vmul.f32 %v3718, %v3907
      %v3972 = vmul.f32 %v3720, %v3908
      %v3973 = vmul.f32 %v3831, %v3909
      %v3974 = vmul.f32 %v3833, %v3910
      %v3975 = vmul.f32 %v3724, %v3911
      %v3976 = vmul.f32 %v3726, %v3912
      %v3977 = vmul.f32 %v3837, %v3913
      %v3978 = vmul.f32 %v3839, %v3914
      %v3979 = vmul.f32 %v3728, %v3915
      %v3980 = vmul.f32 %v3730, %v3916
      %v3981 = vmul.f32 %v3841, %v3917
      %v3982 = vmul.f32 %v3843, %v3918
      %v3983 = vmul.f32 %v3734, %v3919
      %v3984 = vmul.f32 %v3736, %v3920
      %v3985 = vmul.f32 %v3847, %v3921
      %v3986 = vmul.f32 %v3849, %v3922
      %v3987 = vmul.f32 %v3738, %v3923
      %v3988 = vmul.f32 %v3740, %v3924
      %v3989 = vmul.f32 %v3851, %v3925
      %v3990 = vmul.f32 %v3853, %v3926
      %v3991 = vmul.f32 %v3744, %v3927
      %v3992 = vmul.f32 %v3746, %v3928
      %v3993 = vmul.f32 %v3857, %v3929
      %v3994 = vmul.f32 %v3859, %v3930
      %v3995 = vmul.f32 %v3748, %v3931
      %v3996 = vmul.f32 %v3750, %v3932
      %v3997 = vmul.f32 %v3861, %v3933
      %v3998 = vmul.f32 %v3863, %v3934
      %v3999 = vmul.f32 %v3754, %v3935
      %v4000 = vmul.f32 %v3756, %v3936
      %v4001 = vmul.f32 %v3867, %v3937
      %v4002 = vmul.f32 %v3869, %v3938
      %v4003 = vmul.f32 %v3758, %v3939
      %v4004 = vmul.f32 %v3760, %v3940
      %v4005 = vmul.f32 %v3871, %v3941
      %v4006 = vmul.f32 %v3873, %v3942
      %v4007 = vmul.f32 %v3764, %v3943
      %v4008 = vmul.f32 %v3766, %v3944
      %v4009 = vmul.f32 %v3877, %v3945
      %v4010 = vmul.f32 %v3879, %v3946
      %v4011 = vmul.f32 %v3768, %v3947
      %v4012 = vmul.f32 %v3770, %v3948
      %v4013 = vmul.f32 %v3881, %v3949
      %v4014 = vmul.f32 %v3883, %v3950
      %v4015 = vmul.f32 %v3774, %v3951
      %v4016 = vmul.f32 %v3776, %v3952
      %v4017 = vmul.f32 %v3887, %v3953
      %v4018 = vmul.f32 %v3889, %v3954
      %v4019 = vmul.f32 %v3778, %v3955
      %v4020 = vmul.f32 %v3780, %v3956
      %v4021 = vmul.f32 %v3891, %v3957
      %v4022 = vmul.f32 %v3893, %v3958
      %v4023 = vmul.f32 %v3959, 0.044715
      %v4024 = vmul.f32 %v3960, 0.044715
      %v4025 = vmul.f32 %v3961, 0.044715
      %v4026 = vmul.f32 %v3962, 0.044715
      %v4027 = vmul.f32 %v3963, 0.044715
      %v4028 = vmul.f32 %v3964, 0.044715
      %v4029 = vmul.f32 %v3965, 0.044715
      %v4030 = vmul.f32 %v3966, 0.044715
      %v4031 = vmul.f32 %v3967, 0.044715
      %v4032 = vmul.f32 %v3968, 0.044715
      %v4033 = vmul.f32 %v3969, 0.044715
      %v4034 = vmul.f32 %v3970, 0.044715
      %v4035 = vmul.f32 %v3971, 0.044715
      %v4036 = vmul.f32 %v3972, 0.044715
      %v4037 = vmul.f32 %v3973, 0.044715
      %v4038 = vmul.f32 %v3974, 0.044715
      %v4039 = vmul.f32 %v3975, 0.044715
      %v4040 = vmul.f32 %v3976, 0.044715
      %v4041 = vmul.f32 %v3977, 0.044715
      %v4042 = vmul.f32 %v3978, 0.044715
      %v4043 = vmul.f32 %v3979, 0.044715
      %v4044 = vmul.f32 %v3980, 0.044715
      %v4045 = vmul.f32 %v3981, 0.044715
      %v4046 = vmul.f32 %v3982, 0.044715
      %v4047 = vmul.f32 %v3983, 0.044715
      %v4048 = vmul.f32 %v3984, 0.044715
      %v4049 = vmul.f32 %v3985, 0.044715
      %v4050 = vmul.f32 %v3986, 0.044715
      %v4051 = vmul.f32 %v3987, 0.044715
      %v4052 = vmul.f32 %v3988, 0.044715
      %v4053 = vmul.f32 %v3989, 0.044715
      %v4054 = vmul.f32 %v3990, 0.044715
      %v4055 = vmul.f32 %v3991, 0.044715
      %v4056 = vmul.f32 %v3992, 0.044715
      %v4057 = vmul.f32 %v3993, 0.044715
      %v4058 = vmul.f32 %v3994, 0.044715
      %v4059 = vmul.f32 %v3995, 0.044715
      %v4060 = vmul.f32 %v3996, 0.044715
      %v4061 = vmul.f32 %v3997, 0.044715
      %v4062 = vmul.f32 %v3998, 0.044715
      %v4063 = vmul.f32 %v3999, 0.044715
      %v4064 = vmul.f32 %v4000, 0.044715
      %v4065 = vmul.f32 %v4001, 0.044715
      %v4066 = vmul.f32 %v4002, 0.044715
      %v4067 = vmul.f32 %v4003, 0.044715
      %v4068 = vmul.f32 %v4004, 0.044715
      %v4069 = vmul.f32 %v4005, 0.044715
      %v4070 = vmul.f32 %v4006, 0.044715
      %v4071 = vmul.f32 %v4007, 0.044715
      %v4072 = vmul.f32 %v4008, 0.044715
      %v4073 = vmul.f32 %v4009, 0.044715
      %v4074 = vmul.f32 %v4010, 0.044715
      %v4075 = vmul.f32 %v4011, 0.044715
      %v4076 = vmul.f32 %v4012, 0.044715
      %v4077 = vmul.f32 %v4013, 0.044715
      %v4078 = vmul.f32 %v4014, 0.044715
      %v4079 = vmul.f32 %v4015, 0.044715
      %v4080 = vmul.f32 %v4016, 0.044715
      %v4081 = vmul.f32 %v4017, 0.044715
      %v4082 = vmul.f32 %v4018, 0.044715
      %v4083 = vmul.f32 %v4019, 0.044715
      %v4084 = vmul.f32 %v4020, 0.044715
      %v4085 = vmul.f32 %v4021, 0.044715
      %v4086 = vmul.f32 %v4022, 0.044715
      %v4087 = vadd.f32 %v3704, %v4023
      %v4088 = vadd.f32 %v3706, %v4024
      %v4089 = vadd.f32 %v3817, %v4025
      %v4090 = vadd.f32 %v3819, %v4026
      %v4091 = vadd.f32 %v3708, %v4027
      %v4092 = vadd.f32 %v3710, %v4028
      %v4093 = vadd.f32 %v3821, %v4029
      %v4094 = vadd.f32 %v3823, %v4030
      %v4095 = vadd.f32 %v3714, %v4031
      %v4096 = vadd.f32 %v3716, %v4032
      %v4097 = vadd.f32 %v3827, %v4033
      %v4098 = vadd.f32 %v3829, %v4034
      %v4099 = vadd.f32 %v3718, %v4035
      %v4100 = vadd.f32 %v3720, %v4036
      %v4101 = vadd.f32 %v3831, %v4037
      %v4102 = vadd.f32 %v3833, %v4038
      %v4103 = vadd.f32 %v3724, %v4039
      %v4104 = vadd.f32 %v3726, %v4040
      %v4105 = vadd.f32 %v3837, %v4041
      %v4106 = vadd.f32 %v3839, %v4042
      %v4107 = vadd.f32 %v3728, %v4043
      %v4108 = vadd.f32 %v3730, %v4044
      %v4109 = vadd.f32 %v3841, %v4045
      %v4110 = vadd.f32 %v3843, %v4046
      %v4111 = vadd.f32 %v3734, %v4047
      %v4112 = vadd.f32 %v3736, %v4048
      %v4113 = vadd.f32 %v3847, %v4049
      %v4114 = vadd.f32 %v3849, %v4050
      %v4115 = vadd.f32 %v3738, %v4051
      %v4116 = vadd.f32 %v3740, %v4052
      %v4117 = vadd.f32 %v3851, %v4053
      %v4118 = vadd.f32 %v3853, %v4054
      %v4119 = vadd.f32 %v3744, %v4055
      %v4120 = vadd.f32 %v3746, %v4056
      %v4121 = vadd.f32 %v3857, %v4057
      %v4122 = vadd.f32 %v3859, %v4058
      %v4123 = vadd.f32 %v3748, %v4059
      %v4124 = vadd.f32 %v3750, %v4060
      %v4125 = vadd.f32 %v3861, %v4061
      %v4126 = vadd.f32 %v3863, %v4062
      %v4127 = vadd.f32 %v3754, %v4063
      %v4128 = vadd.f32 %v3756, %v4064
      %v4129 = vadd.f32 %v3867, %v4065
      %v4130 = vadd.f32 %v3869, %v4066
      %v4131 = vadd.f32 %v3758, %v4067
      %v4132 = vadd.f32 %v3760, %v4068
      %v4133 = vadd.f32 %v3871, %v4069
      %v4134 = vadd.f32 %v3873, %v4070
      %v4135 = vadd.f32 %v3764, %v4071
      %v4136 = vadd.f32 %v3766, %v4072
      %v4137 = vadd.f32 %v3877, %v4073
      %v4138 = vadd.f32 %v3879, %v4074
      %v4139 = vadd.f32 %v3768, %v4075
      %v4140 = vadd.f32 %v3770, %v4076
      %v4141 = vadd.f32 %v3881, %v4077
      %v4142 = vadd.f32 %v3883, %v4078
      %v4143 = vadd.f32 %v3774, %v4079
      %v4144 = vadd.f32 %v3776, %v4080
      %v4145 = vadd.f32 %v3887, %v4081
      %v4146 = vadd.f32 %v3889, %v4082
      %v4147 = vadd.f32 %v3778, %v4083
      %v4148 = vadd.f32 %v3780, %v4084
      %v4149 = vadd.f32 %v3891, %v4085
      %v4150 = vadd.f32 %v3893, %v4086
      %v4151 = vmul.f32 %v4087, 0.7978846
      %v4152 = vmul.f32 %v4088, 0.7978846
      %v4153 = vmul.f32 %v4089, 0.7978846
      %v4154 = vmul.f32 %v4090, 0.7978846
      %v4155 = vmul.f32 %v4091, 0.7978846
      %v4156 = vmul.f32 %v4092, 0.7978846
      %v4157 = vmul.f32 %v4093, 0.7978846
      %v4158 = vmul.f32 %v4094, 0.7978846
      %v4159 = vmul.f32 %v4095, 0.7978846
      %v4160 = vmul.f32 %v4096, 0.7978846
      %v4161 = vmul.f32 %v4097, 0.7978846
      %v4162 = vmul.f32 %v4098, 0.7978846
      %v4163 = vmul.f32 %v4099, 0.7978846
      %v4164 = vmul.f32 %v4100, 0.7978846
      %v4165 = vmul.f32 %v4101, 0.7978846
      %v4166 = vmul.f32 %v4102, 0.7978846
      %v4167 = vmul.f32 %v4103, 0.7978846
      %v4168 = vmul.f32 %v4104, 0.7978846
      %v4169 = vmul.f32 %v4105, 0.7978846
      %v4170 = vmul.f32 %v4106, 0.7978846
      %v4171 = vmul.f32 %v4107, 0.7978846
      %v4172 = vmul.f32 %v4108, 0.7978846
      %v4173 = vmul.f32 %v4109, 0.7978846
      %v4174 = vmul.f32 %v4110, 0.7978846
      %v4175 = vmul.f32 %v4111, 0.7978846
      %v4176 = vmul.f32 %v4112, 0.7978846
      %v4177 = vmul.f32 %v4113, 0.7978846
      %v4178 = vmul.f32 %v4114, 0.7978846
      %v4179 = vmul.f32 %v4115, 0.7978846
      %v4180 = vmul.f32 %v4116, 0.7978846
      %v4181 = vmul.f32 %v4117, 0.7978846
      %v4182 = vmul.f32 %v4118, 0.7978846
      %v4183 = vmul.f32 %v4119, 0.7978846
      %v4184 = vmul.f32 %v4120, 0.7978846
      %v4185 = vmul.f32 %v4121, 0.7978846
      %v4186 = vmul.f32 %v4122, 0.7978846
      %v4187 = vmul.f32 %v4123, 0.7978846
      %v4188 = vmul.f32 %v4124, 0.7978846
      %v4189 = vmul.f32 %v4125, 0.7978846
      %v4190 = vmul.f32 %v4126, 0.7978846
      %v4191 = vmul.f32 %v4127, 0.7978846
      %v4192 = vmul.f32 %v4128, 0.7978846
      %v4193 = vmul.f32 %v4129, 0.7978846
      %v4194 = vmul.f32 %v4130, 0.7978846
      %v4195 = vmul.f32 %v4131, 0.7978846
      %v4196 = vmul.f32 %v4132, 0.7978846
      %v4197 = vmul.f32 %v4133, 0.7978846
      %v4198 = vmul.f32 %v4134, 0.7978846
      %v4199 = vmul.f32 %v4135, 0.7978846
      %v4200 = vmul.f32 %v4136, 0.7978846
      %v4201 = vmul.f32 %v4137, 0.7978846
      %v4202 = vmul.f32 %v4138, 0.7978846
      %v4203 = vmul.f32 %v4139, 0.7978846
      %v4204 = vmul.f32 %v4140, 0.7978846
      %v4205 = vmul.f32 %v4141, 0.7978846
      %v4206 = vmul.f32 %v4142, 0.7978846
      %v4207 = vmul.f32 %v4143, 0.7978846
      %v4208 = vmul.f32 %v4144, 0.7978846
      %v4209 = vmul.f32 %v4145, 0.7978846
      %v4210 = vmul.f32 %v4146, 0.7978846
      %v4211 = vmul.f32 %v4147, 0.7978846
      %v4212 = vmul.f32 %v4148, 0.7978846
      %v4213 = vmul.f32 %v4149, 0.7978846
      %v4214 = vmul.f32 %v4150, 0.7978846
      %v4215 = vtanh.pop %v4151
      %v4216 = vtanh.pop %v4152
      %v4217 = vtanh.pop %v4153
      %v4218 = vtanh.pop %v4154
      %v4219 = vtanh.pop %v4155
      %v4220 = vtanh.pop %v4156
      %v4221 = vtanh.pop %v4157
      %v4222 = vtanh.pop %v4158
      %v4223 = vtanh.pop %v4159
      %v4224 = vtanh.pop %v4160
      %v4225 = vtanh.pop %v4161
      %v4226 = vtanh.pop %v4162
      %v4227 = vtanh.pop %v4163
      %v4228 = vtanh.pop %v4164
      %v4229 = vtanh.pop %v4165
      %v4230 = vtanh.pop %v4166
      %v4231 = vtanh.pop %v4167
      %v4232 = vtanh.pop %v4168
      %v4233 = vtanh.pop %v4169
      %v4234 = vtanh.pop %v4170
      %v4235 = vtanh.pop %v4171
      %v4236 = vtanh.pop %v4172
      %v4237 = vtanh.pop %v4173
      %v4238 = vtanh.pop %v4174
      %v4239 = vtanh.pop %v4175
      %v4240 = vtanh.pop %v4176
      %v4241 = vtanh.pop %v4177
      %v4242 = vtanh.pop %v4178
      %v4243 = vtanh.pop %v4179
      %v4244 = vtanh.pop %v4180
      %v4245 = vtanh.pop %v4181
      %v4246 = vtanh.pop %v4182
      %v4247 = vtanh.pop %v4183
      %v4248 = vtanh.pop %v4184
      %v4249 = vtanh.pop %v4185
      %v4250 = vtanh.pop %v4186
      %v4251 = vtanh.pop %v4187
      %v4252 = vtanh.pop %v4188
      %v4253 = vtanh.pop %v4189
      %v4254 = vtanh.pop %v4190
      %v4255 = vtanh.pop %v4191
      %v4256 = vtanh.pop %v4192
      %v4257 = vtanh.pop %v4193
      %v4258 = vtanh.pop %v4194
      %v4259 = vtanh.pop %v4195
      %v4260 = vtanh.pop %v4196
      %v4261 = vtanh.pop %v4197
      %v4262 = vtanh.pop %v4198
      %v4263 = vtanh.pop %v4199
      %v4264 = vtanh.pop %v4200
      %v4265 = vtanh.pop %v4201
      %v4266 = vtanh.pop %v4202
      %v4267 = vtanh.pop %v4203
      %v4268 = vtanh.pop %v4204
      %v4269 = vtanh.pop %v4205
      %v4270 = vtanh.pop %v4206
      %v4271 = vtanh.pop %v4207
      %v4272 = vtanh.pop %v4208
      %v4273 = vtanh.pop %v4209
      %v4274 = vtanh.pop %v4210
      %v4275 = vtanh.pop %v4211
      %v4276 = vtanh.pop %v4212
      %v4277 = vtanh.pop %v4213
      %v4278 = vtanh.pop %v4214
      %v4279 = vadd.f32 %v4215, 1.0
      %v4280 = vadd.f32 %v4216, 1.0
      %v4281 = vadd.f32 %v4217, 1.0
      %v4282 = vadd.f32 %v4218, 1.0
      %v4283 = vadd.f32 %v4219, 1.0
      %v4284 = vadd.f32 %v4220, 1.0
      %v4285 = vadd.f32 %v4221, 1.0
      %v4286 = vadd.f32 %v4222, 1.0
      %v4287 = vadd.f32 %v4223, 1.0
      %v4288 = vadd.f32 %v4224, 1.0
      %v4289 = vadd.f32 %v4225, 1.0
      %v4290 = vadd.f32 %v4226, 1.0
      %v4291 = vadd.f32 %v4227, 1.0
      %v4292 = vadd.f32 %v4228, 1.0
      %v4293 = vadd.f32 %v4229, 1.0
      %v4294 = vadd.f32 %v4230, 1.0
      %v4295 = vadd.f32 %v4231, 1.0
      %v4296 = vadd.f32 %v4232, 1.0
      %v4297 = vadd.f32 %v4233, 1.0
      %v4298 = vadd.f32 %v4234, 1.0
      %v4299 = vadd.f32 %v4235, 1.0
      %v4300 = vadd.f32 %v4236, 1.0
      %v4301 = vadd.f32 %v4237, 1.0
      %v4302 = vadd.f32 %v4238, 1.0
      %v4303 = vadd.f32 %v4239, 1.0
      %v4304 = vadd.f32 %v4240, 1.0
      %v4305 = vadd.f32 %v4241, 1.0
      %v4306 = vadd.f32 %v4242, 1.0
      %v4307 = vadd.f32 %v4243, 1.0
      %v4308 = vadd.f32 %v4244, 1.0
      %v4309 = vadd.f32 %v4245, 1.0
      %v4310 = vadd.f32 %v4246, 1.0
      %v4311 = vadd.f32 %v4247, 1.0
      %v4312 = vadd.f32 %v4248, 1.0
      %v4313 = vadd.f32 %v4249, 1.0
      %v4314 = vadd.f32 %v4250, 1.0
      %v4315 = vadd.f32 %v4251, 1.0
      %v4316 = vadd.f32 %v4252, 1.0
      %v4317 = vadd.f32 %v4253, 1.0
      %v4318 = vadd.f32 %v4254, 1.0
      %v4319 = vadd.f32 %v4255, 1.0
      %v4320 = vadd.f32 %v4256, 1.0
      %v4321 = vadd.f32 %v4257, 1.0
      %v4322 = vadd.f32 %v4258, 1.0
      %v4323 = vadd.f32 %v4259, 1.0
      %v4324 = vadd.f32 %v4260, 1.0
      %v4325 = vadd.f32 %v4261, 1.0
      %v4326 = vadd.f32 %v4262, 1.0
      %v4327 = vadd.f32 %v4263, 1.0
      %v4328 = vadd.f32 %v4264, 1.0
      %v4329 = vadd.f32 %v4265, 1.0
      %v4330 = vadd.f32 %v4266, 1.0
      %v4331 = vadd.f32 %v4267, 1.0
      %v4332 = vadd.f32 %v4268, 1.0
      %v4333 = vadd.f32 %v4269, 1.0
      %v4334 = vadd.f32 %v4270, 1.0
      %v4335 = vadd.f32 %v4271, 1.0
      %v4336 = vadd.f32 %v4272, 1.0
      %v4337 = vadd.f32 %v4273, 1.0
      %v4338 = vadd.f32 %v4274, 1.0
      %v4339 = vadd.f32 %v4275, 1.0
      %v4340 = vadd.f32 %v4276, 1.0
      %v4341 = vadd.f32 %v4277, 1.0
      %v4342 = vadd.f32 %v4278, 1.0
      %v4343 = vmul.f32 %v4279, 0.5
      %v4344 = vmul.f32 %v4280, 0.5
      %v4345 = vmul.f32 %v4281, 0.5
      %v4346 = vmul.f32 %v4282, 0.5
      %v4347 = vmul.f32 %v4283, 0.5
      %v4348 = vmul.f32 %v4284, 0.5
      %v4349 = vmul.f32 %v4285, 0.5
      %v4350 = vmul.f32 %v4286, 0.5
      %v4351 = vmul.f32 %v4287, 0.5
      %v4352 = vmul.f32 %v4288, 0.5
      %v4353 = vmul.f32 %v4289, 0.5
      %v4354 = vmul.f32 %v4290, 0.5
      %v4355 = vmul.f32 %v4291, 0.5
      %v4356 = vmul.f32 %v4292, 0.5
      %v4357 = vmul.f32 %v4293, 0.5
      %v4358 = vmul.f32 %v4294, 0.5
      %v4359 = vmul.f32 %v4295, 0.5
      %v4360 = vmul.f32 %v4296, 0.5
      %v4361 = vmul.f32 %v4297, 0.5
      %v4362 = vmul.f32 %v4298, 0.5
      %v4363 = vmul.f32 %v4299, 0.5
      %v4364 = vmul.f32 %v4300, 0.5
      %v4365 = vmul.f32 %v4301, 0.5
      %v4366 = vmul.f32 %v4302, 0.5
      %v4367 = vmul.f32 %v4303, 0.5
      %v4368 = vmul.f32 %v4304, 0.5
      %v4369 = vmul.f32 %v4305, 0.5
      %v4370 = vmul.f32 %v4306, 0.5
      %v4371 = vmul.f32 %v4307, 0.5
      %v4372 = vmul.f32 %v4308, 0.5
      %v4373 = vmul.f32 %v4309, 0.5
      %v4374 = vmul.f32 %v4310, 0.5
      %v4375 = vmul.f32 %v4311, 0.5
      %v4376 = vmul.f32 %v4312, 0.5
      %v4377 = vmul.f32 %v4313, 0.5
      %v4378 = vmul.f32 %v4314, 0.5
      %v4379 = vmul.f32 %v4315, 0.5
      %v4380 = vmul.f32 %v4316, 0.5
      %v4381 = vmul.f32 %v4317, 0.5
      %v4382 = vmul.f32 %v4318, 0.5
      %v4383 = vmul.f32 %v4319, 0.5
      %v4384 = vmul.f32 %v4320, 0.5
      %v4385 = vmul.f32 %v4321, 0.5
      %v4386 = vmul.f32 %v4322, 0.5
      %v4387 = vmul.f32 %v4323, 0.5
      %v4388 = vmul.f32 %v4324, 0.5
      %v4389 = vmul.f32 %v4325, 0.5
      %v4390 = vmul.f32 %v4326, 0.5
      %v4391 = vmul.f32 %v4327, 0.5
      %v4392 = vmul.f32 %v4328, 0.5
      %v4393 = vmul.f32 %v4329, 0.5
      %v4394 = vmul.f32 %v4330, 0.5
      %v4395 = vmul.f32 %v4331, 0.5
      %v4396 = vmul.f32 %v4332, 0.5
      %v4397 = vmul.f32 %v4333, 0.5
      %v4398 = vmul.f32 %v4334, 0.5
      %v4399 = vmul.f32 %v4335, 0.5
      %v4400 = vmul.f32 %v4336, 0.5
      %v4401 = vmul.f32 %v4337, 0.5
      %v4402 = vmul.f32 %v4338, 0.5
      %v4403 = vmul.f32 %v4339, 0.5
      %v4404 = vmul.f32 %v4340, 0.5
      %v4405 = vmul.f32 %v4341, 0.5
      %v4406 = vmul.f32 %v4342, 0.5
      %v4407 = vmul.f32 %v3704, %v4343
      %v4408 = vmul.f32 %v3706, %v4344
      %v4409 = vmul.f32 %v3817, %v4345
      %v4410 = vmul.f32 %v3819, %v4346
      %v4411 = vmul.f32 %v3708, %v4347
      %v4412 = vmul.f32 %v3710, %v4348
      %v4413 = vmul.f32 %v3821, %v4349
      %v4414 = vmul.f32 %v3823, %v4350
      %v4415 = vmul.f32 %v3714, %v4351
      %v4416 = vmul.f32 %v3716, %v4352
      %v4417 = vmul.f32 %v3827, %v4353
      %v4418 = vmul.f32 %v3829, %v4354
      %v4419 = vmul.f32 %v3718, %v4355
      %v4420 = vmul.f32 %v3720, %v4356
      %v4421 = vmul.f32 %v3831, %v4357
      %v4422 = vmul.f32 %v3833, %v4358
      %v4423 = vmul.f32 %v3724, %v4359
      %v4424 = vmul.f32 %v3726, %v4360
      %v4425 = vmul.f32 %v3837, %v4361
      %v4426 = vmul.f32 %v3839, %v4362
      %v4427 = vmul.f32 %v3728, %v4363
      %v4428 = vmul.f32 %v3730, %v4364
      %v4429 = vmul.f32 %v3841, %v4365
      %v4430 = vmul.f32 %v3843, %v4366
      %v4431 = vmul.f32 %v3734, %v4367
      %v4432 = vmul.f32 %v3736, %v4368
      %v4433 = vmul.f32 %v3847, %v4369
      %v4434 = vmul.f32 %v3849, %v4370
      %v4435 = vmul.f32 %v3738, %v4371
      %v4436 = vmul.f32 %v3740, %v4372
      %v4437 = vmul.f32 %v3851, %v4373
      %v4438 = vmul.f32 %v3853, %v4374
      %v4439 = vmul.f32 %v3744, %v4375
      %v4440 = vmul.f32 %v3746, %v4376
      %v4441 = vmul.f32 %v3857, %v4377
      %v4442 = vmul.f32 %v3859, %v4378
      %v4443 = vmul.f32 %v3748, %v4379
      %v4444 = vmul.f32 %v3750, %v4380
      %v4445 = vmul.f32 %v3861, %v4381
      %v4446 = vmul.f32 %v3863, %v4382
      %v4447 = vmul.f32 %v3754, %v4383
      %v4448 = vmul.f32 %v3756, %v4384
      %v4449 = vmul.f32 %v3867, %v4385
      %v4450 = vmul.f32 %v3869, %v4386
      %v4451 = vmul.f32 %v3758, %v4387
      %v4452 = vmul.f32 %v3760, %v4388
      %v4453 = vmul.f32 %v3871, %v4389
      %v4454 = vmul.f32 %v3873, %v4390
      %v4455 = vmul.f32 %v3764, %v4391
      %v4456 = vmul.f32 %v3766, %v4392
      %v4457 = vmul.f32 %v3877, %v4393
      %v4458 = vmul.f32 %v3879, %v4394
      %v4459 = vmul.f32 %v3768, %v4395
      %v4460 = vmul.f32 %v3770, %v4396
      %v4461 = vmul.f32 %v3881, %v4397
      %v4462 = vmul.f32 %v3883, %v4398
      %v4463 = vmul.f32 %v3774, %v4399
      %v4464 = vmul.f32 %v3776, %v4400
      %v4465 = vmul.f32 %v3887, %v4401
      %v4466 = vmul.f32 %v3889, %v4402
      %v4467 = vmul.f32 %v3778, %v4403
      %v4468 = vmul.f32 %v3780, %v4404
      %v4469 = vmul.f32 %v3891, %v4405
      %v4470 = vmul.f32 %v3893, %v4406
      %v4471 = vpack.c.bf16 %v4411, %v4407
      %v4472 = vpack.c.bf16 %v4412, %v4408
      %v4473 = vpack.c.bf16 %v4413, %v4409
      %v4474 = vpack.c.bf16 %v4414, %v4410
      %v4475 = vpack.c.bf16 %v4419, %v4415
      %v4476 = vpack.c.bf16 %v4420, %v4416
      %v4477 = vpack.c.bf16 %v4421, %v4417
      %v4478 = vpack.c.bf16 %v4422, %v4418
      %v4479 = vpack.c.bf16 %v4427, %v4423
      %v4480 = vpack.c.bf16 %v4428, %v4424
      %v4481 = vpack.c.bf16 %v4429, %v4425
      %v4482 = vpack.c.bf16 %v4430, %v4426
      %v4483 = vpack.c.bf16 %v4435, %v4431
      %v4484 = vpack.c.bf16 %v4436, %v4432
      %v4485 = vpack.c.bf16 %v4437, %v4433
      %v4486 = vpack.c.bf16 %v4438, %v4434
      %v4487 = vpack.c.bf16 %v4443, %v4439
      %v4488 = vpack.c.bf16 %v4444, %v4440
      %v4489 = vpack.c.bf16 %v4445, %v4441
      %v4490 = vpack.c.bf16 %v4446, %v4442
      %v4491 = vpack.c.bf16 %v4451, %v4447
      %v4492 = vpack.c.bf16 %v4452, %v4448
      %v4493 = vpack.c.bf16 %v4453, %v4449
      %v4494 = vpack.c.bf16 %v4454, %v4450
      %v4495 = vpack.c.bf16 %v4459, %v4455
      %v4496 = vpack.c.bf16 %v4460, %v4456
      %v4497 = vpack.c.bf16 %v4461, %v4457
      %v4498 = vpack.c.bf16 %v4462, %v4458
      %v4499 = vpack.c.bf16 %v4467, %v4463
      %v4500 = vpack.c.bf16 %v4468, %v4464
      %v4501 = vpack.c.bf16 %v4469, %v4465
      %v4502 = vpack.c.bf16 %v4470, %v4466
      %v4503 = vld [vmem:[%s692] sm:$0xff]
      %v4504 = vld [vmem:[%s692 + $0x8] sm:$0xff]
      %v4505 = vld [vmem:[%s692 + $0x10] sm:$0xff]
      %v4506 = vld [vmem:[%s692 + $0x18] sm:$0xff]
      %v4507 = vld [vmem:[%s692 + $0x20] sm:$0xff]
      %v4508 = vld [vmem:[%s692 + $0x28] sm:$0xff]
      %v4509 = vld [vmem:[%s692 + $0x30] sm:$0xff]
      %v4510 = vld [vmem:[%s692 + $0x38] sm:$0xff]
      %v4511 = vld [vmem:[%s692 + $0x40] sm:$0xff]
      %v4512 = vld [vmem:[%s692 + $0x48] sm:$0xff]
      %v4513 = vld [vmem:[%s692 + $0x50] sm:$0xff]
      %v4514 = vld [vmem:[%s692 + $0x58] sm:$0xff]
      %v4515 = vld [vmem:[%s692 + $0x60] sm:$0xff]
      %v4516 = vld [vmem:[%s692 + $0x68] sm:$0xff]
      %v4517 = vld [vmem:[%s692 + $0x70] sm:$0xff]
      %v4518 = vld [vmem:[%s692 + $0x78] sm:$0xff]
      %v4519 = vld [vmem:[%s692 + $0x80] sm:$0xff]
      %v4520 = vld [vmem:[%s692 + $0x88] sm:$0xff]
      %v4521 = vld [vmem:[%s692 + $0x90] sm:$0xff]
      %v4522 = vld [vmem:[%s692 + $0x98] sm:$0xff]
      %v4523 = vld [vmem:[%s692 + $0xa0] sm:$0xff]
      %v4524 = vld [vmem:[%s692 + $0xa8] sm:$0xff]
      %v4525 = vld [vmem:[%s692 + $0xb0] sm:$0xff]
      %v4526 = vld [vmem:[%s692 + $0xb8] sm:$0xff]
      %v4527 = vld [vmem:[%s692 + $0xc0] sm:$0xff]
      %v4528 = vld [vmem:[%s692 + $0xc8] sm:$0xff]
      %v4529 = vld [vmem:[%s692 + $0xd0] sm:$0xff]
      %v4530 = vld [vmem:[%s692 + $0xd8] sm:$0xff]
      %v4531 = vld [vmem:[%s692 + $0xe0] sm:$0xff]
      %v4532 = vld [vmem:[%s692 + $0xe8] sm:$0xff]
      %v4533 = vld [vmem:[%s692 + $0xf0] sm:$0xff]
      %v4534 = vld [vmem:[%s692 + $0xf8] sm:$0xff]
      %v4535 = vld [vmem:[%s692 + $0x100] sm:$0xff]
      %v4536 = vld [vmem:[%s692 + $0x108] sm:$0xff]
      %v4537 = vld [vmem:[%s692 + $0x110] sm:$0xff]
      %v4538 = vld [vmem:[%s692 + $0x118] sm:$0xff]
      %v4539 = vld [vmem:[%s692 + $0x120] sm:$0xff]
      %v4540 = vld [vmem:[%s692 + $0x128] sm:$0xff]
      %v4541 = vld [vmem:[%s692 + $0x130] sm:$0xff]
      %v4542 = vld [vmem:[%s692 + $0x138] sm:$0xff]
      %v4543 = vld [vmem:[%s692 + $0x140] sm:$0xff]
      %v4544 = vld [vmem:[%s692 + $0x148] sm:$0xff]
      %v4545 = vld [vmem:[%s692 + $0x150] sm:$0xff]
      %v4546 = vld [vmem:[%s692 + $0x158] sm:$0xff]
      %v4547 = vld [vmem:[%s692 + $0x160] sm:$0xff]
      %v4548 = vld [vmem:[%s692 + $0x168] sm:$0xff]
      %v4549 = vld [vmem:[%s692 + $0x170] sm:$0xff]
      %v4550 = vld [vmem:[%s692 + $0x178] sm:$0xff]
      %v4551 = vld [vmem:[%s692 + $0x180] sm:$0xff]
      %v4552 = vld [vmem:[%s692 + $0x188] sm:$0xff]
      %v4553 = vld [vmem:[%s692 + $0x190] sm:$0xff]
      %v4554 = vld [vmem:[%s692 + $0x198] sm:$0xff]
      %v4555 = vld [vmem:[%s692 + $0x1a0] sm:$0xff]
      %v4556 = vld [vmem:[%s692 + $0x1a8] sm:$0xff]
      %v4557 = vld [vmem:[%s692 + $0x1b0] sm:$0xff]
      %v4558 = vld [vmem:[%s692 + $0x1b8] sm:$0xff]
      %v4559 = vld [vmem:[%s692 + $0x1c0] sm:$0xff]
      %v4560 = vld [vmem:[%s692 + $0x1c8] sm:$0xff]
      %v4561 = vld [vmem:[%s692 + $0x1d0] sm:$0xff]
      %v4562 = vld [vmem:[%s692 + $0x1d8] sm:$0xff]
      %v4563 = vld [vmem:[%s692 + $0x1e0] sm:$0xff]
      %v4564 = vld [vmem:[%s692 + $0x1e8] sm:$0xff]
      %v4565 = vld [vmem:[%s692 + $0x1f0] sm:$0xff]
      %v4566 = vld [vmem:[%s692 + $0x1f8] sm:$0xff]
      %v4567 = vld [vmem:[%s696] sm:$0x3]
      %v4569 = vlaneseq
      %v4570 = vshrl.u32 %v4569, 7
      %v4571 = vsub.s32 0, %v4570
      %v4572 = vrot.slane %v4567, %v4571
      %v4573 = vlaneseq
      %v4574 = vshrl.u32 %v4573, 7
      %v4575 = vsub.s32 1, %v4574
      %v4576 = vrot.slane %v4567, %v4575
      %v4643 = vunpack.c.l.b16 %v4503
      %v4644 = vunpack.c.h.b16 %v4503
      %v4645 = vunpack.c.l.b16 %v4504
      %v4646 = vunpack.c.h.b16 %v4504
      %v4647 = vunpack.c.l.b16 %v4505
      %v4648 = vunpack.c.h.b16 %v4505
      %v4649 = vunpack.c.l.b16 %v4506
      %v4650 = vunpack.c.h.b16 %v4506
      %v4651 = vunpack.c.l.b16 %v4507
      %v4652 = vunpack.c.h.b16 %v4507
      %v4653 = vunpack.c.l.b16 %v4508
      %v4654 = vunpack.c.h.b16 %v4508
      %v4655 = vunpack.c.l.b16 %v4509
      %v4656 = vunpack.c.h.b16 %v4509
      %v4657 = vunpack.c.l.b16 %v4510
      %v4658 = vunpack.c.h.b16 %v4510
      %v4659 = vunpack.c.l.b16 %v4511
      %v4660 = vunpack.c.h.b16 %v4511
      %v4661 = vunpack.c.l.b16 %v4512
      %v4662 = vunpack.c.h.b16 %v4512
      %v4663 = vunpack.c.l.b16 %v4513
      %v4664 = vunpack.c.h.b16 %v4513
      %v4665 = vunpack.c.l.b16 %v4514
      %v4666 = vunpack.c.h.b16 %v4514
      %v4667 = vunpack.c.l.b16 %v4515
      %v4668 = vunpack.c.h.b16 %v4515
      %v4669 = vunpack.c.l.b16 %v4516
      %v4670 = vunpack.c.h.b16 %v4516
      %v4671 = vunpack.c.l.b16 %v4517
      %v4672 = vunpack.c.h.b16 %v4517
      %v4673 = vunpack.c.l.b16 %v4518
      %v4674 = vunpack.c.h.b16 %v4518
      %v4675 = vunpack.c.l.b16 %v4519
      %v4676 = vunpack.c.h.b16 %v4519
      %v4677 = vunpack.c.l.b16 %v4520
      %v4678 = vunpack.c.h.b16 %v4520
      %v4679 = vunpack.c.l.b16 %v4521
      %v4680 = vunpack.c.h.b16 %v4521
      %v4681 = vunpack.c.l.b16 %v4522
      %v4682 = vunpack.c.h.b16 %v4522
      %v4683 = vunpack.c.l.b16 %v4523
      %v4684 = vunpack.c.h.b16 %v4523
      %v4685 = vunpack.c.l.b16 %v4524
      %v4686 = vunpack.c.h.b16 %v4524
      %v4687 = vunpack.c.l.b16 %v4525
      %v4688 = vunpack.c.h.b16 %v4525
      %v4689 = vunpack.c.l.b16 %v4526
      %v4690 = vunpack.c.h.b16 %v4526
      %v4691 = vunpack.c.l.b16 %v4527
      %v4692 = vunpack.c.h.b16 %v4527
      %v4693 = vunpack.c.l.b16 %v4528
      %v4694 = vunpack.c.h.b16 %v4528
      %v4695 = vunpack.c.l.b16 %v4529
      %v4696 = vunpack.c.h.b16 %v4529
      %v4697 = vunpack.c.l.b16 %v4530
      %v4698 = vunpack.c.h.b16 %v4530
      %v4699 = vunpack.c.l.b16 %v4531
      %v4700 = vunpack.c.h.b16 %v4531
      %v4701 = vunpack.c.l.b16 %v4532
      %v4702 = vunpack.c.h.b16 %v4532
      %v4703 = vunpack.c.l.b16 %v4533
      %v4704 = vunpack.c.h.b16 %v4533
      %v4705 = vunpack.c.l.b16 %v4534
      %v4706 = vunpack.c.h.b16 %v4534
      %v4707 = vunpack.c.l.b16 %v4535
      %v4708 = vunpack.c.h.b16 %v4535
      %v4709 = vunpack.c.l.b16 %v4536
      %v4710 = vunpack.c.h.b16 %v4536
      %v4711 = vunpack.c.l.b16 %v4537
      %v4712 = vunpack.c.h.b16 %v4537
      %v4713 = vunpack.c.l.b16 %v4538
      %v4714 = vunpack.c.h.b16 %v4538
      %v4715 = vunpack.c.l.b16 %v4539
      %v4716 = vunpack.c.h.b16 %v4539
      %v4717 = vunpack.c.l.b16 %v4540
      %v4718 = vunpack.c.h.b16 %v4540
      %v4719 = vunpack.c.l.b16 %v4541
      %v4720 = vunpack.c.h.b16 %v4541
      %v4721 = vunpack.c.l.b16 %v4542
      %v4722 = vunpack.c.h.b16 %v4542
      %v4723 = vunpack.c.l.b16 %v4543
      %v4724 = vunpack.c.h.b16 %v4543
      %v4725 = vunpack.c.l.b16 %v4544
      %v4726 = vunpack.c.h.b16 %v4544
      %v4727 = vunpack.c.l.b16 %v4545
      %v4728 = vunpack.c.h.b16 %v4545
      %v4729 = vunpack.c.l.b16 %v4546
      %v4730 = vunpack.c.h.b16 %v4546
      %v4731 = vunpack.c.l.b16 %v4547
      %v4732 = vunpack.c.h.b16 %v4547
      %v4733 = vunpack.c.l.b16 %v4548
      %v4734 = vunpack.c.h.b16 %v4548
      %v4735 = vunpack.c.l.b16 %v4549
      %v4736 = vunpack.c.h.b16 %v4549
      %v4737 = vunpack.c.l.b16 %v4550
      %v4738 = vunpack.c.h.b16 %v4550
      %v4739 = vunpack.c.l.b16 %v4551
      %v4740 = vunpack.c.h.b16 %v4551
      %v4741 = vunpack.c.l.b16 %v4552
      %v4742 = vunpack.c.h.b16 %v4552
      %v4743 = vunpack.c.l.b16 %v4553
      %v4744 = vunpack.c.h.b16 %v4553
      %v4745 = vunpack.c.l.b16 %v4554
      %v4746 = vunpack.c.h.b16 %v4554
      %v4747 = vunpack.c.l.b16 %v4555
      %v4748 = vunpack.c.h.b16 %v4555
      %v4749 = vunpack.c.l.b16 %v4556
      %v4750 = vunpack.c.h.b16 %v4556
      %v4751 = vunpack.c.l.b16 %v4557
      %v4752 = vunpack.c.h.b16 %v4557
      %v4753 = vunpack.c.l.b16 %v4558
      %v4754 = vunpack.c.h.b16 %v4558
      %v4755 = vunpack.c.l.b16 %v4559
      %v4756 = vunpack.c.h.b16 %v4559
      %v4757 = vunpack.c.l.b16 %v4560
      %v4758 = vunpack.c.h.b16 %v4560
      %v4759 = vunpack.c.l.b16 %v4561
      %v4760 = vunpack.c.h.b16 %v4561
      %v4761 = vunpack.c.l.b16 %v4562
      %v4762 = vunpack.c.h.b16 %v4562
      %v4763 = vunpack.c.l.b16 %v4563
      %v4764 = vunpack.c.h.b16 %v4563
      %v4765 = vunpack.c.l.b16 %v4564
      %v4766 = vunpack.c.h.b16 %v4564
      %v4767 = vunpack.c.l.b16 %v4565
      %v4768 = vunpack.c.h.b16 %v4565
      %v4769 = vunpack.c.l.b16 %v4566
      %v4770 = vunpack.c.h.b16 %v4566
      %v4771 = vpack.c.b16 %v4645, %v4643
      %v4772 = vpack.c.b16 %v4646, %v4644
      %v4773 = vpack.c.b16 %v4649, %v4647
      %v4774 = vpack.c.b16 %v4650, %v4648
      %v4775 = vpack.c.b16 %v4653, %v4651
      %v4776 = vpack.c.b16 %v4654, %v4652
      %v4777 = vpack.c.b16 %v4657, %v4655
      %v4778 = vpack.c.b16 %v4658, %v4656
      %v4779 = vpack.c.b16 %v4661, %v4659
      %v4780 = vpack.c.b16 %v4662, %v4660
      %v4781 = vpack.c.b16 %v4665, %v4663
      %v4782 = vpack.c.b16 %v4666, %v4664
      %v4783 = vpack.c.b16 %v4669, %v4667
      %v4784 = vpack.c.b16 %v4670, %v4668
      %v4785 = vpack.c.b16 %v4673, %v4671
      %v4786 = vpack.c.b16 %v4674, %v4672
      %v4787 = vpack.c.b16 %v4677, %v4675
      %v4788 = vpack.c.b16 %v4678, %v4676
      %v4789 = vpack.c.b16 %v4681, %v4679
      %v4790 = vpack.c.b16 %v4682, %v4680
      %v4791 = vpack.c.b16 %v4685, %v4683
      %v4792 = vpack.c.b16 %v4686, %v4684
      %v4793 = vpack.c.b16 %v4689, %v4687
      %v4794 = vpack.c.b16 %v4690, %v4688
      %v4795 = vpack.c.b16 %v4693, %v4691
      %v4796 = vpack.c.b16 %v4694, %v4692
      %v4797 = vpack.c.b16 %v4697, %v4695
      %v4798 = vpack.c.b16 %v4698, %v4696
      %v4799 = vpack.c.b16 %v4701, %v4699
      %v4800 = vpack.c.b16 %v4702, %v4700
      %v4801 = vpack.c.b16 %v4705, %v4703
      %v4802 = vpack.c.b16 %v4706, %v4704
      %v4803 = vpack.c.b16 %v4709, %v4707
      %v4804 = vpack.c.b16 %v4710, %v4708
      %v4805 = vpack.c.b16 %v4713, %v4711
      %v4806 = vpack.c.b16 %v4714, %v4712
      %v4807 = vpack.c.b16 %v4717, %v4715
      %v4808 = vpack.c.b16 %v4718, %v4716
      %v4809 = vpack.c.b16 %v4721, %v4719
      %v4810 = vpack.c.b16 %v4722, %v4720
      %v4811 = vpack.c.b16 %v4725, %v4723
      %v4812 = vpack.c.b16 %v4726, %v4724
      %v4813 = vpack.c.b16 %v4729, %v4727
      %v4814 = vpack.c.b16 %v4730, %v4728
      %v4815 = vpack.c.b16 %v4733, %v4731
      %v4816 = vpack.c.b16 %v4734, %v4732
      %v4817 = vpack.c.b16 %v4737, %v4735
      %v4818 = vpack.c.b16 %v4738, %v4736
      %v4819 = vpack.c.b16 %v4741, %v4739
      %v4820 = vpack.c.b16 %v4742, %v4740
      %v4821 = vpack.c.b16 %v4745, %v4743
      %v4822 = vpack.c.b16 %v4746, %v4744
      %v4823 = vpack.c.b16 %v4749, %v4747
      %v4824 = vpack.c.b16 %v4750, %v4748
      %v4825 = vpack.c.b16 %v4753, %v4751
      %v4826 = vpack.c.b16 %v4754, %v4752
      %v4827 = vpack.c.b16 %v4757, %v4755
      %v4828 = vpack.c.b16 %v4758, %v4756
      %v4829 = vpack.c.b16 %v4761, %v4759
      %v4830 = vpack.c.b16 %v4762, %v4760
      %v4831 = vpack.c.b16 %v4765, %v4763
      %v4832 = vpack.c.b16 %v4766, %v4764
      %v4833 = vpack.c.b16 %v4769, %v4767
      %v4834 = vpack.c.b16 %v4770, %v4768
      %4899 = vmatprep.subr.bf16.mxu0 %v4772
      %4900 = vmatpush1.bf16.msra.mxu0 %v4771
      %4901 = vmatprep.subr.bf16.mxu0 %v4774
      %4902 = vmatpush1.bf16.msra.mxu0 %v4773
      %4903 = vmatprep.subr.bf16.mxu0 %v4776
      %4904 = vmatpush1.bf16.msra.mxu0 %v4775
      %4905 = vmatprep.subr.bf16.mxu0 %v4778
      %4906 = vmatpush1.bf16.msra.mxu0 %v4777
      %4907 = vmatprep.subr.bf16.mxu0 %v4780
      %4908 = vmatpush1.bf16.msra.mxu0 %v4779
      %4909 = vmatprep.subr.bf16.mxu0 %v4782
      %4910 = vmatpush1.bf16.msra.mxu0 %v4781
      %4911 = vmatprep.subr.bf16.mxu0 %v4784
      %4912 = vmatpush1.bf16.msra.mxu0 %v4783
      %4913 = vmatprep.subr.bf16.mxu0 %v4786
      %4914 = vmatpush1.bf16.msra.mxu0 %v4785
      %4915 = vmatprep.subr.bf16.mxu0 %v4788
      %4916 = vmatpush1.bf16.msra.mxu0 %v4787
      %4917 = vmatprep.subr.bf16.mxu0 %v4790
      %4918 = vmatpush1.bf16.msra.mxu0 %v4789
      %4919 = vmatprep.subr.bf16.mxu0 %v4792
      %4920 = vmatpush1.bf16.msra.mxu0 %v4791
      %4921 = vmatprep.subr.bf16.mxu0 %v4794
      %4922 = vmatpush1.bf16.msra.mxu0 %v4793
      %4923 = vmatprep.subr.bf16.mxu0 %v4796
      %4924 = vmatpush1.bf16.msra.mxu0 %v4795
      %4925 = vmatprep.subr.bf16.mxu0 %v4798
      %4926 = vmatpush1.bf16.msra.mxu0 %v4797
      %4927 = vmatprep.subr.bf16.mxu0 %v4800
      %4928 = vmatpush1.bf16.msra.mxu0 %v4799
      %4929 = vmatprep.subr.bf16.mxu0 %v4802
      %4930 = vmatpush1.bf16.msra.mxu0 %v4801
      %4931 = vmatprep.mubr.bf16.mxu0 %v4472
      %4932 = vmatmul.mubr.bf16.gmra.mrb[0].mxu0 %v4471
      %v4933 = vpop.f32.mrb[0].mxu0
      %v4934 = vadd.f32 %v4572, %v4933
      %v4935 = vpop.f32.mrb[0].mxu0
      %v4936 = vadd.f32 %v4576, %v4935
      %v4937 = vpop.f32.mrb[0].mxu0
      %v4938 = vadd.f32 %v4572, %v4937
      %v4939 = vpop.f32.mrb[0].mxu0
      %v4940 = vadd.f32 %v4576, %v4939
      %4941 = vmatprep.mubr.bf16.mxu0 %v4476
      %4942 = vmatmul.mubr.bf16.gmra.mrb[0].mxu0 %v4475
      %v4943 = vpop.f32.mrb[0].mxu0
      %v4944 = vadd.f32 %v4572, %v4943
      %v4945 = vpop.f32.mrb[0].mxu0
      %v4946 = vadd.f32 %v4576, %v4945
      %v4947 = vpop.f32.mrb[0].mxu0
      %v4948 = vadd.f32 %v4572, %v4947
      %v4949 = vpop.f32.mrb[0].mxu0
      %v4950 = vadd.f32 %v4576, %v4949
      %4951 = vmatprep.mubr.bf16.mxu0 %v4480
      %4952 = vmatmul.mubr.bf16.gmra.mrb[0].mxu0 %v4479
      %v4953 = vpop.f32.mrb[0].mxu0
      %v4954 = vadd.f32 %v4572, %v4953
      %v4955 = vpop.f32.mrb[0].mxu0
      %v4956 = vadd.f32 %v4576, %v4955
      %v4957 = vpop.f32.mrb[0].mxu0
      %v4958 = vadd.f32 %v4572, %v4957
      %v4959 = vpop.f32.mrb[0].mxu0
      %v4960 = vadd.f32 %v4576, %v4959
      %4961 = vmatprep.mubr.bf16.mxu0 %v4484
      %4962 = vmatmul.mubr.bf16.gmra.mrb[0].mxu0 %v4483
      %v4963 = vpop.f32.mrb[0].mxu0
      %v4964 = vadd.f32 %v4572, %v4963
      %v4965 = vpop.f32.mrb[0].mxu0
      %v4966 = vadd.f32 %v4576, %v4965
      %v4967 = vpop.f32.mrb[0].mxu0
      %v4968 = vadd.f32 %v4572, %v4967
      %v4969 = vpop.f32.mrb[0].mxu0
      %v4970 = vadd.f32 %v4576, %v4969
      %4971 = vmatprep.mubr.bf16.mxu0 %v4488
      %4972 = vmatmul.mubr.bf16.gmra.mrb[0].mxu0 %v4487
      %v4973 = vpop.f32.mrb[0].mxu0
      %v4974 = vadd.f32 %v4572, %v4973
      %v4975 = vpop.f32.mrb[0].mxu0
      %v4976 = vadd.f32 %v4576, %v4975
      %v4977 = vpop.f32.mrb[0].mxu0
      %v4978 = vadd.f32 %v4572, %v4977
      %v4979 = vpop.f32.mrb[0].mxu0
      %v4980 = vadd.f32 %v4576, %v4979
      %4981 = vmatprep.mubr.bf16.mxu0 %v4492
      %4982 = vmatmul.mubr.bf16.gmra.mrb[0].mxu0 %v4491
      %v4983 = vpop.f32.mrb[0].mxu0
      %v4984 = vadd.f32 %v4572, %v4983
      %v4985 = vpop.f32.mrb[0].mxu0
      %v4986 = vadd.f32 %v4576, %v4985
      %v4987 = vpop.f32.mrb[0].mxu0
      %v4988 = vadd.f32 %v4572, %v4987
      %v4989 = vpop.f32.mrb[0].mxu0
      %v4990 = vadd.f32 %v4576, %v4989
      %4991 = vmatprep.mubr.bf16.mxu0 %v4496
      %4992 = vmatmul.mubr.bf16.gmra.mrb[0].mxu0 %v4495
      %v4993 = vpop.f32.mrb[0].mxu0
      %v4994 = vadd.f32 %v4572, %v4993
      %v4995 = vpop.f32.mrb[0].mxu0
      %v4996 = vadd.f32 %v4576, %v4995
      %v4997 = vpop.f32.mrb[0].mxu0
      %v4998 = vadd.f32 %v4572, %v4997
      %v4999 = vpop.f32.mrb[0].mxu0
      %v5000 = vadd.f32 %v4576, %v4999
      %5001 = vmatprep.mubr.bf16.mxu0 %v4500
      %5002 = vmatmul.mubr.bf16.gmra.mrb[0].mxu0 %v4499
      %v5003 = vpop.f32.mrb[0].mxu0
      %v5004 = vadd.f32 %v4572, %v5003
      %v5005 = vpop.f32.mrb[0].mxu0
      %v5006 = vadd.f32 %v4576, %v5005
      %v5007 = vpop.f32.mrb[0].mxu0
      %v5008 = vadd.f32 %v4572, %v5007
      %v5009 = vpop.f32.mrb[0].mxu0
      %v5010 = vadd.f32 %v4576, %v5009
      %5011 = vdwg.mxu0
      %5012 = vmatprep.subr.bf16.mxu0 %v4804
      %5013 = vmatpush1.bf16.msra.mxu0 %v4803
      %5014 = vmatprep.subr.bf16.mxu0 %v4806
      %5015 = vmatpush1.bf16.msra.mxu0 %v4805
      %5016 = vmatprep.subr.bf16.mxu0 %v4808
      %5017 = vmatpush1.bf16.msra.mxu0 %v4807
      %5018 = vmatprep.subr.bf16.mxu0 %v4810
      %5019 = vmatpush1.bf16.msra.mxu0 %v4809
      %5020 = vmatprep.subr.bf16.mxu0 %v4812
      %5021 = vmatpush1.bf16.msra.mxu0 %v4811
      %5022 = vmatprep.subr.bf16.mxu0 %v4814
      %5023 = vmatpush1.bf16.msra.mxu0 %v4813
      %5024 = vmatprep.subr.bf16.mxu0 %v4816
      %5025 = vmatpush1.bf16.msra.mxu0 %v4815
      %5026 = vmatprep.subr.bf16.mxu0 %v4818
      %5027 = vmatpush1.bf16.msra.mxu0 %v4817
      %5028 = vmatprep.subr.bf16.mxu0 %v4820
      %5029 = vmatpush1.bf16.msra.mxu0 %v4819
      %5030 = vmatprep.subr.bf16.mxu0 %v4822
      %5031 = vmatpush1.bf16.msra.mxu0 %v4821
      %5032 = vmatprep.subr.bf16.mxu0 %v4824
      %5033 = vmatpush1.bf16.msra.mxu0 %v4823
      %5034 = vmatprep.subr.bf16.mxu0 %v4826
      %5035 = vmatpush1.bf16.msra.mxu0 %v4825
      %5036 = vmatprep.subr.bf16.mxu0 %v4828
      %5037 = vmatpush1.bf16.msra.mxu0 %v4827
      %5038 = vmatprep.subr.bf16.mxu0 %v4830
      %5039 = vmatpush1.bf16.msra.mxu0 %v4829
      %5040 = vmatprep.subr.bf16.mxu0 %v4832
      %5041 = vmatpush1.bf16.msra.mxu0 %v4831
      %5042 = vmatprep.subr.bf16.mxu0 %v4834
      %5043 = vmatpush1.bf16.msra.mxu0 %v4833
      %5044 = vmatprep.mubr.bf16.mxu0 %v4474
      %5045 = vmatmul.mubr.bf16.gmra.mrb[0].mxu0 %v4473
      %v5046 = vpop.f32.mrb[0].mxu0
      %v5047 = vadd.f32 %v4934, %v5046
      %v5048 = vpop.f32.mrb[0].mxu0
      %v5049 = vadd.f32 %v4936, %v5048
      %v5050 = vpop.f32.mrb[0].mxu0
      %v5051 = vadd.f32 %v4938, %v5050
      %v5052 = vpop.f32.mrb[0].mxu0
      %v5053 = vadd.f32 %v4940, %v5052
      %5054 = vmatprep.mubr.bf16.mxu0 %v4478
      %5055 = vmatmul.mubr.bf16.gmra.mrb[0].mxu0 %v4477
      %v5056 = vpop.f32.mrb[0].mxu0
      %v5057 = vadd.f32 %v4944, %v5056
      %v5058 = vpop.f32.mrb[0].mxu0
      %v5059 = vadd.f32 %v4946, %v5058
      %v5060 = vpop.f32.mrb[0].mxu0
      %v5061 = vadd.f32 %v4948, %v5060
      %v5062 = vpop.f32.mrb[0].mxu0
      %v5063 = vadd.f32 %v4950, %v5062
      %5064 = vmatprep.mubr.bf16.mxu0 %v4482
      %5065 = vmatmul.mubr.bf16.gmra.mrb[0].mxu0 %v4481
      %v5066 = vpop.f32.mrb[0].mxu0
      %v5067 = vadd.f32 %v4954, %v5066
      %v5068 = vpop.f32.mrb[0].mxu0
      %v5069 = vadd.f32 %v4956, %v5068
      %v5070 = vpop.f32.mrb[0].mxu0
      %v5071 = vadd.f32 %v4958, %v5070
      %v5072 = vpop.f32.mrb[0].mxu0
      %v5073 = vadd.f32 %v4960, %v5072
      %5074 = vmatprep.mubr.bf16.mxu0 %v4486
      %5075 = vmatmul.mubr.bf16.gmra.mrb[0].mxu0 %v4485
      %v5076 = vpop.f32.mrb[0].mxu0
      %v5077 = vadd.f32 %v4964, %v5076
      %v5078 = vpop.f32.mrb[0].mxu0
      %v5079 = vadd.f32 %v4966, %v5078
      %v5080 = vpop.f32.mrb[0].mxu0
      %v5081 = vadd.f32 %v4968, %v5080
      %v5082 = vpop.f32.mrb[0].mxu0
      %v5083 = vadd.f32 %v4970, %v5082
      %5084 = vmatprep.mubr.bf16.mxu0 %v4490
      %5085 = vmatmul.mubr.bf16.gmra.mrb[0].mxu0 %v4489
      %v5086 = vpop.f32.mrb[0].mxu0
      %v5087 = vadd.f32 %v4974, %v5086
      %v5088 = vpop.f32.mrb[0].mxu0
      %v5089 = vadd.f32 %v4976, %v5088
      %v5090 = vpop.f32.mrb[0].mxu0
      %v5091 = vadd.f32 %v4978, %v5090
      %v5092 = vpop.f32.mrb[0].mxu0
      %v5093 = vadd.f32 %v4980, %v5092
      %5094 = vmatprep.mubr.bf16.mxu0 %v4494
      %5095 = vmatmul.mubr.bf16.gmra.mrb[0].mxu0 %v4493
      %v5096 = vpop.f32.mrb[0].mxu0
      %v5097 = vadd.f32 %v4984, %v5096
      %v5098 = vpop.f32.mrb[0].mxu0
      %v5099 = vadd.f32 %v4986, %v5098
      %v5100 = vpop.f32.mrb[0].mxu0
      %v5101 = vadd.f32 %v4988, %v5100
      %v5102 = vpop.f32.mrb[0].mxu0
      %v5103 = vadd.f32 %v4990, %v5102
      %5104 = vmatprep.mubr.bf16.mxu0 %v4498
      %5105 = vmatmul.mubr.bf16.gmra.mrb[0].mxu0 %v4497
      %v5106 = vpop.f32.mrb[0].mxu0
      %v5107 = vadd.f32 %v4994, %v5106
      %v5108 = vpop.f32.mrb[0].mxu0
      %v5109 = vadd.f32 %v4996, %v5108
      %v5110 = vpop.f32.mrb[0].mxu0
      %v5111 = vadd.f32 %v4998, %v5110
      %v5112 = vpop.f32.mrb[0].mxu0
      %v5113 = vadd.f32 %v5000, %v5112
      %5114 = vmatprep.mubr.bf16.mxu0 %v4502
      %5115 = vmatmul.mubr.bf16.gmra.mrb[0].mxu0 %v4501
      %v5116 = vpop.f32.mrb[0].mxu0
      %v5117 = vadd.f32 %v5004, %v5116
      %v5118 = vpop.f32.mrb[0].mxu0
      %v5119 = vadd.f32 %v5006, %v5118
      %v5120 = vpop.f32.mrb[0].mxu0
      %v5121 = vadd.f32 %v5008, %v5120
      %v5122 = vpop.f32.mrb[0].mxu0
      %v5123 = vadd.f32 %v5010, %v5122
      %5124 = vdwg.mxu0
      %v5125 = vadd.f32 %v5047, %v3215
      %v5126 = vadd.f32 %v5049, %v3216
      %v5127 = vadd.f32 %v5051, %v3217
      %v5128 = vadd.f32 %v5053, %v3218
      %v5129 = vadd.f32 %v5057, %v3219
      %v5130 = vadd.f32 %v5059, %v3220
      %v5131 = vadd.f32 %v5061, %v3221
      %v5132 = vadd.f32 %v5063, %v3222
      %v5133 = vadd.f32 %v5067, %v3223
      %v5134 = vadd.f32 %v5069, %v3224
      %v5135 = vadd.f32 %v5071, %v3225
      %v5136 = vadd.f32 %v5073, %v3226
      %v5137 = vadd.f32 %v5077, %v3227
      %v5138 = vadd.f32 %v5079, %v3228
      %v5139 = vadd.f32 %v5081, %v3229
      %v5140 = vadd.f32 %v5083, %v3230
      %v5141 = vadd.f32 %v5087, %v3231
      %v5142 = vadd.f32 %v5089, %v3232
      %v5143 = vadd.f32 %v5091, %v3233
      %v5144 = vadd.f32 %v5093, %v3234
      %v5145 = vadd.f32 %v5097, %v3235
      %v5146 = vadd.f32 %v5099, %v3236
      %v5147 = vadd.f32 %v5101, %v3237
      %v5148 = vadd.f32 %v5103, %v3238
      %v5149 = vadd.f32 %v5107, %v3239
      %v5150 = vadd.f32 %v5109, %v3240
      %v5151 = vadd.f32 %v5111, %v3241
      %v5152 = vadd.f32 %v5113, %v3242
      %v5153 = vadd.f32 %v5117, %v3243
      %v5154 = vadd.f32 %v5119, %v3244
      %v5155 = vadd.f32 %v5121, %v3245
      %v5156 = vadd.f32 %v5123, %v3246
      %v5157 = vld [vmem:[%s700] sm:$0x3]
      %v5158 = vld [vmem:[%s704] sm:$0x3]
      %v5159 = vadd.f32 %v5125, %v5126
      %5160 = vadd.xlane.f32.xlu0 %v5159
      %v5161 = vpop.xlane.xlu0 %5160
      %v5162 = vadd.f32 %v5127, %v5128
      %5163 = vadd.xlane.f32.xlu0 %v5162
      %v5164 = vpop.xlane.xlu0 %5163
      %v5165 = vadd.f32 %v5129, %v5130
      %5166 = vadd.xlane.f32.xlu0 %v5165
      %v5167 = vpop.xlane.xlu0 %5166
      %v5168 = vadd.f32 %v5131, %v5132
      %5169 = vadd.xlane.f32.xlu0 %v5168
      %v5170 = vpop.xlane.xlu0 %5169
      %v5171 = vadd.f32 %v5133, %v5134
      %5172 = vadd.xlane.f32.xlu0 %v5171
      %v5173 = vpop.xlane.xlu0 %5172
      %v5174 = vadd.f32 %v5135, %v5136
      %5175 = vadd.xlane.f32.xlu0 %v5174
      %v5176 = vpop.xlane.xlu0 %5175
      %v5177 = vadd.f32 %v5137, %v5138
      %5178 = vadd.xlane.f32.xlu0 %v5177
      %v5179 = vpop.xlane.xlu0 %5178
      %v5180 = vadd.f32 %v5139, %v5140
      %5181 = vadd.xlane.f32.xlu0 %v5180
      %v5182 = vpop.xlane.xlu0 %5181
      %v5183 = vadd.f32 %v5141, %v5142
      %5184 = vadd.xlane.f32.xlu0 %v5183
      %v5185 = vpop.xlane.xlu0 %5184
      %v5186 = vadd.f32 %v5143, %v5144
      %5187 = vadd.xlane.f32.xlu0 %v5186
      %v5188 = vpop.xlane.xlu0 %5187
      %v5189 = vadd.f32 %v5145, %v5146
      %5190 = vadd.xlane.f32.xlu0 %v5189
      %v5191 = vpop.xlane.xlu0 %5190
      %v5192 = vadd.f32 %v5147, %v5148
      %5193 = vadd.xlane.f32.xlu0 %v5192
      %v5194 = vpop.xlane.xlu0 %5193
      %v5195 = vadd.f32 %v5149, %v5150
      %5196 = vadd.xlane.f32.xlu0 %v5195
      %v5197 = vpop.xlane.xlu0 %5196
      %v5198 = vadd.f32 %v5151, %v5152
      %5199 = vadd.xlane.f32.xlu0 %v5198
      %v5200 = vpop.xlane.xlu0 %5199
      %v5201 = vadd.f32 %v5153, %v5154
      %5202 = vadd.xlane.f32.xlu0 %v5201
      %v5203 = vpop.xlane.xlu0 %5202
      %v5204 = vadd.f32 %v5155, %v5156
      %5205 = vadd.xlane.f32.xlu0 %v5204
      %v5206 = vpop.xlane.xlu0 %5205
      %v5207 = vmul.f32 %v5161, %v2952
      %v5208 = vmul.f32 %v5164, %v2952
      %v5209 = vmul.f32 %v5167, %v2952
      %v5210 = vmul.f32 %v5170, %v2952
      %v5211 = vmul.f32 %v5173, %v2952
      %v5212 = vmul.f32 %v5176, %v2952
      %v5213 = vmul.f32 %v5179, %v2952
      %v5214 = vmul.f32 %v5182, %v2952
      %v5215 = vmul.f32 %v5185, %v2952
      %v5216 = vmul.f32 %v5188, %v2952
      %v5217 = vmul.f32 %v5191, %v2952
      %v5218 = vmul.f32 %v5194, %v2952
      %v5219 = vmul.f32 %v5197, %v2952
      %v5220 = vmul.f32 %v5200, %v2952
      %v5221 = vmul.f32 %v5203, %v2952
      %v5222 = vmul.f32 %v5206, %v2952
      %v5223 = vsub.f32 %v5125, %v5207
      %v5224 = vsub.f32 %v5126, %v5207
      %v5225 = vsub.f32 %v5127, %v5208
      %v5226 = vsub.f32 %v5128, %v5208
      %v5227 = vsub.f32 %v5129, %v5209
      %v5228 = vsub.f32 %v5130, %v5209
      %v5229 = vsub.f32 %v5131, %v5210
      %v5230 = vsub.f32 %v5132, %v5210
      %v5231 = vsub.f32 %v5133, %v5211
      %v5232 = vsub.f32 %v5134, %v5211
      %v5233 = vsub.f32 %v5135, %v5212
      %v5234 = vsub.f32 %v5136, %v5212
      %v5235 = vsub.f32 %v5137, %v5213
      %v5236 = vsub.f32 %v5138, %v5213
      %v5237 = vsub.f32 %v5139, %v5214
      %v5238 = vsub.f32 %v5140, %v5214
      %v5239 = vsub.f32 %v5141, %v5215
      %v5240 = vsub.f32 %v5142, %v5215
      %v5241 = vsub.f32 %v5143, %v5216
      %v5242 = vsub.f32 %v5144, %v5216
      %v5243 = vsub.f32 %v5145, %v5217
      %v5244 = vsub.f32 %v5146, %v5217
      %v5245 = vsub.f32 %v5147, %v5218
      %v5246 = vsub.f32 %v5148, %v5218
      %v5247 = vsub.f32 %v5149, %v5219
      %v5248 = vsub.f32 %v5150, %v5219
      %v5249 = vsub.f32 %v5151, %v5220
      %v5250 = vsub.f32 %v5152, %v5220
      %v5251 = vsub.f32 %v5153, %v5221
      %v5252 = vsub.f32 %v5154, %v5221
      %v5253 = vsub.f32 %v5155, %v5222
      %v5254 = vsub.f32 %v5156, %v5222
      %v5255 = vmul.f32 %v5223, %v5223
      %v5256 = vmul.f32 %v5224, %v5224
      %v5257 = vmul.f32 %v5225, %v5225
      %v5258 = vmul.f32 %v5226, %v5226
      %v5259 = vmul.f32 %v5227, %v5227
      %v5260 = vmul.f32 %v5228, %v5228
      %v5261 = vmul.f32 %v5229, %v5229
      %v5262 = vmul.f32 %v5230, %v5230
      %v5263 = vmul.f32 %v5231, %v5231
      %v5264 = vmul.f32 %v5232, %v5232
      %v5265 = vmul.f32 %v5233, %v5233
      %v5266 = vmul.f32 %v5234, %v5234
      %v5267 = vmul.f32 %v5235, %v5235
      %v5268 = vmul.f32 %v5236, %v5236
      %v5269 = vmul.f32 %v5237, %v5237
      %v5270 = vmul.f32 %v5238, %v5238
      %v5271 = vmul.f32 %v5239, %v5239
      %v5272 = vmul.f32 %v5240, %v5240
      %v5273 = vmul.f32 %v5241, %v5241
      %v5274 = vmul.f32 %v5242, %v5242
      %v5275 = vmul.f32 %v5243, %v5243
      %v5276 = vmul.f32 %v5244, %v5244
      %v5277 = vmul.f32 %v5245, %v5245
      %v5278 = vmul.f32 %v5246, %v5246
      %v5279 = vmul.f32 %v5247, %v5247
      %v5280 = vmul.f32 %v5248, %v5248
      %v5281 = vmul.f32 %v5249, %v5249
      %v5282 = vmul.f32 %v5250, %v5250
      %v5283 = vmul.f32 %v5251, %v5251
      %v5284 = vmul.f32 %v5252, %v5252
      %v5285 = vmul.f32 %v5253, %v5253
      %v5286 = vmul.f32 %v5254, %v5254
      %v5287 = vadd.f32 %v5255, %v5256
      %5288 = vadd.xlane.f32.xlu0 %v5287
      %v5289 = vpop.xlane.xlu0 %5288
      %v5290 = vadd.f32 %v5257, %v5258
      %5291 = vadd.xlane.f32.xlu0 %v5290
      %v5292 = vpop.xlane.xlu0 %5291
      %v5293 = vadd.f32 %v5259, %v5260
      %5294 = vadd.xlane.f32.xlu0 %v5293
      %v5295 = vpop.xlane.xlu0 %5294
      %v5296 = vadd.f32 %v5261, %v5262
      %5297 = vadd.xlane.f32.xlu0 %v5296
      %v5298 = vpop.xlane.xlu0 %5297
      %v5299 = vadd.f32 %v5263, %v5264
      %5300 = vadd.xlane.f32.xlu0 %v5299
      %v5301 = vpop.xlane.xlu0 %5300
      %v5302 = vadd.f32 %v5265, %v5266
      %5303 = vadd.xlane.f32.xlu0 %v5302
      %v5304 = vpop.xlane.xlu0 %5303
      %v5305 = vadd.f32 %v5267, %v5268
      %5306 = vadd.xlane.f32.xlu0 %v5305
      %v5307 = vpop.xlane.xlu0 %5306
      %v5308 = vadd.f32 %v5269, %v5270
      %5309 = vadd.xlane.f32.xlu0 %v5308
      %v5310 = vpop.xlane.xlu0 %5309
      %v5311 = vadd.f32 %v5271, %v5272
      %5312 = vadd.xlane.f32.xlu0 %v5311
      %v5313 = vpop.xlane.xlu0 %5312
      %v5314 = vadd.f32 %v5273, %v5274
      %5315 = vadd.xlane.f32.xlu0 %v5314
      %v5316 = vpop.xlane.xlu0 %5315
      %v5317 = vadd.f32 %v5275, %v5276
      %5318 = vadd.xlane.f32.xlu0 %v5317
      %v5319 = vpop.xlane.xlu0 %5318
      %v5320 = vadd.f32 %v5277, %v5278
      %5321 = vadd.xlane.f32.xlu0 %v5320
      %v5322 = vpop.xlane.xlu0 %5321
      %v5323 = vadd.f32 %v5279, %v5280
      %5324 = vadd.xlane.f32.xlu0 %v5323
      %v5325 = vpop.xlane.xlu0 %5324
      %v5326 = vadd.f32 %v5281, %v5282
      %5327 = vadd.xlane.f32.xlu0 %v5326
      %v5328 = vpop.xlane.xlu0 %5327
      %v5329 = vadd.f32 %v5283, %v5284
      %5330 = vadd.xlane.f32.xlu0 %v5329
      %v5331 = vpop.xlane.xlu0 %5330
      %v5332 = vadd.f32 %v5285, %v5286
      %5333 = vadd.xlane.f32.xlu0 %v5332
      %v5334 = vpop.xlane.xlu0 %5333
      %v5335 = vmul.f32 %v5289, %v2952
      %v5336 = vmul.f32 %v5292, %v2952
      %v5337 = vmul.f32 %v5295, %v2952
      %v5338 = vmul.f32 %v5298, %v2952
      %v5339 = vmul.f32 %v5301, %v2952
      %v5340 = vmul.f32 %v5304, %v2952
      %v5341 = vmul.f32 %v5307, %v2952
      %v5342 = vmul.f32 %v5310, %v2952
      %v5343 = vmul.f32 %v5313, %v2952
      %v5344 = vmul.f32 %v5316, %v2952
      %v5345 = vmul.f32 %v5319, %v2952
      %v5346 = vmul.f32 %v5322, %v2952
      %v5347 = vmul.f32 %v5325, %v2952
      %v5348 = vmul.f32 %v5328, %v2952
      %v5349 = vmul.f32 %v5331, %v2952
      %v5350 = vmul.f32 %v5334, %v2952
      %v5351 = vadd.f32 %v5335, 1e-12
      %v5352 = vadd.f32 %v5336, 1e-12
      %v5353 = vadd.f32 %v5337, 1e-12
      %v5354 = vadd.f32 %v5338, 1e-12
      %v5355 = vadd.f32 %v5339, 1e-12
      %v5356 = vadd.f32 %v5340, 1e-12
      %v5357 = vadd.f32 %v5341, 1e-12
      %v5358 = vadd.f32 %v5342, 1e-12
      %v5359 = vadd.f32 %v5343, 1e-12
      %v5360 = vadd.f32 %v5344, 1e-12
      %v5361 = vadd.f32 %v5345, 1e-12
      %v5362 = vadd.f32 %v5346, 1e-12
      %v5363 = vadd.f32 %v5347, 1e-12
      %v5364 = vadd.f32 %v5348, 1e-12
      %v5365 = vadd.f32 %v5349, 1e-12
      %v5366 = vadd.f32 %v5350, 1e-12
      %v5367 = vrsqrt.pop %v5351
      %v5368 = vrsqrt.pop %v5352
      %v5369 = vrsqrt.pop %v5353
      %v5370 = vrsqrt.pop %v5354
      %v5371 = vrsqrt.pop %v5355
      %v5372 = vrsqrt.pop %v5356
      %v5373 = vrsqrt.pop %v5357
      %v5374 = vrsqrt.pop %v5358
      %v5375 = vrsqrt.pop %v5359
      %v5376 = vrsqrt.pop %v5360
      %v5377 = vrsqrt.pop %v5361
      %v5378 = vrsqrt.pop %v5362
      %v5379 = vrsqrt.pop %v5363
      %v5380 = vrsqrt.pop %v5364
      %v5381 = vrsqrt.pop %v5365
      %v5382 = vrsqrt.pop %v5366
      %v5383 = vmul.f32 %v5223, %v5367
      %v5384 = vmul.f32 %v5224, %v5367
      %v5385 = vmul.f32 %v5225, %v5368
      %v5386 = vmul.f32 %v5226, %v5368
      %v5387 = vmul.f32 %v5227, %v5369
      %v5388 = vmul.f32 %v5228, %v5369
      %v5389 = vmul.f32 %v5229, %v5370
      %v5390 = vmul.f32 %v5230, %v5370
      %v5391 = vmul.f32 %v5231, %v5371
      %v5392 = vmul.f32 %v5232, %v5371
      %v5393 = vmul.f32 %v5233, %v5372
      %v5394 = vmul.f32 %v5234, %v5372
      %v5395 = vmul.f32 %v5235, %v5373
      %v5396 = vmul.f32 %v5236, %v5373
      %v5397 = vmul.f32 %v5237, %v5374
      %v5398 = vmul.f32 %v5238, %v5374
      %v5399 = vmul.f32 %v5239, %v5375
      %v5400 = vmul.f32 %v5240, %v5375
      %v5401 = vmul.f32 %v5241, %v5376
      %v5402 = vmul.f32 %v5242, %v5376
      %v5403 = vmul.f32 %v5243, %v5377
      %v5404 = vmul.f32 %v5244, %v5377
      %v5405 = vmul.f32 %v5245, %v5378
      %v5406 = vmul.f32 %v5246, %v5378
      %v5407 = vmul.f32 %v5247, %v5379
      %v5408 = vmul.f32 %v5248, %v5379
      %v5409 = vmul.f32 %v5249, %v5380
      %v5410 = vmul.f32 %v5250, %v5380
      %v5411 = vmul.f32 %v5251, %v5381
      %v5412 = vmul.f32 %v5252, %v5381
      %v5413 = vmul.f32 %v5253, %v5382
      %v5414 = vmul.f32 %v5254, %v5382
      %v5416 = vlaneseq
      %v5417 = vshrl.u32 %v5416, 7
      %v5418 = vsub.s32 0, %v5417
      %v5419 = vrot.slane %v5157, %v5418
      %v5420 = vlaneseq
      %v5421 = vshrl.u32 %v5420, 7
      %v5422 = vsub.s32 1, %v5421
      %v5423 = vrot.slane %v5157, %v5422
      %v5426 = vmul.f32 %v5383, %v5419
      %v5427 = vmul.f32 %v5384, %v5423
      %v5428 = vmul.f32 %v5385, %v5419
      %v5429 = vmul.f32 %v5386, %v5423
      %v5430 = vmul.f32 %v5387, %v5419
      %v5431 = vmul.f32 %v5388, %v5423
      %v5432 = vmul.f32 %v5389, %v5419
      %v5433 = vmul.f32 %v5390, %v5423
      %v5434 = vmul.f32 %v5391, %v5419
      %v5435 = vmul.f32 %v5392, %v5423
      %v5436 = vmul.f32 %v5393, %v5419
      %v5437 = vmul.f32 %v5394, %v5423
      %v5438 = vmul.f32 %v5395, %v5419
      %v5439 = vmul.f32 %v5396, %v5423
      %v5440 = vmul.f32 %v5397, %v5419
      %v5441 = vmul.f32 %v5398, %v5423
      %v5442 = vmul.f32 %v5399, %v5419
      %v5443 = vmul.f32 %v5400, %v5423
      %v5444 = vmul.f32 %v5401, %v5419
      %v5445 = vmul.f32 %v5402, %v5423
      %v5446 = vmul.f32 %v5403, %v5419
      %v5447 = vmul.f32 %v5404, %v5423
      %v5448 = vmul.f32 %v5405, %v5419
      %v5449 = vmul.f32 %v5406, %v5423
      %v5450 = vmul.f32 %v5407, %v5419
      %v5451 = vmul.f32 %v5408, %v5423
      %v5452 = vmul.f32 %v5409, %v5419
      %v5453 = vmul.f32 %v5410, %v5423
      %v5454 = vmul.f32 %v5411, %v5419
      %v5455 = vmul.f32 %v5412, %v5423
      %v5456 = vmul.f32 %v5413, %v5419
      %v5457 = vmul.f32 %v5414, %v5423
      %v5459 = vlaneseq
      %v5460 = vshrl.u32 %v5459, 7
      %v5461 = vsub.s32 0, %v5460
      %v5462 = vrot.slane %v5158, %v5461
      %v5463 = vlaneseq
      %v5464 = vshrl.u32 %v5463, 7
      %v5465 = vsub.s32 1, %v5464
      %v5466 = vrot.slane %v5158, %v5465
      %v5469 = vadd.f32 %v5426, %v5462
      %v5470 = vadd.f32 %v5427, %v5466
      %v5471 = vadd.f32 %v5428, %v5462
      %v5472 = vadd.f32 %v5429, %v5466
      %v5473 = vadd.f32 %v5430, %v5462
      %v5474 = vadd.f32 %v5431, %v5466
      %v5475 = vadd.f32 %v5432, %v5462
      %v5476 = vadd.f32 %v5433, %v5466
      %v5477 = vadd.f32 %v5434, %v5462
      %v5478 = vadd.f32 %v5435, %v5466
      %v5479 = vadd.f32 %v5436, %v5462
      %v5480 = vadd.f32 %v5437, %v5466
      %v5481 = vadd.f32 %v5438, %v5462
      %v5482 = vadd.f32 %v5439, %v5466
      %v5483 = vadd.f32 %v5440, %v5462
      %v5484 = vadd.f32 %v5441, %v5466
      %v5485 = vadd.f32 %v5442, %v5462
      %v5486 = vadd.f32 %v5443, %v5466
      %v5487 = vadd.f32 %v5444, %v5462
      %v5488 = vadd.f32 %v5445, %v5466
      %v5489 = vadd.f32 %v5446, %v5462
      %v5490 = vadd.f32 %v5447, %v5466
      %v5491 = vadd.f32 %v5448, %v5462
      %v5492 = vadd.f32 %v5449, %v5466
      %v5493 = vadd.f32 %v5450, %v5462
      %v5494 = vadd.f32 %v5451, %v5466
      %v5495 = vadd.f32 %v5452, %v5462
      %v5496 = vadd.f32 %v5453, %v5466
      %v5497 = vadd.f32 %v5454, %v5462
      %v5498 = vadd.f32 %v5455, %v5466
      %v5499 = vadd.f32 %v5456, %v5462
      %v5500 = vadd.f32 %v5457, %v5466
      %p5501 = scmp.lt.s32.totalorder %s30, 1
      // Predicated region
      $region81: #{visual_dialog_encoder_forward.3} parent=75 // pred_check
        %p5502 = pneg %p5501
      $region82: #{visual_dialog_encoder_forward.3} parent=75 // pred_check_branch
        %5504 = sbr.rel (%p5502) target = $region84
      $region83: #{visual_dialog_encoder_forward.3} parent=75 // pred_region
        %5505 = vst [vmem:[#allocation2] sm:$0xff] %v5469
        %5506 = vst [vmem:[#allocation2 + $0x8] sm:$0xff] %v5470
        %5507 = vst [vmem:[#allocation2 + $0x10] sm:$0xff] %v5471
        %5508 = vst [vmem:[#allocation2 + $0x18] sm:$0xff] %v5472
        %5509 = vst [vmem:[#allocation2 + $0x20] sm:$0xff] %v5473
        %5510 = vst [vmem:[#allocation2 + $0x28] sm:$0xff] %v5474
        %5511 = vst [vmem:[#allocation2 + $0x30] sm:$0xff] %v5475
        %5512 = vst [vmem:[#allocation2 + $0x38] sm:$0xff] %v5476
        %5513 = vst [vmem:[#allocation2 + $0x40] sm:$0xff] %v5477
        %5514 = vst [vmem:[#allocation2 + $0x48] sm:$0xff] %v5478
        %5515 = vst [vmem:[#allocation2 + $0x50] sm:$0xff] %v5479
        %5516 = vst [vmem:[#allocation2 + $0x58] sm:$0xff] %v5480
        %5517 = vst [vmem:[#allocation2 + $0x60] sm:$0xff] %v5481
        %5518 = vst [vmem:[#allocation2 + $0x68] sm:$0xff] %v5482
        %5519 = vst [vmem:[#allocation2 + $0x70] sm:$0xff] %v5483
        %5520 = vst [vmem:[#allocation2 + $0x78] sm:$0xff] %v5484
        %5521 = vst [vmem:[#allocation2 + $0x80] sm:$0xff] %v5485
        %5522 = vst [vmem:[#allocation2 + $0x88] sm:$0xff] %v5486
        %5523 = vst [vmem:[#allocation2 + $0x90] sm:$0xff] %v5487
        %5524 = vst [vmem:[#allocation2 + $0x98] sm:$0xff] %v5488
        %5525 = vst [vmem:[#allocation2 + $0xa0] sm:$0xff] %v5489
        %5526 = vst [vmem:[#allocation2 + $0xa8] sm:$0xff] %v5490
        %5527 = vst [vmem:[#allocation2 + $0xb0] sm:$0xff] %v5491
        %5528 = vst [vmem:[#allocation2 + $0xb8] sm:$0xff] %v5492
        %5529 = vst [vmem:[#allocation2 + $0xc0] sm:$0xff] %v5493
        %5530 = vst [vmem:[#allocation2 + $0xc8] sm:$0xff] %v5494
        %5531 = vst [vmem:[#allocation2 + $0xd0] sm:$0xff] %v5495
        %5532 = vst [vmem:[#allocation2 + $0xd8] sm:$0xff] %v5496
        %5533 = vst [vmem:[#allocation2 + $0xe0] sm:$0xff] %v5497
        %5534 = vst [vmem:[#allocation2 + $0xe8] sm:$0xff] %v5498
        %5535 = vst [vmem:[#allocation2 + $0xf0] sm:$0xff] %v5499
        %5536 = vst [vmem:[#allocation2 + $0xf8] sm:$0xff] %v5500
      $region84: #{visual_dialog_encoder_forward.3} parent=75 // pred_fallthru
        _
      %p5537 = scmp.eq.s32.totalorder %s30, 1
      // Predicated region
      $region85: #{visual_dialog_encoder_forward.3} parent=75 // pred_check
        %p5538 = pneg %p5537
      $region86: #{visual_dialog_encoder_forward.3} parent=75 // pred_check_branch
        %5540 = sbr.rel (%p5538) target = $region88
      $region87: #{visual_dialog_encoder_forward.3} parent=75 // pred_region
        %5541 = vst [vmem:[%s709] sm:$0xff] %v5469
        %5542 = vst [vmem:[%s709 + $0x8] sm:$0xff] %v5470
        %5543 = vst [vmem:[%s709 + $0x10] sm:$0xff] %v5471
        %5544 = vst [vmem:[%s709 + $0x18] sm:$0xff] %v5472
        %5545 = vst [vmem:[%s709 + $0x20] sm:$0xff] %v5473
        %5546 = vst [vmem:[%s709 + $0x28] sm:$0xff] %v5474
        %5547 = vst [vmem:[%s709 + $0x30] sm:$0xff] %v5475
        %5548 = vst [vmem:[%s709 + $0x38] sm:$0xff] %v5476
        %5549 = vst [vmem:[%s709 + $0x40] sm:$0xff] %v5477
        %5550 = vst [vmem:[%s709 + $0x48] sm:$0xff] %v5478
        %5551 = vst [vmem:[%s709 + $0x50] sm:$0xff] %v5479
        %5552 = vst [vmem:[%s709 + $0x58] sm:$0xff] %v5480
        %5553 = vst [vmem:[%s709 + $0x60] sm:$0xff] %v5481
        %5554 = vst [vmem:[%s709 + $0x68] sm:$0xff] %v5482
        %5555 = vst [vmem:[%s709 + $0x70] sm:$0xff] %v5483
        %5556 = vst [vmem:[%s709 + $0x78] sm:$0xff] %v5484
        %5557 = vst [vmem:[%s709 + $0x80] sm:$0xff] %v5485
        %5558 = vst [vmem:[%s709 + $0x88] sm:$0xff] %v5486
        %5559 = vst [vmem:[%s709 + $0x90] sm:$0xff] %v5487
        %5560 = vst [vmem:[%s709 + $0x98] sm:$0xff] %v5488
        %5561 = vst [vmem:[%s709 + $0xa0] sm:$0xff] %v5489
        %5562 = vst [vmem:[%s709 + $0xa8] sm:$0xff] %v5490
        %5563 = vst [vmem:[%s709 + $0xb0] sm:$0xff] %v5491
        %5564 = vst [vmem:[%s709 + $0xb8] sm:$0xff] %v5492
        %5565 = vst [vmem:[%s709 + $0xc0] sm:$0xff] %v5493
        %5566 = vst [vmem:[%s709 + $0xc8] sm:$0xff] %v5494
        %5567 = vst [vmem:[%s709 + $0xd0] sm:$0xff] %v5495
        %5568 = vst [vmem:[%s709 + $0xd8] sm:$0xff] %v5496
        %5569 = vst [vmem:[%s709 + $0xe0] sm:$0xff] %v5497
        %5570 = vst [vmem:[%s709 + $0xe8] sm:$0xff] %v5498
        %5571 = vst [vmem:[%s709 + $0xf0] sm:$0xff] %v5499
        %5572 = vst [vmem:[%s709 + $0xf8] sm:$0xff] %v5500
      $region88: #{visual_dialog_encoder_forward.3} parent=75 // pred_fallthru
        _
      %p5573 = scmp.lt.s32.totalorder %s29, 1
      %s5574 = scalar_select %p5573, %s29, 1
      %s5575 = smul.addr %s5574, 32
      %s5576 = smul.addr %s5575, 8
      %s5577 = scalar_lea.vmem %s14, %s5576
      // Predicated region
      $region89: #{visual_dialog_encoder_forward.3} parent=75 // pred_check
        %p5578 = pneg %p419
      $region90: #{visual_dialog_encoder_forward.3} parent=75 // pred_check_branch
        %5580 = sbr.rel (%p5578) target = $region92
      $region91: #{visual_dialog_encoder_forward.3} parent=75 // pred_region
        _
      $region92: #{visual_dialog_encoder_forward.3} parent=75 // pred_fallthru
        _
    $region76: #{visual_dialog_encoder_forward.3} parent=5 // pred_fallthru
      _
    %p5581 = scmp.le.s32.totalorder 2, %s20
    // Predicated region
    $region93: #{visual_dialog_encoder_forward.3} parent=5 // pred_check
      %p5582 = pneg %p5581
    $region94: #{visual_dialog_encoder_forward.3} parent=5 // pred_check_branch
      %5584 = sbr.rel (%p5582) target = $region96
    $region95: #{visual_dialog_encoder_forward.3} parent=5 // pred_region
      %s5585 = ssub.s32 %s20, 2
      // Predicated region
      $region97: #{visual_dialog_encoder_forward.3} parent=95 // pred_check
        %p5586 = pneg %p425
      $region98: #{visual_dialog_encoder_forward.3} parent=95 // pred_check_branch
        %5588 = sbr.rel (%p5586) target = $region100
      $region99: #{visual_dialog_encoder_forward.3} parent=95 // pred_region
        %p5589 = scmp.lt.s32.totalorder %s31, 1
        %s5590 = scalar_select %p5589, %s31, 1
        %s5591 = smul.addr %s5590, 32
        %s5592 = smul.addr %s5591, 8
        %s5593 = scalar_lea.vmem %s14, %s5592
      $region100: #{visual_dialog_encoder_forward.3} parent=95 // pred_fallthru
        _
    $region96: #{visual_dialog_encoder_forward.3} parent=5 // pred_fallthru
      _
  $region6: #{visual_dialog_encoder_forward.3} parent=0 // loop_footer
    %s24 = sadd.s32 1, %s20
  $region7: #{visual_dialog_encoder_forward.3} parent=0 // loop_footer_branch
    %19 = sbr.rel target = $region3
  $region8: #{visual_dialog_encoder_forward.3} parent=0 // loop_exit
    _

</llo_original>
